<compile_context>
chip_gen: v7x
topology: tpu7x:2x2x1
jax: 0.10.0
libtpu: 0.0.40
codegen_flags: <defaults>
</compile_context>

<pallas_src>
import jax
import jax.numpy as jnp
from jax import lax
from jax.experimental import pallas as pl
from jax.experimental.pallas import tpu as pltpu

EPS = 1e-5
LANE = 128           # pad Cout to multiples of 128 lanes (lane-dense vst)
MAX_ROW_TILE = 512   # GEMM row tile; 512 x 512 bf16 = 0.5 MiB per buffer


def _leaky(y):
    return jnp.where(y > 0, y, 0.2 * y)


def _round_up(x, m):
    return (x + m - 1) // m * m


def _pad_k(k):
    # Blocks always span the whole K dim, so when K < 128 we only need bf16
    # sublane (16) alignment instead of padding the patch tensor to 128.
    return _round_up(k, 16) if k <= LANE else _round_up(k, LANE)


def _im2col(x, k, stride, pad):
    """NHWC -> (B, Ho*Wo, k*k*C) patches; K index = (kh*k + kw)*C + c."""
    x = jnp.pad(x, ((0, 0), (pad, pad), (pad, pad), (0, 0)))
    B, Hp, Wp, C = x.shape
    Ho = (Hp - k) // stride + 1
    Wo = (Wp - k) // stride + 1
    cols = []
    for kh in range(k):
        for kw in range(k):
            cols.append(x[:, kh:kh + stride * Ho:stride,
                           kw:kw + stride * Wo:stride, :])
    p = jnp.stack(cols, axis=3).reshape(B, Ho * Wo, k * k * C)
    return p, Ho, Wo


def _prep_weight(w, k_pad, n_pad):
    """torch OIHW -> (k*k*Cin, Cout), zero-padded to (k_pad, n_pad), bf16."""
    cout, cin, kh, kw = w.shape
    w2d = jnp.transpose(w, (2, 3, 1, 0)).reshape(kh * kw * cin, cout)
    w2d = jnp.pad(w2d, ((0, k_pad - w2d.shape[0]), (0, n_pad - cout)))
    return w2d.astype(jnp.bfloat16)


def _prep_bias(b, n_pad):
    return jnp.pad(b, (0, n_pad - b.shape[0])).reshape(1, n_pad).astype(jnp.float32)


# ----------------------------------------------------------------------------
# Module-level kernels
# ----------------------------------------------------------------------------
def _matmul_bias_leaky_kernel(p_ref, w_ref, b_ref, o_ref):
    y = jnp.dot(p_ref[...], w_ref[...], preferred_element_type=jnp.float32)
    o_ref[...] = _leaky(y + b_ref[...]).astype(o_ref.dtype)


# ----------------------------------------------------------------------------
# Layer wrappers
# ----------------------------------------------------------------------------
def _gemm_layout(x, w, stride):
    """Glue: bf16 cast, im2col, collapse batch into rows, pad to tiles."""
    B, H, W, cin = x.shape
    cout, _, k, _ = w.shape
    p, Ho, Wo = _im2col(x.astype(jnp.bfloat16), k, stride, 1)
    K = k * k * cin
    Kp = _pad_k(K)
    Np = _round_up(cout, LANE)
    R = B * Ho * Wo
    TR = min(MAX_ROW_TILE, _round_up(R, 16))
    Rp = _round_up(R, TR)
    pr = p.reshape(R, K)
    pr = jnp.pad(pr, ((0, Rp - R), (0, Kp - K)))          # stays bf16
    return pr, (B, Ho, Wo, cout, Kp, Np, R, Rp, TR)


def conv_leaky_layer(x, w, b, stride):
    """Conv2d + LeakyReLU(0.2), batch collapsed into GEMM rows, bf16 out."""
    pr, (B, Ho, Wo, cout, Kp, Np, R, Rp, TR) = _gemm_layout(x, w, stride)
    w2d = _prep_weight(w, Kp, Np)
    bb = _prep_bias(b, Np)
    n_tiles = Rp // TR
    y = pl.pallas_call(
        _matmul_bias_leaky_kernel,
        out_shape=jax.ShapeDtypeStruct((Rp, Np), jnp.bfloat16),
        grid=(n_tiles,),
        in_specs=[pl.BlockSpec((TR, Kp), lambda i: (i, 0)),
                  pl.BlockSpec((Kp, Np), lambda i: (0, 0)),
                  pl.BlockSpec((1, Np), lambda i: (0, 0))],
        out_specs=pl.BlockSpec((TR, Np), lambda i: (i, 0)),
        compiler_params=pltpu.CompilerParams(dimension_semantics=("parallel",)),
    )(pr, w2d, bb)
    return y[:R, :cout].reshape(B, Ho, Wo, cout)


def conv_bn_leaky_layer(x, w, b, stride):
    """Conv2d + BatchNorm2d(train) + LeakyReLU(0.2).

    The Pallas kernel does the conv and emits per-tile partial channel sums /
    sum-of-squares (row axis fully parallel); the wrapper reduces the tiny
    stats, corrects analytically for zero-padded rows, and applies the
    scale/shift + LeakyReLU as XLA-fused JAX (no second HBM round trip).
    """
    pr, (B, Ho, Wo, cout, Kp, Np, R, Rp, TR) = _gemm_layout(x, w, stride)
    w2d = _prep_weight(w, Kp, Np)
    bb = _prep_bias(b, Np)
    n_tiles = Rp // TR

    def stats_kernel(p_ref, w_ref, b_ref, o_ref, s_ref, q_ref):
        y = jnp.dot(p_ref[...], w_ref[...],
                    preferred_element_type=jnp.float32) + b_ref[...]
        o_ref[...] = y.astype(o_ref.dtype)
        ps = jnp.sum(y, axis=0, keepdims=True)
        pq = jnp.sum(y * y, axis=0, keepdims=True)
        # Write partial stats broadcast to an aligned (8, Np) block.
        s_ref[...] = jnp.broadcast_to(ps, s_ref.shape)
        q_ref[...] = jnp.broadcast_to(pq, q_ref.shape)

    y, psum, psq = pl.pallas_call(
        stats_kernel,
        out_shape=(jax.ShapeDtypeStruct((Rp, Np), jnp.bfloat16),
                   jax.ShapeDtypeStruct((n_tiles * 8, Np), jnp.float32),
                   jax.ShapeDtypeStruct((n_tiles * 8, Np), jnp.float32)),
        grid=(n_tiles,),
        in_specs=[pl.BlockSpec((TR, Kp), lambda i: (i, 0)),
                  pl.BlockSpec((Kp, Np), lambda i: (0, 0)),
                  pl.BlockSpec((1, Np), lambda i: (0, 0))],
        out_specs=(pl.BlockSpec((TR, Np), lambda i: (i, 0)),
                   pl.BlockSpec((8, Np), lambda i: (i, 0)),
                   pl.BlockSpec((8, Np), lambda i: (i, 0))),
        compiler_params=pltpu.CompilerParams(dimension_semantics=("parallel",)),
    )(pr, w2d, bb)

    ssum = jnp.sum(psum.reshape(n_tiles, 8, Np)[:, 0, :], axis=0, keepdims=True)
    ssq = jnp.sum(psq.reshape(n_tiles, 8, Np)[:, 0, :], axis=0, keepdims=True)
    npad = Rp - R
    if npad:
        # Padded patch rows are exactly zero -> their conv output is `bias`.
        ssum = ssum - float(npad) * bb
        ssq = ssq - float(npad) * (bb * bb)
    mean = ssum / float(R)
    var = jnp.maximum(ssq / float(R) - mean * mean, 0.0)
    inv = lax.rsqrt(var + EPS)
    scale = inv[:, :cout]
    shift = (-mean * inv)[:, :cout]
    # Scale/shift + LeakyReLU as JAX; XLA fuses it with the next layer's
    # im2col pad/stack so the normalized tensor never does an extra HBM trip.
    yn = _leaky(y[:R, :cout].astype(jnp.float32) * scale + shift)
    return yn.astype(jnp.bfloat16).reshape(B, Ho, Wo, cout)


def conv_in_leaky_layer(x, w, b, stride, head=None):
    """Conv2d + InstanceNorm2d + LeakyReLU(0.2), one sample per grid step.

    If `head=(w5, b5)` is given, the final Conv2d(cout->1, k=4, p=1) plus the
    global average pool are fused into the kernel epilogue and the function
    returns the (B, 1) discriminator output directly.
    """
    B, H, W, cin = x.shape
    cout, _, k, _ = w.shape
    p, Ho, Wo = _im2col(x.astype(jnp.bfloat16), k, stride, 1)
    K = k * k * cin
    Kp = _pad_k(K)
    Np = _round_up(cout, LANE)
    M = Ho * Wo
    Mp = _round_up(M, 8)
    npad = Mp - M
    pp = jnp.pad(p, ((0, 0), (0, Mp - M), (0, Kp - K)))    # stays bf16
    w2d = _prep_weight(w, Kp, Np)
    bb = _prep_bias(b, Np)
    cparams = pltpu.CompilerParams(dimension_semantics=("parallel",))

    # TODO(synk): at production sizes (e.g. 256^2 input, ndf=64) add an Mp/Kp
    # reduction grid axis + VMEM accumulator and an explicit vmem_limit_bytes
    # so the per-sample block fits v7x's 32 MiB scoped-VMEM default.

    def _norm(y, b_vec):
        # Per-sample instance-norm stats in f32; padded rows contribute
        # exactly `bias`, subtracted analytically instead of masking.
        s = jnp.sum(y, axis=0, keepdims=True)
        q = jnp.sum(y * y, axis=0, keepdims=True)
        if npad:
            s = s - float(npad) * b_vec
            q = q - float(npad) * (b_vec * b_vec)
        mean = s * (1.0 / M)
        var = jnp.maximum(q * (1.0 / M) - mean * mean, 0.0)
        return _leaky((y - mean) * lax.rsqrt(var + EPS))

    if head is None:
        def kernel(p_ref, w_ref, b_ref, o_ref):
            y = jnp.dot(p_ref[0], w_ref[...],
                        preferred_element_type=jnp.float32) + b_ref[...]
            o_ref[0] = _norm(y, b_ref[...]).astype(o_ref.dtype)

        out = pl.pallas_call(
            kernel,
            out_shape=jax.ShapeDtypeStruct((B, Mp, Np), jnp.bfloat16),
            grid=(B,),
            in_specs=[pl.BlockSpec((1, Mp, Kp), lambda i: (i, 0, 0)),
                      pl.BlockSpec((Kp, Np), lambda i: (0, 0)),
                      pl.BlockSpec((1, Np), lambda i: (0, 0))],
            out_specs=pl.BlockSpec((1, Mp, Np), lambda i: (i, 0, 0)),
            compiler_params=cparams,
        )(pp, w2d, bb)
        return out[:, :M, :cout].reshape(B, Ho, Wo, cout)

    # ---- fused final conv(Cout=1, k=4, p=1, s=1) + global avg-pool head ----
    w5, b5 = head
    H5, W5 = Ho - 1, Wo - 1          # spatial size of the final conv output
    P5 = H5 * W5
    # amat[(dh*4+dw), h*Wo+w] = 1 iff activation (h, w) lies in the H5 x W5
    # sliding-window footprint for kernel offset (dh, dw) (zero padding = 1).
    dh = jnp.arange(4)
    hh = jnp.arange(Ho)
    rmask = (hh[None, :] >= dh[:, None] - 1) & (hh[None, :] <= dh[:, None] + H5 - 2)
    dw = jnp.arange(4)
    ww = jnp.arange(Wo)
    cmask = (ww[None, :] >= dw[:, None] - 1) & (ww[None, :] <= dw[:, None] + W5 - 2)
    amat = (rmask[:, None, :, None] & cmask[None, :, None, :]).astype(jnp.float32)
    amat = jnp.pad(amat.reshape(16, M), ((0, 0), (0, Mp - M)))
    # last conv weight (1, cout, 4, 4) -> (16, cout), padded to (16, Np)
    w5t = jnp.transpose(w5, (2, 3, 1, 0)).reshape(16, cout)
    w5t = jnp.pad(w5t, ((0, 0), (0, Np - cout))).astype(jnp.float32)

    def head_kernel(p_ref, w_ref, b_ref, a_ref, w5_ref, o_ref):
        y = jnp.dot(p_ref[0], w_ref[...],
                    preferred_element_type=jnp.float32) + b_ref[...]
        ya = _norm(y, b_ref[...])
        # Column means of the (implicit) last-layer im2col = window sums / P5.
        s = jnp.dot(a_ref[...], ya, preferred_element_type=jnp.float32)  # (16, Np)
        val = jnp.sum(s * w5_ref[...]) * (1.0 / P5)
        o_ref[0] = jnp.full((8, LANE), val, jnp.float32)

    out = pl.pallas_call(
        head_kernel,
        out_shape=jax.ShapeDtypeStruct((B, 8, LANE), jnp.float32),
        grid=(B,),
        in_specs=[pl.BlockSpec((1, Mp, Kp), lambda i: (i, 0, 0)),
                  pl.BlockSpec((Kp, Np), lambda i: (0, 0)),
                  pl.BlockSpec((1, Np), lambda i: (0, 0)),
                  pl.BlockSpec((16, Mp), lambda i: (0, 0)),
                  pl.BlockSpec((16, Np), lambda i: (0, 0))],
        out_specs=pl.BlockSpec((1, 8, LANE), lambda i: (i, 0, 0)),
        compiler_params=cparams,
    )(pp, w2d, bb, amat, w5t)
    return out[:, 0, 0:1] + b5.reshape(1, 1).astype(jnp.float32)


# ----------------------------------------------------------------------------
# Full forward pass
# ----------------------------------------------------------------------------
def discriminator_forward(x_nchw, params):
    """Forward pass of Discriminator(ndf). x_nchw: (B, 3, H, W) f32 -> (B, 1)."""
    x = jnp.transpose(x_nchw, (0, 2, 3, 1)).astype(jnp.float32)   # NHWC
    (w1, b1), (w2, b2), (w3, b3), (w4, b4), (w5, b5) = params
    y = conv_leaky_layer(x, w1, b1, stride=2)        # conv + LeakyReLU
    y = conv_bn_leaky_layer(y, w2, b2, stride=2)     # conv + BN + LeakyReLU
    y = conv_in_leaky_layer(y, w3, b3, stride=2)     # conv + IN + LeakyReLU
    # conv + IN + LeakyReLU, with the final 1-ch conv + global pool fused in
    return conv_in_leaky_layer(y, w4, b4, stride=1, head=(w5, b5))


def init_params(key, ndf):
    shapes = [
        (ndf, 3, 4, 4),
        (ndf * 2, ndf, 4, 4),
        (ndf * 4, ndf * 2, 4, 4),
        (ndf * 8, ndf * 4, 4, 4),
        (1, ndf * 8, 4, 4),
    ]
    params = []
    for s in shapes:
        key, kw, kb = jax.random.split(key, 3)
        w = jax.random.normal(kw, s, jnp.float32) * 0.05
        b = jax.random.normal(kb, (s[0],), jnp.float32) * 0.05
        params.append((w, b))
    return params


def reference_forward(x, params):
    """Pure-JAX f32 reference (mirrors the PyTorch module, fresh-init norms)."""
    def conv(y, w, b, stride):
        out = lax.conv_general_dilated(
            y, w, (stride, stride), ((1, 1), (1, 1)),
            dimension_numbers=("NCHW", "OIHW", "NCHW"))
        return out + b[None, :, None, None]

    (w1, b1), (w2, b2), (w3, b3), (w4, b4), (w5, b5) = params
    y = _leaky(conv(x, w1, b1, 2))

    y = conv(y, w2, b2, 2)
    m = jnp.mean(y, axis=(0, 2, 3), keepdims=True)
    v = jnp.mean((y - m) ** 2, axis=(0, 2, 3), keepdims=True)
    y = _leaky((y - m) / jnp.sqrt(v + EPS))

    y = conv(y, w3, b3, 2)
    m = jnp.mean(y, axis=(2, 3), keepdims=True)
    v = jnp.mean((y - m) ** 2, axis=(2, 3), keepdims=True)
    y = _leaky((y - m) / jnp.sqrt(v + EPS))

    y = conv(y, w4, b4, 1)
    m = jnp.mean(y, axis=(2, 3), keepdims=True)
    v = jnp.mean((y - m) ** 2, axis=(2, 3), keepdims=True)
    y = _leaky((y - m) / jnp.sqrt(v + EPS))

    y = conv(y, w5, b5, 1)
    return jnp.mean(y, axis=(2, 3)).reshape(x.shape[0], -1)


if __name__ == "__main__":
    ndf = 8
    key = jax.random.PRNGKey(0)
    kx, kp = jax.random.split(key)
    # 64x64 keeps every conv non-empty and exercises multi-tile grids
    # (layer-1: 4 row tiles with per-tile BN-style stats reduction in layer-2).
    x = jax.random.normal(kx, (2, 3, 64, 64), jnp.float32)
    params = init_params(kp, ndf)

    out = jax.jit(discriminator_forward)(x, params)
    out = jax.block_until_ready(out)

    ref = jax.jit(reference_forward)(x, params)
    ref = jax.block_until_ready(ref)

    assert out.shape == (2, 1), out.shape
    # bf16 MXU inputs + bf16-carried activations (f32 accumulation / stats)
    # -> relaxed tolerance vs the f32 reference.
    max_err = float(jnp.max(jnp.abs(out - ref)))
    assert jnp.allclose(out, ref, atol=8e-2, rtol=8e-2), (out, ref, max_err)
    print("KERNEL_OK")
</pallas_src>

<mosaic_0001>
module attributes {stable_mosaic.version = 11 : i64} {
  func.func @_matmul_bias_leaky_kernel(%arg0: i32, %arg1: memref<512x48xbf16, #tpu.memory_space<vmem>>, %arg2: memref<48x128xbf16, #tpu.memory_space<vmem>>, %arg3: memref<1x128xf32, #tpu.memory_space<vmem>>, %arg4: memref<512x128xbf16, #tpu.memory_space<vmem>>) attributes {dimension_semantics = [#tpu.dimension_semantics<parallel>], iteration_bounds = array<i64: 4>, scalar_prefetch = 0 : i64, scratch_operands = 0 : i64, tpu.core_type = #tpu.core_type<tc>, window_params = [{transform_indices = @transform_0, window_bounds = array<i64: 512, 48>}, {pipeline_mode = #tpu.pipeline_mode<synchronous>, transform_indices = @transform_1, window_bounds = array<i64: 48, 128>}, {pipeline_mode = #tpu.pipeline_mode<synchronous>, transform_indices = @transform_2, window_bounds = array<i64: 1, 128>}, {transform_indices = @transform_3, window_bounds = array<i64: 512, 128>}]} {
    %c0 = arith.constant 0 : index
    %c0_0 = arith.constant 0 : index
    %0 = vector.load %arg1[%c0, %c0_0] : memref<512x48xbf16, #tpu.memory_space<vmem>>, vector<512x48xbf16>
    %c0_1 = arith.constant 0 : index
    %c0_2 = arith.constant 0 : index
    %1 = vector.load %arg2[%c0_1, %c0_2] : memref<48x128xbf16, #tpu.memory_space<vmem>>, vector<48x128xbf16>
    %cst = arith.constant dense<0.000000e+00> : vector<512x128xf32>
    %2 = tpu.matmul %0, %1, %cst {dimension_numbers = #tpu.dot_dimension_numbers<[1], [0], [0], [1], [0, 0, 1, 1], [], []>} : vector<512x48xbf16>, vector<48x128xbf16>, vector<512x128xf32> -> vector<512x128xf32>
    %c0_3 = arith.constant 0 : index
    %c0_4 = arith.constant 0 : index
    %3 = vector.load %arg3[%c0_3, %c0_4] : memref<1x128xf32, #tpu.memory_space<vmem>>, vector<1x128xf32>
    %4 = vector.broadcast %3 : vector<1x128xf32> to vector<512x128xf32>
    %5 = arith.addf %2, %4 : vector<512x128xf32>
    %cst_5 = arith.constant 0.000000e+00 : f32
    %6 = vector.broadcast %cst_5 : f32 to vector<512x128xf32>
    %7 = arith.cmpf ogt, %5, %6 : vector<512x128xf32>
    %cst_6 = arith.constant 2.000000e-01 : f32
    %8 = vector.broadcast %cst_6 : f32 to vector<512x128xf32>
    %9 = arith.mulf %8, %5 : vector<512x128xf32>
    %10 = arith.select %7, %5, %9 : vector<512x128xi1>, vector<512x128xf32>
    %11 = arith.truncf %10 : vector<512x128xf32> to vector<512x128xbf16>
    %c0_7 = arith.constant 0 : index
    %c0_8 = arith.constant 0 : index
    %12 = vector.load %arg4[%c0_7, %c0_8] : memref<512x128xbf16, #tpu.memory_space<vmem>>, vector<512x128xbf16>
    tpu.vector_store %arg4[%c0_7, %c0_8], %11 {strides = array<i32>} : memref<512x128xbf16, #tpu.memory_space<vmem>>, vector<512x128xbf16>,
    return
  }
  func.func @transform_0(%arg0: i32) -> (i32, i32) {
    %c0_i32 = arith.constant 0 : i32
    %c0_i32_0 = arith.constant 0 : i32
    return %arg0, %c0_i32 : i32, i32
  }
  func.func @transform_1(%arg0: i32) -> (i32, i32) {
    %c0_i32 = arith.constant 0 : i32
    %c0_i32_0 = arith.constant 0 : i32
    %c0_i32_1 = arith.constant 0 : i32
    return %c0_i32, %c0_i32_0 : i32, i32
  }
  func.func @transform_2(%arg0: i32) -> (i32, i32) {
    %c0_i32 = arith.constant 0 : i32
    %c0_i32_0 = arith.constant 0 : i32
    %c0_i32_1 = arith.constant 0 : i32
    return %c0_i32, %c0_i32_0 : i32, i32
  }
  func.func @transform_3(%arg0: i32) -> (i32, i32) {
    %c0_i32 = arith.constant 0 : i32
    %c0_i32_0 = arith.constant 0 : i32
    return %arg0, %c0_i32 : i32, i32
  }
}

module attributes {stable_mosaic.version = 11 : i64} {
  func.func @stats_kernel(%arg0: i32, %arg1: memref<512x128xbf16, #tpu.memory_space<vmem>>, %arg2: memref<128x128xbf16, #tpu.memory_space<vmem>>, %arg3: memref<1x128xf32, #tpu.memory_space<vmem>>, %arg4: memref<512x128xbf16, #tpu.memory_space<vmem>>, %arg5: memref<8x128xf32, #tpu.memory_space<vmem>>, %arg6: memref<8x128xf32, #tpu.memory_space<vmem>>) attributes {dimension_semantics = [#tpu.dimension_semantics<parallel>], iteration_bounds = array<i64: 1>, scalar_prefetch = 0 : i64, scratch_operands = 0 : i64, tpu.core_type = #tpu.core_type<tc>, window_params = [{transform_indices = @transform_0, window_bounds = array<i64: 512, 128>}, {pipeline_mode = #tpu.pipeline_mode<synchronous>, transform_indices = @transform_1, window_bounds = array<i64: 128, 128>}, {pipeline_mode = #tpu.pipeline_mode<synchronous>, transform_indices = @transform_2, window_bounds = array<i64: 1, 128>}, {transform_indices = @transform_3, window_bounds = array<i64: 512, 128>}, {transform_indices = @transform_4, window_bounds = array<i64: 8, 128>}, {transform_indices = @transform_5, window_bounds = array<i64: 8, 128>}]} {
    %c0 = arith.constant 0 : index
    %c0_0 = arith.constant 0 : index
    %0 = vector.load %arg1[%c0, %c0_0] : memref<512x128xbf16, #tpu.memory_space<vmem>>, vector<512x128xbf16>
    %c0_1 = arith.constant 0 : index
    %c0_2 = arith.constant 0 : index
    %1 = vector.load %arg2[%c0_1, %c0_2] : memref<128x128xbf16, #tpu.memory_space<vmem>>, vector<128x128xbf16>
    %cst = arith.constant dense<0.000000e+00> : vector<512x128xf32>
    %2 = tpu.matmul %0, %1, %cst {dimension_numbers = #tpu.dot_dimension_numbers<[1], [0], [0], [1], [0, 0, 1, 1], [], []>} : vector<512x128xbf16>, vector<128x128xbf16>, vector<512x128xf32> -> vector<512x128xf32>
    %c0_3 = arith.constant 0 : index
    %c0_4 = arith.constant 0 : index
    %3 = vector.load %arg3[%c0_3, %c0_4] : memref<1x128xf32, #tpu.memory_space<vmem>>, vector<1x128xf32>
    %4 = vector.broadcast %3 : vector<1x128xf32> to vector<512x128xf32>
    %5 = arith.addf %2, %4 : vector<512x128xf32>
    %6 = arith.truncf %5 : vector<512x128xf32> to vector<512x128xbf16>
    %c0_5 = arith.constant 0 : index
    %c0_6 = arith.constant 0 : index
    %7 = vector.load %arg4[%c0_5, %c0_6] : memref<512x128xbf16, #tpu.memory_space<vmem>>, vector<512x128xbf16>
    tpu.vector_store %arg4[%c0_5, %c0_6], %6 {strides = array<i32>} : memref<512x128xbf16, #tpu.memory_space<vmem>>, vector<512x128xbf16>,
    %cst_7 = arith.constant dense<0.000000e+00> : vector<128xf32>
    %8 = vector.multi_reduction <add>, %5, %cst_7 [0] : vector<512x128xf32> to vector<128xf32>
    %9 = vector.shape_cast %8 : vector<128xf32> to vector<1x128xf32>
    %10 = arith.mulf %5, %5 : vector<512x128xf32>
    %cst_8 = arith.constant dense<0.000000e+00> : vector<128xf32>
    %11 = vector.multi_reduction <add>, %10, %cst_8 [0] : vector<512x128xf32> to vector<128xf32>
    %12 = vector.shape_cast %11 : vector<128xf32> to vector<1x128xf32>
    %13 = vector.shape_cast %9 : vector<1x128xf32> to vector<1x128xf32>
    %14 = vector.broadcast %13 : vector<1x128xf32> to vector<8x128xf32>
    %c0_9 = arith.constant 0 : index
    %c0_10 = arith.constant 0 : index
    %15 = vector.load %arg5[%c0_9, %c0_10] : memref<8x128xf32, #tpu.memory_space<vmem>>, vector<8x128xf32>
    tpu.vector_store %arg5[%c0_9, %c0_10], %14 {strides = array<i32>} : memref<8x128xf32, #tpu.memory_space<vmem>>, vector<8x128xf32>,
    %16 = vector.shape_cast %12 : vector<1x128xf32> to vector<1x128xf32>
    %17 = vector.broadcast %16 : vector<1x128xf32> to vector<8x128xf32>
    %c0_11 = arith.constant 0 : index
    %c0_12 = arith.constant 0 : index
    %18 = vector.load %arg6[%c0_11, %c0_12] : memref<8x128xf32, #tpu.memory_space<vmem>>, vector<8x128xf32>
    tpu.vector_store %arg6[%c0_11, %c0_12], %17 {strides = array<i32>} : memref<8x128xf32, #tpu.memory_space<vmem>>, vector<8x128xf32>,
    return
  }
  func.func @transform_0(%arg0: i32) -> (i32, i32) {
    %c0_i32 = arith.constant 0 : i32
    %c0_i32_0 = arith.constant 0 : i32
    return %arg0, %c0_i32 : i32, i32
  }
  func.func @transform_1(%arg0: i32) -> (i32, i32) {
    %c0_i32 = arith.constant 0 : i32
    %c0_i32_0 = arith.constant 0 : i32
    %c0_i32_1 = arith.constant 0 : i32
    return %c0_i32, %c0_i32_0 : i32, i32
  }
  func.func @transform_2(%arg0: i32) -> (i32, i32) {
    %c0_i32 = arith.constant 0 : i32
    %c0_i32_0 = arith.constant 0 : i32
    %c0_i32_1 = arith.constant 0 : i32
    return %c0_i32, %c0_i32_0 : i32, i32
  }
  func.func @transform_3(%arg0: i32) -> (i32, i32) {
    %c0_i32 = arith.constant 0 : i32
    %c0_i32_0 = arith.constant 0 : i32
    return %arg0, %c0_i32 : i32, i32
  }
  func.func @transform_4(%arg0: i32) -> (i32, i32) {
    %c0_i32 = arith.constant 0 : i32
    %c0_i32_0 = arith.constant 0 : i32
    return %arg0, %c0_i32 : i32, i32
  }
  func.func @transform_5(%arg0: i32) -> (i32, i32) {
    %c0_i32 = arith.constant 0 : i32
    %c0_i32_0 = arith.constant 0 : i32
    return %arg0, %c0_i32 : i32, i32
  }
}

module attributes {stable_mosaic.version = 11 : i64} {
  func.func @kernel(%arg0: i32, %arg1: memref<1x64x256xbf16, #tpu.memory_space<vmem>>, %arg2: memref<256x128xbf16, #tpu.memory_space<vmem>>, %arg3: memref<1x128xf32, #tpu.memory_space<vmem>>, %arg4: memref<1x64x128xbf16, #tpu.memory_space<vmem>>) attributes {dimension_semantics = [#tpu.dimension_semantics<parallel>], iteration_bounds = array<i64: 2>, scalar_prefetch = 0 : i64, scratch_operands = 0 : i64, tpu.core_type = #tpu.core_type<tc>, window_params = [{transform_indices = @transform_0, window_bounds = array<i64: 1, 64, 256>}, {pipeline_mode = #tpu.pipeline_mode<synchronous>, transform_indices = @transform_1, window_bounds = array<i64: 256, 128>}, {pipeline_mode = #tpu.pipeline_mode<synchronous>, transform_indices = @transform_2, window_bounds = array<i64: 1, 128>}, {transform_indices = @transform_3, window_bounds = array<i64: 1, 64, 128>}]} {
    %c0 = arith.constant 0 : index
    %c0_0 = arith.constant 0 : index
    %c0_1 = arith.constant 0 : index
    %0 = vector.load %arg1[%c0, %c0_0, %c0_1] : memref<1x64x256xbf16, #tpu.memory_space<vmem>>, vector<1x64x256xbf16>
    %1 = vector.shape_cast %0 : vector<1x64x256xbf16> to vector<64x256xbf16>
    %c0_2 = arith.constant 0 : index
    %c0_3 = arith.constant 0 : index
    %2 = vector.load %arg2[%c0_2, %c0_3] : memref<256x128xbf16, #tpu.memory_space<vmem>>, vector<256x128xbf16>
    %cst = arith.constant dense<0.000000e+00> : vector<64x128xf32>
    %3 = tpu.matmul %1, %2, %cst {dimension_numbers = #tpu.dot_dimension_numbers<[1], [0], [0], [1], [0, 0, 1, 1], [], []>} : vector<64x256xbf16>, vector<256x128xbf16>, vector<64x128xf32> -> vector<64x128xf32>
    %c0_4 = arith.constant 0 : index
    %c0_5 = arith.constant 0 : index
    %4 = vector.load %arg3[%c0_4, %c0_5] : memref<1x128xf32, #tpu.memory_space<vmem>>, vector<1x128xf32>
    %5 = vector.broadcast %4 : vector<1x128xf32> to vector<64x128xf32>
    %6 = arith.addf %3, %5 : vector<64x128xf32>
    %cst_6 = arith.constant dense<0.000000e+00> : vector<128xf32>
    %7 = vector.multi_reduction <add>, %6, %cst_6 [0] : vector<64x128xf32> to vector<128xf32>
    %8 = vector.shape_cast %7 : vector<128xf32> to vector<1x128xf32>
    %9 = arith.mulf %6, %6 : vector<64x128xf32>
    %cst_7 = arith.constant dense<0.000000e+00> : vector<128xf32>
    %10 = vector.multi_reduction <add>, %9, %cst_7 [0] : vector<64x128xf32> to vector<128xf32>
    %11 = vector.shape_cast %10 : vector<128xf32> to vector<1x128xf32>
    %cst_8 = arith.constant 1.562500e-02 : f32
    %12 = vector.broadcast %cst_8 : f32 to vector<1x128xf32>
    %13 = arith.mulf %8, %12 : vector<1x128xf32>
    %cst_9 = arith.constant 1.562500e-02 : f32
    %14 = vector.broadcast %cst_9 : f32 to vector<1x128xf32>
    %15 = arith.mulf %11, %14 : vector<1x128xf32>
    %16 = arith.mulf %13, %13 : vector<1x128xf32>
    %17 = arith.subf %15, %16 : vector<1x128xf32>
    %cst_10 = arith.constant 0.000000e+00 : f32
    %18 = vector.broadcast %cst_10 : f32 to vector<1x128xf32>
    %19 = arith.maximumf %17, %18 : vector<1x128xf32>
    %20 = vector.broadcast %13 : vector<1x128xf32> to vector<64x128xf32>
    %21 = arith.subf %6, %20 : vector<64x128xf32>
    %cst_11 = arith.constant 9.99999974E-6 : f32
    %22 = vector.broadcast %cst_11 : f32 to vector<1x128xf32>
    %23 = arith.addf %19, %22 : vector<1x128xf32>
    %24 = math.rsqrt %23 : vector<1x128xf32>
    %25 = vector.broadcast %24 : vector<1x128xf32> to vector<64x128xf32>
    %26 = arith.mulf %21, %25 : vector<64x128xf32>
    %cst_12 = arith.constant 0.000000e+00 : f32
    %27 = vector.broadcast %cst_12 : f32 to vector<64x128xf32>
    %28 = arith.cmpf ogt, %26, %27 : vector<64x128xf32>
    %cst_13 = arith.constant 2.000000e-01 : f32
    %29 = vector.broadcast %cst_13 : f32 to vector<64x128xf32>
    %30 = arith.mulf %29, %26 : vector<64x128xf32>
    %31 = arith.select %28, %26, %30 : vector<64x128xi1>, vector<64x128xf32>
    %32 = arith.truncf %31 : vector<64x128xf32> to vector<64x128xbf16>
    %c0_14 = arith.constant 0 : index
    %c0_15 = arith.constant 0 : index
    %c0_16 = arith.constant 0 : index
    %33 = vector.load %arg4[%c0_14, %c0_15, %c0_16] : memref<1x64x128xbf16, #tpu.memory_space<vmem>>, vector<1x64x128xbf16>
    %34 = vector.shape_cast %33 : vector<1x64x128xbf16> to vector<64x128xbf16>
    %35 = vector.shape_cast %32 : vector<64x128xbf16> to vector<1x64x128xbf16>
    tpu.vector_store %arg4[%c0_14, %c0_15, %c0_16], %35 {strides = array<i32>} : memref<1x64x128xbf16, #tpu.memory_space<vmem>>, vector<1x64x128xbf16>,
    return
  }
  func.func @transform_0(%arg0: i32) -> (i32, i32, i32) {
    %c0_i32 = arith.constant 0 : i32
    %c0_i32_0 = arith.constant 0 : i32
    %c0_i32_1 = arith.constant 0 : i32
    return %arg0, %c0_i32, %c0_i32_0 : i32, i32, i32
  }
  func.func @transform_1(%arg0: i32) -> (i32, i32) {
    %c0_i32 = arith.constant 0 : i32
    %c0_i32_0 = arith.constant 0 : i32
    %c0_i32_1 = arith.constant 0 : i32
    return %c0_i32, %c0_i32_0 : i32, i32
  }
  func.func @transform_2(%arg0: i32) -> (i32, i32) {
    %c0_i32 = arith.constant 0 : i32
    %c0_i32_0 = arith.constant 0 : i32
    %c0_i32_1 = arith.constant 0 : i32
    return %c0_i32, %c0_i32_0 : i32, i32
  }
  func.func @transform_3(%arg0: i32) -> (i32, i32, i32) {
    %c0_i32 = arith.constant 0 : i32
    %c0_i32_0 = arith.constant 0 : i32
    %c0_i32_1 = arith.constant 0 : i32
    return %arg0, %c0_i32, %c0_i32_0 : i32, i32, i32
  }
}

module attributes {stable_mosaic.version = 11 : i64} {
  func.func @head_kernel(%arg0: i32, %arg1: memref<1x56x512xbf16, #tpu.memory_space<vmem>>, %arg2: memref<512x128xbf16, #tpu.memory_space<vmem>>, %arg3: memref<1x128xf32, #tpu.memory_space<vmem>>, %arg4: memref<16x56xf32, #tpu.memory_space<vmem>>, %arg5: memref<16x128xf32, #tpu.memory_space<vmem>>, %arg6: memref<1x8x128xf32, #tpu.memory_space<vmem>>) attributes {dimension_semantics = [#tpu.dimension_semantics<parallel>], iteration_bounds = array<i64: 2>, scalar_prefetch = 0 : i64, scratch_operands = 0 : i64, tpu.core_type = #tpu.core_type<tc>, window_params = [{transform_indices = @transform_0, window_bounds = array<i64: 1, 56, 512>}, {pipeline_mode = #tpu.pipeline_mode<synchronous>, transform_indices = @transform_1, window_bounds = array<i64: 512, 128>}, {pipeline_mode = #tpu.pipeline_mode<synchronous>, transform_indices = @transform_2, window_bounds = array<i64: 1, 128>}, {pipeline_mode = #tpu.pipeline_mode<synchronous>, transform_indices = @transform_3, window_bounds = array<i64: 16, 56>}, {pipeline_mode = #tpu.pipeline_mode<synchronous>, transform_indices = @transform_4, window_bounds = array<i64: 16, 128>}, {transform_indices = @transform_5, window_bounds = array<i64: 1, 8, 128>}]} {
    %c0 = arith.constant 0 : index
    %c0_0 = arith.constant 0 : index
    %c0_1 = arith.constant 0 : index
    %0 = vector.load %arg1[%c0, %c0_0, %c0_1] : memref<1x56x512xbf16, #tpu.memory_space<vmem>>, vector<1x56x512xbf16>
    %1 = vector.shape_cast %0 : vector<1x56x512xbf16> to vector<56x512xbf16>
    %c0_2 = arith.constant 0 : index
    %c0_3 = arith.constant 0 : index
    %2 = vector.load %arg2[%c0_2, %c0_3] : memref<512x128xbf16, #tpu.memory_space<vmem>>, vector<512x128xbf16>
    %cst = arith.constant dense<0.000000e+00> : vector<56x128xf32>
    %3 = tpu.matmul %1, %2, %cst {dimension_numbers = #tpu.dot_dimension_numbers<[1], [0], [0], [1], [0, 0, 1, 1], [], []>} : vector<56x512xbf16>, vector<512x128xbf16>, vector<56x128xf32> -> vector<56x128xf32>
    %c0_4 = arith.constant 0 : index
    %c0_5 = arith.constant 0 : index
    %4 = vector.load %arg3[%c0_4, %c0_5] : memref<1x128xf32, #tpu.memory_space<vmem>>, vector<1x128xf32>
    %5 = vector.broadcast %4 : vector<1x128xf32> to vector<56x128xf32>
    %6 = arith.addf %3, %5 : vector<56x128xf32>
    %c0_6 = arith.constant 0 : index
    %c0_7 = arith.constant 0 : index
    %7 = vector.load %arg3[%c0_6, %c0_7] : memref<1x128xf32, #tpu.memory_space<vmem>>, vector<1x128xf32>
    %cst_8 = arith.constant dense<0.000000e+00> : vector<128xf32>
    %8 = vector.multi_reduction <add>, %6, %cst_8 [0] : vector<56x128xf32> to vector<128xf32>
    %9 = vector.shape_cast %8 : vector<128xf32> to vector<1x128xf32>
    %10 = arith.mulf %6, %6 : vector<56x128xf32>
    %cst_9 = arith.constant dense<0.000000e+00> : vector<128xf32>
    %11 = vector.multi_reduction <add>, %10, %cst_9 [0] : vector<56x128xf32> to vector<128xf32>
    %12 = vector.shape_cast %11 : vector<128xf32> to vector<1x128xf32>
    %cst_10 = arith.constant 7.000000e+00 : f32
    %13 = vector.broadcast %cst_10 : f32 to vector<1x128xf32>
    %14 = arith.mulf %13, %7 : vector<1x128xf32>
    %15 = arith.subf %9, %14 : vector<1x128xf32>
    %16 = arith.mulf %7, %7 : vector<1x128xf32>
    %cst_11 = arith.constant 7.000000e+00 : f32
    %17 = vector.broadcast %cst_11 : f32 to vector<1x128xf32>
    %18 = arith.mulf %17, %16 : vector<1x128xf32>
    %19 = arith.subf %12, %18 : vector<1x128xf32>
    %cst_12 = arith.constant 0.0204081628 : f32
    %20 = vector.broadcast %cst_12 : f32 to vector<1x128xf32>
    %21 = arith.mulf %15, %20 : vector<1x128xf32>
    %cst_13 = arith.constant 0.0204081628 : f32
    %22 = vector.broadcast %cst_13 : f32 to vector<1x128xf32>
    %23 = arith.mulf %19, %22 : vector<1x128xf32>
    %24 = arith.mulf %21, %21 : vector<1x128xf32>
    %25 = arith.subf %23, %24 : vector<1x128xf32>
    %cst_14 = arith.constant 0.000000e+00 : f32
    %26 = vector.broadcast %cst_14 : f32 to vector<1x128xf32>
    %27 = arith.maximumf %25, %26 : vector<1x128xf32>
    %28 = vector.broadcast %21 : vector<1x128xf32> to vector<56x128xf32>
    %29 = arith.subf %6, %28 : vector<56x128xf32>
    %cst_15 = arith.constant 9.99999974E-6 : f32
    %30 = vector.broadcast %cst_15 : f32 to vector<1x128xf32>
    %31 = arith.addf %27, %30 : vector<1x128xf32>
    %32 = math.rsqrt %31 : vector<1x128xf32>
    %33 = vector.broadcast %32 : vector<1x128xf32> to vector<56x128xf32>
    %34 = arith.mulf %29, %33 : vector<56x128xf32>
    %cst_16 = arith.constant 0.000000e+00 : f32
    %35 = vector.broadcast %cst_16 : f32 to vector<56x128xf32>
    %36 = arith.cmpf ogt, %34, %35 : vector<56x128xf32>
    %cst_17 = arith.constant 2.000000e-01 : f32
    %37 = vector.broadcast %cst_17 : f32 to vector<56x128xf32>
    %38 = arith.mulf %37, %34 : vector<56x128xf32>
    %39 = arith.select %36, %34, %38 : vector<56x128xi1>, vector<56x128xf32>
    %c0_18 = arith.constant 0 : index
    %c0_19 = arith.constant 0 : index
    %40 = vector.load %arg4[%c0_18, %c0_19] : memref<16x56xf32, #tpu.memory_space<vmem>>, vector<16x56xf32>
    %cst_20 = arith.constant dense<0.000000e+00> : vector<16x128xf32>
    %41 = tpu.matmul %40, %39, %cst_20 {dimension_numbers = #tpu.dot_dimension_numbers<[1], [0], [0], [1], [0, 0, 1, 1], [], []>} : vector<16x56xf32>, vector<56x128xf32>, vector<16x128xf32> -> vector<16x128xf32>
    %c0_21 = arith.constant 0 : index
    %c0_22 = arith.constant 0 : index
    %42 = vector.load %arg5[%c0_21, %c0_22] : memref<16x128xf32, #tpu.memory_space<vmem>>, vector<16x128xf32>
    %43 = arith.mulf %41, %42 : vector<16x128xf32>
    %44 = vector.shape_cast %43 : vector<16x128xf32> to vector<1x16x128xf32>
    %cst_23 = arith.constant dense<0.000000e+00> : vector<1xf32>
    %45 = vector.multi_reduction <add>, %44, %cst_23 [1, 2] : vector<1x16x128xf32> to vector<1xf32>
    %46 = vector.shape_cast %45 : vector<1xf32> to vector<1x1x1xf32>
    %47 = vector.extract %46[0, 0, 0] : f32 from vector<1x1x1xf32>
    %cst_24 = arith.constant 0.027777778 : f32
    %48 = arith.mulf %47, %cst_24 : f32
    %49 = vector.broadcast %48 : f32 to vector<8x128xf32>
    %c0_25 = arith.constant 0 : index
    %c0_26 = arith.constant 0 : index
    %c0_27 = arith.constant 0 : index
    %50 = vector.load %arg6[%c0_25, %c0_26, %c0_27] : memref<1x8x128xf32, #tpu.memory_space<vmem>>, vector<1x8x128xf32>
    %51 = vector.shape_cast %50 : vector<1x8x128xf32> to vector<8x128xf32>
    %52 = vector.shape_cast %49 : vector<8x128xf32> to vector<1x8x128xf32>
    tpu.vector_store %arg6[%c0_25, %c0_26, %c0_27], %52 {strides = array<i32>} : memref<1x8x128xf32, #tpu.memory_space<vmem>>, vector<1x8x128xf32>,
    return
  }
  func.func @transform_0(%arg0: i32) -> (i32, i32, i32) {
    %c0_i32 = arith.constant 0 : i32
    %c0_i32_0 = arith.constant 0 : i32
    %c0_i32_1 = arith.constant 0 : i32
    return %arg0, %c0_i32, %c0_i32_0 : i32, i32, i32
  }
  func.func @transform_1(%arg0: i32) -> (i32, i32) {
    %c0_i32 = arith.constant 0 : i32
    %c0_i32_0 = arith.constant 0 : i32
    %c0_i32_1 = arith.constant 0 : i32
    return %c0_i32, %c0_i32_0 : i32, i32
  }
  func.func @transform_2(%arg0: i32) -> (i32, i32) {
    %c0_i32 = arith.constant 0 : i32
    %c0_i32_0 = arith.constant 0 : i32
    %c0_i32_1 = arith.constant 0 : i32
    return %c0_i32, %c0_i32_0 : i32, i32
  }
  func.func @transform_3(%arg0: i32) -> (i32, i32) {
    %c0_i32 = arith.constant 0 : i32
    %c0_i32_0 = arith.constant 0 : i32
    %c0_i32_1 = arith.constant 0 : i32
    return %c0_i32, %c0_i32_0 : i32, i32
  }
  func.func @transform_4(%arg0: i32) -> (i32, i32) {
    %c0_i32 = arith.constant 0 : i32
    %c0_i32_0 = arith.constant 0 : i32
    %c0_i32_1 = arith.constant 0 : i32
    return %c0_i32, %c0_i32_0 : i32, i32
  }
  func.func @transform_5(%arg0: i32) -> (i32, i32, i32) {
    %c0_i32 = arith.constant 0 : i32
    %c0_i32_0 = arith.constant 0 : i32
    %c0_i32_1 = arith.constant 0 : i32
    return %arg0, %c0_i32, %c0_i32_0 : i32, i32, i32
  }
}

</mosaic_0001>

<llo_original>
// kernel: discriminator_forward.4
$region0: #{discriminator_forward.4}
  #allocation0 [shape = 'u32[]', space=smem, size = 0x4, offset = 0x4, fixed_abs, tag = 'smem constant byte address 0x4 - core index']
  #allocation1 [shape = 'u32[144,128]{1,0:T(1,128)}', space=vmem, size = 0x12000, scoped, tag = 'internal scratch']
  %s0 = inlined_call_operand.vmem [shape: bf16[2048,48], index: 0, kind: input, shape index: {}]
  %s1 = inlined_call_operand.vmem [shape: bf16[48,128], index: 1, kind: input, shape index: {}]
  %s2 = inlined_call_operand.vmem [shape: f32[1,128], index: 2, kind: input, shape index: {}]
  %s3 = inlined_call_operand.vmem [shape: bf16[2048,128], index: 3, kind: output, shape index: {}]
  %s4 = sld [smem:[#allocation0]]
  $region45: #{discriminator_forward.4} parent=0
    _
  %s6 = ssub.s32 1, %s4
  %s7 = scalar_select 0, %s6, %s4
  loop: start=0, step=1, limit=6
  $region2: #{discriminator_forward.4} parent=0 // loop_pre_header
    _
  $region3: #{discriminator_forward.4} parent=0 // loop_header
    %s9 = sphi 0, %s13
    %p10 = scmp.ge.s32.totalorder %s9, 6
    %s19 = sphi 0, %s21
    %s22 = sphi 0, %s19
    %s23 = sphi 0, %s22
    %s39 = sphi 0, %s23
    %s43 = sphi 0, %s43
    %s45 = sphi 0, %s43
    %s46 = sphi 0, %s45
    %s60 = sphi 0, %s46
    %s64 = sphi 0, %s64
    %s66 = sphi 0, %s64
    %s67 = sphi 0, %s66
    %s81 = sphi 0, %s67
    %s87 = sphi 0, %s89
    %s90 = sphi 0, %s87
    %s91 = sphi 0, %s90
    %s107 = sphi 0, %s91
  $region4: #{discriminator_forward.4} parent=0 // loop_header_branch
    %12 = sbr.rel (%p10) target = $region8
  $region5: #{discriminator_forward.4} parent=0 // loop_body
    %s14 = ssub.s32 %s9, 1
    %s15 = ssub.s32 %s9, 2
    %s16 = sadd.s32 %s9, 1
    %s17 = ssub.s32 %s9, %s16
    %p18 = scmp.eq.s32.totalorder %s17, 0
    %s20 = sadd.s32 %s19, 1
    %s21 = scalar_select %p18, %s19, %s20
    %p24 = pneg %p18
    %p25 = scmp.eq.s32.totalorder %s9, 3
    %p26 = por %p24, %p25
    %p27 = scmp.ne.s32.totalorder %s19, %s22
    %p28 = scmp.eq.s32.totalorder %s9, 0
    %p29 = por %p27, %p28
    %p30 = scmp.ne.s32.totalorder %s19, %s22
    %p31 = scmp.eq.s32.totalorder %s14, 3
    %p32 = por %p30, %p31
    %p33 = scmp.ne.s32.totalorder %s22, %s23
    %p34 = scmp.eq.s32.totalorder %s14, 0
    %p35 = por %p33, %p34
    %p36 = scmp.ne.s32.totalorder %s22, %s23
    %p37 = scmp.eq.s32.totalorder %s15, 3
    %p38 = por %p36, %p37
    %p40 = scmp.ne.s32.totalorder %s23, %s39
    %p41 = scmp.eq.s32.totalorder %s15, 0
    %p42 = por %p40, %p41
    %s44 = sadd.s32 %s43, 1
    %p47 = scmp.eq.s32.totalorder %s9, 3
    %p48 = scmp.ne.s32.totalorder %s43, %s45
    %p49 = scmp.eq.s32.totalorder %s9, 0
    %p50 = por %p48, %p49
    %p51 = scmp.ne.s32.totalorder %s43, %s45
    %p52 = scmp.eq.s32.totalorder %s14, 3
    %p53 = por %p51, %p52
    %p54 = scmp.ne.s32.totalorder %s45, %s46
    %p55 = scmp.eq.s32.totalorder %s14, 0
    %p56 = por %p54, %p55
    %p57 = scmp.ne.s32.totalorder %s45, %s46
    %p58 = scmp.eq.s32.totalorder %s15, 3
    %p59 = por %p57, %p58
    %p61 = scmp.ne.s32.totalorder %s46, %s60
    %p62 = scmp.eq.s32.totalorder %s15, 0
    %p63 = por %p61, %p62
    %s65 = sadd.s32 %s64, 1
    %p68 = scmp.eq.s32.totalorder %s9, 3
    %p69 = scmp.ne.s32.totalorder %s64, %s66
    %p70 = scmp.eq.s32.totalorder %s9, 0
    %p71 = por %p69, %p70
    %p72 = scmp.ne.s32.totalorder %s64, %s66
    %p73 = scmp.eq.s32.totalorder %s14, 3
    %p74 = por %p72, %p73
    %p75 = scmp.ne.s32.totalorder %s66, %s67
    %p76 = scmp.eq.s32.totalorder %s14, 0
    %p77 = por %p75, %p76
    %p78 = scmp.ne.s32.totalorder %s66, %s67
    %p79 = scmp.eq.s32.totalorder %s15, 3
    %p80 = por %p78, %p79
    %p82 = scmp.ne.s32.totalorder %s67, %s81
    %p83 = scmp.eq.s32.totalorder %s15, 0
    %p84 = por %p82, %p83
    %s85 = ssub.s32 %s9, %s16
    %p86 = scmp.eq.s32.totalorder %s85, 0
    %s88 = sadd.s32 %s87, 1
    %s89 = scalar_select %p86, %s87, %s88
    %p92 = pneg %p86
    %p93 = scmp.eq.s32.totalorder %s9, 3
    %p94 = por %p92, %p93
    %p95 = scmp.ne.s32.totalorder %s87, %s90
    %p96 = scmp.eq.s32.totalorder %s9, 0
    %p97 = por %p95, %p96
    %p98 = scmp.ne.s32.totalorder %s87, %s90
    %p99 = scmp.eq.s32.totalorder %s14, 3
    %p100 = por %p98, %p99
    %p101 = scmp.ne.s32.totalorder %s90, %s91
    %p102 = scmp.eq.s32.totalorder %s14, 0
    %p103 = por %p101, %p102
    %p104 = scmp.ne.s32.totalorder %s90, %s91
    %p105 = scmp.eq.s32.totalorder %s15, 3
    %p106 = por %p104, %p105
    %p108 = scmp.ne.s32.totalorder %s91, %s107
    %p109 = scmp.eq.s32.totalorder %s15, 0
    %p110 = por %p108, %p109
    %p111 = scmp.le.s32.totalorder 1, %s9
    %p112 = scmp.lt.s32.totalorder %s9, 5
    %p113 = pnand %p111, %p112
    %p114 = pneg %p113
    // Predicated region
    $region9: #{discriminator_forward.4} parent=5 // pred_check
      _
    $region10: #{discriminator_forward.4} parent=5 // pred_check_branch
      %116 = sbr.rel (%p113) target = $region12
    $region11: #{discriminator_forward.4} parent=5 // pred_region
      %s117 = ssub.s32 %s9, 1
      // Predicated region
      $region13: #{discriminator_forward.4} parent=11 // pred_check
        %p118 = pneg %p56
      $region14: #{discriminator_forward.4} parent=11 // pred_check_branch
        %120 = sbr.rel (%p118) target = $region16
      $region15: #{discriminator_forward.4} parent=11 // pred_region
        _
      $region16: #{discriminator_forward.4} parent=11 // pred_fallthru
        _
      // Predicated region
      $region17: #{discriminator_forward.4} parent=11 // pred_check
        %p121 = pneg %p77
      $region18: #{discriminator_forward.4} parent=11 // pred_check_branch
        %123 = sbr.rel (%p121) target = $region20
      $region19: #{discriminator_forward.4} parent=11 // pred_region
        _
      $region20: #{discriminator_forward.4} parent=11 // pred_fallthru
        _
    $region12: #{discriminator_forward.4} parent=5 // pred_fallthru
      _
    %p124 = scmp.lt.s32.totalorder %s9, 4
    // Predicated region
    $region21: #{discriminator_forward.4} parent=5 // pred_check
      %p125 = pneg %p124
    $region22: #{discriminator_forward.4} parent=5 // pred_check_branch
      %127 = sbr.rel (%p125) target = $region24
    $region23: #{discriminator_forward.4} parent=5 // pred_region
      // Predicated region
      $region25: #{discriminator_forward.4} parent=23 // pred_check
        %p128 = pneg %p29
      $region26: #{discriminator_forward.4} parent=23 // pred_check_branch
        %130 = sbr.rel (%p128) target = $region28
      $region27: #{discriminator_forward.4} parent=23 // pred_region
        %s131 = smul.u32 64, %s9
        %p132 = scmp.lt.s32.totalorder %s131, 255
        %s133 = scalar_select %p132, %s131, 255
        %s134 = smul.addr %s133, 4
        %s135 = scalar_lea.vmem %s0, %s134
        %s136 = smul.u32 64, %s9
      $region28: #{discriminator_forward.4} parent=23 // pred_fallthru
        _
    $region24: #{discriminator_forward.4} parent=5 // pred_fallthru
      _
    %p137 = scmp.le.s32.totalorder 1, %s9
    %p138 = scmp.lt.s32.totalorder %s9, 5
    %p139 = pnand %p137, %p138
    %p140 = pneg %p139
    // Predicated region
    $region29: #{discriminator_forward.4} parent=5 // pred_check
      _
    $region30: #{discriminator_forward.4} parent=5 // pred_check_branch
      %142 = sbr.rel (%p139) target = $region32
    $region31: #{discriminator_forward.4} parent=5 // pred_region
      %s143 = ssub.s32 %s9, 1
      %s144 = smul.u32 64, %s14
      %p145 = scmp.lt.s32.totalorder %s144, 255
      %s146 = scalar_select %p145, %s144, 255
      %s147 = smul.addr %s146, 4
      %s148 = scalar_lea.vmem %s0, %s147
      %p149 = pneg %p35
      %p150 = pneg %p32
      %p151 = pneg %p56
      %p152 = pneg %p53
      %p153 = pneg %p77
      %p154 = pneg %p74
      %p155 = pneg %p103
      %p156 = pneg %p100
      %s157 = smul.u32 64, %s14
      %p158 = scmp.lt.s32.totalorder %s157, 255
      %s159 = scalar_select %p158, %s157, 255
      %s160 = smul.addr %s159, 4
      %s161 = scalar_lea.vmem %s3, %s160
      %s162 = smul.u32 64, %s14
      %p163 = scmp.lt.s32.totalorder %s162, 255
      %s164 = scalar_select %p163, %s162, 255
      %s165 = smul.addr %s164, 4
      %s166 = scalar_lea.vmem %s0, %s165
      %s167 = smul.u32 64, %s14
      %s168 = smul.u32 64, %s14
      %p169 = scmp.lt.s32.totalorder %s168, 255
      %s170 = scalar_select %p169, %s168, 255
      %s171 = smul.addr %s170, 4
      %s172 = scalar_lea.vmem %s3, %s171
      %s173 = smul.u32 64, %s14
      %v175 = vld [vmem:[%s166] sm:$0xf]
      %v176 = vld [vmem:[%s166 + $0x4] sm:$0xf]
      %v177 = vld [vmem:[%s166 + $0x8] sm:$0xf]
      %v178 = vld [vmem:[%s166 + $0xc] sm:$0xf]
      %v179 = vld [vmem:[%s166 + $0x10] sm:$0xf]
      %v180 = vld [vmem:[%s166 + $0x14] sm:$0xf]
      %v181 = vld [vmem:[%s166 + $0x18] sm:$0xf]
      %v182 = vld [vmem:[%s166 + $0x1c] sm:$0xf]
      %v183 = vld [vmem:[%s166 + $0x20] sm:$0xf]
      %v184 = vld [vmem:[%s166 + $0x24] sm:$0xf]
      %v185 = vld [vmem:[%s166 + $0x28] sm:$0xf]
      %v186 = vld [vmem:[%s166 + $0x2c] sm:$0xf]
      %v187 = vld [vmem:[%s166 + $0x30] sm:$0xf]
      %v188 = vld [vmem:[%s166 + $0x34] sm:$0xf]
      %v189 = vld [vmem:[%s166 + $0x38] sm:$0xf]
      %v190 = vld [vmem:[%s166 + $0x3c] sm:$0xf]
      %v191 = vld [vmem:[%s166 + $0x40] sm:$0xf]
      %v192 = vld [vmem:[%s166 + $0x44] sm:$0xf]
      %v193 = vld [vmem:[%s166 + $0x48] sm:$0xf]
      %v194 = vld [vmem:[%s166 + $0x4c] sm:$0xf]
      %v195 = vld [vmem:[%s166 + $0x50] sm:$0xf]
      %v196 = vld [vmem:[%s166 + $0x54] sm:$0xf]
      %v197 = vld [vmem:[%s166 + $0x58] sm:$0xf]
      %v198 = vld [vmem:[%s166 + $0x5c] sm:$0xf]
      %v199 = vld [vmem:[%s166 + $0x60] sm:$0xf]
      %v200 = vld [vmem:[%s166 + $0x64] sm:$0xf]
      %v201 = vld [vmem:[%s166 + $0x68] sm:$0xf]
      %v202 = vld [vmem:[%s166 + $0x6c] sm:$0xf]
      %v203 = vld [vmem:[%s166 + $0x70] sm:$0xf]
      %v204 = vld [vmem:[%s166 + $0x74] sm:$0xf]
      %v205 = vld [vmem:[%s166 + $0x78] sm:$0xf]
      %v206 = vld [vmem:[%s166 + $0x7c] sm:$0xf]
      %v207 = vld [vmem:[%s166 + $0x80] sm:$0xf]
      %v208 = vld [vmem:[%s166 + $0x84] sm:$0xf]
      %v209 = vld [vmem:[%s166 + $0x88] sm:$0xf]
      %v210 = vld [vmem:[%s166 + $0x8c] sm:$0xf]
      %v211 = vld [vmem:[%s166 + $0x90] sm:$0xf]
      %v212 = vld [vmem:[%s166 + $0x94] sm:$0xf]
      %v213 = vld [vmem:[%s166 + $0x98] sm:$0xf]
      %v214 = vld [vmem:[%s166 + $0x9c] sm:$0xf]
      %v215 = vld [vmem:[%s166 + $0xa0] sm:$0xf]
      %v216 = vld [vmem:[%s166 + $0xa4] sm:$0xf]
      %v217 = vld [vmem:[%s166 + $0xa8] sm:$0xf]
      %v218 = vld [vmem:[%s166 + $0xac] sm:$0xf]
      %v219 = vld [vmem:[%s166 + $0xb0] sm:$0xf]
      %v220 = vld [vmem:[%s166 + $0xb4] sm:$0xf]
      %v221 = vld [vmem:[%s166 + $0xb8] sm:$0xf]
      %v222 = vld [vmem:[%s166 + $0xbc] sm:$0xf]
      %v223 = vld [vmem:[%s166 + $0xc0] sm:$0xf]
      %v224 = vld [vmem:[%s166 + $0xc4] sm:$0xf]
      %v225 = vld [vmem:[%s166 + $0xc8] sm:$0xf]
      %v226 = vld [vmem:[%s166 + $0xcc] sm:$0xf]
      %v227 = vld [vmem:[%s166 + $0xd0] sm:$0xf]
      %v228 = vld [vmem:[%s166 + $0xd4] sm:$0xf]
      %v229 = vld [vmem:[%s166 + $0xd8] sm:$0xf]
      %v230 = vld [vmem:[%s166 + $0xdc] sm:$0xf]
      %v231 = vld [vmem:[%s166 + $0xe0] sm:$0xf]
      %v232 = vld [vmem:[%s166 + $0xe4] sm:$0xf]
      %v233 = vld [vmem:[%s166 + $0xe8] sm:$0xf]
      %v234 = vld [vmem:[%s166 + $0xec] sm:$0xf]
      %v235 = vld [vmem:[%s166 + $0xf0] sm:$0xf]
      %v236 = vld [vmem:[%s166 + $0xf4] sm:$0xf]
      %v237 = vld [vmem:[%s166 + $0xf8] sm:$0xf]
      %v238 = vld [vmem:[%s166 + $0xfc] sm:$0xf]
      %v239 = vld [vmem:[%s1] sm:$0xf]
      %v240 = vld [vmem:[%s1 + $0x4] sm:$0xf]
      %v241 = vld [vmem:[%s1 + $0x8] sm:$0xf]
      %v242 = vld [vmem:[%s1 + $0xc] sm:$0xf]
      %v243 = vld [vmem:[%s1 + $0x10] sm:$0xf]
      %v244 = vld [vmem:[%s1 + $0x14] sm:$0xf]
      %v245 = vld [vmem:[%s2] sm:$0x1]
      %v247 = vlaneseq
      %v248 = vshrl.u32 %v247, 7
      %v249 = vsub.s32 0, %v248
      %v250 = vrot.slane %v245, %v249
      %v316 = vunpack.c.l.b16 %v175
      %v317 = vunpack.c.l.b16 %v176
      %v318 = vunpack.c.l.b16 %v177
      %v319 = vunpack.c.l.b16 %v178
      %v320 = vunpack.c.l.b16 %v179
      %v321 = vunpack.c.l.b16 %v180
      %v322 = vunpack.c.l.b16 %v181
      %v323 = vunpack.c.l.b16 %v182
      %v324 = vunpack.c.l.b16 %v183
      %v325 = vunpack.c.l.b16 %v184
      %v326 = vunpack.c.l.b16 %v185
      %v327 = vunpack.c.l.b16 %v186
      %v328 = vunpack.c.l.b16 %v187
      %v329 = vunpack.c.l.b16 %v188
      %v330 = vunpack.c.l.b16 %v189
      %v331 = vunpack.c.l.b16 %v190
      %v332 = vunpack.c.l.b16 %v191
      %v333 = vunpack.c.l.b16 %v192
      %v334 = vunpack.c.l.b16 %v193
      %v335 = vunpack.c.l.b16 %v194
      %v336 = vunpack.c.l.b16 %v195
      %v337 = vunpack.c.l.b16 %v196
      %v338 = vunpack.c.l.b16 %v197
      %v339 = vunpack.c.l.b16 %v198
      %v340 = vunpack.c.l.b16 %v199
      %v341 = vunpack.c.l.b16 %v200
      %v342 = vunpack.c.l.b16 %v201
      %v343 = vunpack.c.l.b16 %v202
      %v344 = vunpack.c.l.b16 %v203
      %v345 = vunpack.c.l.b16 %v204
      %v346 = vunpack.c.l.b16 %v205
      %v347 = vunpack.c.l.b16 %v206
      %v348 = vunpack.c.l.b16 %v207
      %v349 = vunpack.c.l.b16 %v208
      %v350 = vunpack.c.l.b16 %v209
      %v351 = vunpack.c.l.b16 %v210
      %v352 = vunpack.c.l.b16 %v211
      %v353 = vunpack.c.l.b16 %v212
      %v354 = vunpack.c.l.b16 %v213
      %v355 = vunpack.c.l.b16 %v214
      %v356 = vunpack.c.l.b16 %v215
      %v357 = vunpack.c.l.b16 %v216
      %v358 = vunpack.c.l.b16 %v217
      %v359 = vunpack.c.l.b16 %v218
      %v360 = vunpack.c.l.b16 %v219
      %v361 = vunpack.c.l.b16 %v220
      %v362 = vunpack.c.l.b16 %v221
      %v363 = vunpack.c.l.b16 %v222
      %v364 = vunpack.c.l.b16 %v223
      %v365 = vunpack.c.l.b16 %v224
      %v366 = vunpack.c.l.b16 %v225
      %v367 = vunpack.c.l.b16 %v226
      %v368 = vunpack.c.l.b16 %v227
      %v369 = vunpack.c.l.b16 %v228
      %v370 = vunpack.c.l.b16 %v229
      %v371 = vunpack.c.l.b16 %v230
      %v372 = vunpack.c.l.b16 %v231
      %v373 = vunpack.c.l.b16 %v232
      %v374 = vunpack.c.l.b16 %v233
      %v375 = vunpack.c.l.b16 %v234
      %v376 = vunpack.c.l.b16 %v235
      %v377 = vunpack.c.l.b16 %v236
      %v378 = vunpack.c.l.b16 %v237
      %v379 = vunpack.c.l.b16 %v238
      %v380 = vpack.c.b16 %v317, %v316
      %v381 = vpack.c.b16 %v319, %v318
      %v382 = vpack.c.b16 %v321, %v320
      %v383 = vpack.c.b16 %v323, %v322
      %v384 = vpack.c.b16 %v325, %v324
      %v385 = vpack.c.b16 %v327, %v326
      %v386 = vpack.c.b16 %v329, %v328
      %v387 = vpack.c.b16 %v331, %v330
      %v388 = vpack.c.b16 %v333, %v332
      %v389 = vpack.c.b16 %v335, %v334
      %v390 = vpack.c.b16 %v337, %v336
      %v391 = vpack.c.b16 %v339, %v338
      %v392 = vpack.c.b16 %v341, %v340
      %v393 = vpack.c.b16 %v343, %v342
      %v394 = vpack.c.b16 %v345, %v344
      %v395 = vpack.c.b16 %v347, %v346
      %v396 = vpack.c.b16 %v349, %v348
      %v397 = vpack.c.b16 %v351, %v350
      %v398 = vpack.c.b16 %v353, %v352
      %v399 = vpack.c.b16 %v355, %v354
      %v400 = vpack.c.b16 %v357, %v356
      %v401 = vpack.c.b16 %v359, %v358
      %v402 = vpack.c.b16 %v361, %v360
      %v403 = vpack.c.b16 %v363, %v362
      %v404 = vpack.c.b16 %v365, %v364
      %v405 = vpack.c.b16 %v367, %v366
      %v406 = vpack.c.b16 %v369, %v368
      %v407 = vpack.c.b16 %v371, %v370
      %v408 = vpack.c.b16 %v373, %v372
      %v409 = vpack.c.b16 %v375, %v374
      %v410 = vpack.c.b16 %v377, %v376
      %v411 = vpack.c.b16 %v379, %v378
      %v418 = vunpack.c.l.b16 %v239
      %v419 = vunpack.c.l.b16 %v240
      %v420 = vunpack.c.l.b16 %v241
      %v421 = vunpack.c.l.b16 %v242
      %v422 = vunpack.c.l.b16 %v243
      %v423 = vunpack.c.l.b16 %v244
      %v424 = vpack.c.b16 %v419, %v418
      %v425 = vpack.c.b16 %v421, %v420
      %v426 = vpack.c.b16 %v423, %v422
      %vm430 = vcmask 392192
      %v432 = vsel %vm430, %v380, 0
      %v435 = vsel %vm430, %v381, 0
      %v438 = vsel %vm430, %v382, 0
      %v441 = vsel %vm430, %v383, 0
      %v444 = vsel %vm430, %v384, 0
      %v447 = vsel %vm430, %v385, 0
      %v450 = vsel %vm430, %v386, 0
      %v453 = vsel %vm430, %v387, 0
      %v456 = vsel %vm430, %v388, 0
      %v459 = vsel %vm430, %v389, 0
      %v462 = vsel %vm430, %v390, 0
      %v465 = vsel %vm430, %v391, 0
      %v468 = vsel %vm430, %v392, 0
      %v471 = vsel %vm430, %v393, 0
      %v474 = vsel %vm430, %v394, 0
      %v477 = vsel %vm430, %v395, 0
      %v480 = vsel %vm430, %v396, 0
      %v483 = vsel %vm430, %v397, 0
      %v486 = vsel %vm430, %v398, 0
      %v489 = vsel %vm430, %v399, 0
      %v492 = vsel %vm430, %v400, 0
      %v495 = vsel %vm430, %v401, 0
      %v498 = vsel %vm430, %v402, 0
      %v501 = vsel %vm430, %v403, 0
      %v504 = vsel %vm430, %v404, 0
      %v507 = vsel %vm430, %v405, 0
      %v510 = vsel %vm430, %v406, 0
      %v513 = vsel %vm430, %v407, 0
      %v516 = vsel %vm430, %v408, 0
      %v519 = vsel %vm430, %v409, 0
      %v522 = vsel %vm430, %v410, 0
      %v525 = vsel %vm430, %v411, 0
      %527 = vmatprep.subr.bf16.mxu0 0
      %528 = vmatpush1.bf16.msra.mxu0 %v424
      %529 = vmatprep.subr.bf16.mxu0 0
      %530 = vmatpush1.bf16.msra.mxu0 %v425
      %531 = vmatprep.subr.bf16.mxu0 0
      %532 = vmatpush1.bf16.msra.mxu0 %v426
      %533 = vmatprep.subr.bf16.mxu0 0
      %534 = vmatpush1.bf16.msra.mxu0 0
      %535 = vmatprep.subr.bf16.mxu0 0
      %536 = vmatpush1.bf16.msra.mxu0 0
      %537 = vmatprep.subr.bf16.mxu0 0
      %538 = vmatpush1.bf16.msra.mxu0 0
      %539 = vmatprep.subr.bf16.mxu0 0
      %540 = vmatpush1.bf16.msra.mxu0 0
      %541 = vmatprep.subr.bf16.mxu0 0
      %542 = vmatpush1.bf16.msra.mxu0 0
      %543 = vmatprep.subr.bf16.mxu0 0
      %544 = vmatpush1.bf16.msra.mxu0 0
      %545 = vmatprep.subr.bf16.mxu0 0
      %546 = vmatpush1.bf16.msra.mxu0 0
      %547 = vmatprep.subr.bf16.mxu0 0
      %548 = vmatpush1.bf16.msra.mxu0 0
      %549 = vmatprep.subr.bf16.mxu0 0
      %550 = vmatpush1.bf16.msra.mxu0 0
      %551 = vmatprep.subr.bf16.mxu0 0
      %552 = vmatpush1.bf16.msra.mxu0 0
      %553 = vmatprep.subr.bf16.mxu0 0
      %554 = vmatpush1.bf16.msra.mxu0 0
      %555 = vmatprep.subr.bf16.mxu0 0
      %556 = vmatpush1.bf16.msra.mxu0 0
      %557 = vmatprep.subr.bf16.mxu0 0
      %558 = vmatpush1.bf16.msra.mxu0 0
      %559 = vmatprep.mubr.bf16.mxu0 0
      %560 = vmatmul.mubr.bf16.gmra.mrb[0].mxu0 %v432
      %v561 = vpop.f32.mrb[0].mxu0
      %v562 = vadd.f32 %v250, %v561
      %v563 = vpop.f32.mrb[0].mxu0
      %v564 = vpop.f32.mrb[0].mxu0
      %v565 = vadd.f32 %v250, %v564
      %v566 = vpop.f32.mrb[0].mxu0
      %567 = vmatprep.mubr.bf16.mxu0 0
      %568 = vmatmul.mubr.bf16.gmra.mrb[0].mxu0 %v435
      %v569 = vpop.f32.mrb[0].mxu0
      %v570 = vadd.f32 %v250, %v569
      %v571 = vpop.f32.mrb[0].mxu0
      %v572 = vpop.f32.mrb[0].mxu0
      %v573 = vadd.f32 %v250, %v572
      %v574 = vpop.f32.mrb[0].mxu0
      %575 = vmatprep.mubr.bf16.mxu0 0
      %576 = vmatmul.mubr.bf16.gmra.mrb[0].mxu0 %v438
      %v577 = vpop.f32.mrb[0].mxu0
      %v578 = vadd.f32 %v250, %v577
      %v579 = vpop.f32.mrb[0].mxu0
      %v580 = vpop.f32.mrb[0].mxu0
      %v581 = vadd.f32 %v250, %v580
      %v582 = vpop.f32.mrb[0].mxu0
      %583 = vmatprep.mubr.bf16.mxu0 0
      %584 = vmatmul.mubr.bf16.gmra.mrb[0].mxu0 %v441
      %v585 = vpop.f32.mrb[0].mxu0
      %v586 = vadd.f32 %v250, %v585
      %v587 = vpop.f32.mrb[0].mxu0
      %v588 = vpop.f32.mrb[0].mxu0
      %v589 = vadd.f32 %v250, %v588
      %v590 = vpop.f32.mrb[0].mxu0
      %591 = vmatprep.mubr.bf16.mxu0 0
      %592 = vmatmul.mubr.bf16.gmra.mrb[0].mxu0 %v444
      %v593 = vpop.f32.mrb[0].mxu0
      %v594 = vadd.f32 %v250, %v593
      %v595 = vpop.f32.mrb[0].mxu0
      %v596 = vpop.f32.mrb[0].mxu0
      %v597 = vadd.f32 %v250, %v596
      %v598 = vpop.f32.mrb[0].mxu0
      %599 = vmatprep.mubr.bf16.mxu0 0
      %600 = vmatmul.mubr.bf16.gmra.mrb[0].mxu0 %v447
      %v601 = vpop.f32.mrb[0].mxu0
      %v602 = vadd.f32 %v250, %v601
      %v603 = vpop.f32.mrb[0].mxu0
      %v604 = vpop.f32.mrb[0].mxu0
      %v605 = vadd.f32 %v250, %v604
      %v606 = vpop.f32.mrb[0].mxu0
      %607 = vmatprep.mubr.bf16.mxu0 0
      %608 = vmatmul.mubr.bf16.gmra.mrb[0].mxu0 %v450
      %v609 = vpop.f32.mrb[0].mxu0
      %v610 = vadd.f32 %v250, %v609
      %v611 = vpop.f32.mrb[0].mxu0
      %v612 = vpop.f32.mrb[0].mxu0
      %v613 = vadd.f32 %v250, %v612
      %v614 = vpop.f32.mrb[0].mxu0
      %615 = vmatprep.mubr.bf16.mxu0 0
      %616 = vmatmul.mubr.bf16.gmra.mrb[0].mxu0 %v453
      %v617 = vpop.f32.mrb[0].mxu0
      %v618 = vadd.f32 %v250, %v617
      %v619 = vpop.f32.mrb[0].mxu0
      %v620 = vpop.f32.mrb[0].mxu0
      %v621 = vadd.f32 %v250, %v620
      %v622 = vpop.f32.mrb[0].mxu0
      %623 = vmatprep.mubr.bf16.mxu0 0
      %624 = vmatmul.mubr.bf16.gmra.mrb[0].mxu0 %v456
      %v625 = vpop.f32.mrb[0].mxu0
      %v626 = vadd.f32 %v250, %v625
      %v627 = vpop.f32.mrb[0].mxu0
      %v628 = vpop.f32.mrb[0].mxu0
      %v629 = vadd.f32 %v250, %v628
      %v630 = vpop.f32.mrb[0].mxu0
      %631 = vmatprep.mubr.bf16.mxu0 0
      %632 = vmatmul.mubr.bf16.gmra.mrb[0].mxu0 %v459
      %v633 = vpop.f32.mrb[0].mxu0
      %v634 = vadd.f32 %v250, %v633
      %v635 = vpop.f32.mrb[0].mxu0
      %v636 = vpop.f32.mrb[0].mxu0
      %v637 = vadd.f32 %v250, %v636
      %v638 = vpop.f32.mrb[0].mxu0
      %639 = vmatprep.mubr.bf16.mxu0 0
      %640 = vmatmul.mubr.bf16.gmra.mrb[0].mxu0 %v462
      %v641 = vpop.f32.mrb[0].mxu0
      %v642 = vadd.f32 %v250, %v641
      %v643 = vpop.f32.mrb[0].mxu0
      %v644 = vpop.f32.mrb[0].mxu0
      %v645 = vadd.f32 %v250, %v644
      %v646 = vpop.f32.mrb[0].mxu0
      %647 = vmatprep.mubr.bf16.mxu0 0
      %648 = vmatmul.mubr.bf16.gmra.mrb[0].mxu0 %v465
      %v649 = vpop.f32.mrb[0].mxu0
      %v650 = vadd.f32 %v250, %v649
      %v651 = vpop.f32.mrb[0].mxu0
      %v652 = vpop.f32.mrb[0].mxu0
      %v653 = vadd.f32 %v250, %v652
      %v654 = vpop.f32.mrb[0].mxu0
      %655 = vmatprep.mubr.bf16.mxu0 0
      %656 = vmatmul.mubr.bf16.gmra.mrb[0].mxu0 %v468
      %v657 = vpop.f32.mrb[0].mxu0
      %v658 = vadd.f32 %v250, %v657
      %v659 = vpop.f32.mrb[0].mxu0
      %v660 = vpop.f32.mrb[0].mxu0
      %v661 = vadd.f32 %v250, %v660
      %v662 = vpop.f32.mrb[0].mxu0
      %663 = vmatprep.mubr.bf16.mxu0 0
      %664 = vmatmul.mubr.bf16.gmra.mrb[0].mxu0 %v471
      %v665 = vpop.f32.mrb[0].mxu0
      %v666 = vadd.f32 %v250, %v665
      %v667 = vpop.f32.mrb[0].mxu0
      %v668 = vpop.f32.mrb[0].mxu0
      %v669 = vadd.f32 %v250, %v668
      %v670 = vpop.f32.mrb[0].mxu0
      %671 = vmatprep.mubr.bf16.mxu0 0
      %672 = vmatmul.mubr.bf16.gmra.mrb[0].mxu0 %v474
      %v673 = vpop.f32.mrb[0].mxu0
      %v674 = vadd.f32 %v250, %v673
      %v675 = vpop.f32.mrb[0].mxu0
      %v676 = vpop.f32.mrb[0].mxu0
      %v677 = vadd.f32 %v250, %v676
      %v678 = vpop.f32.mrb[0].mxu0
      %679 = vmatprep.mubr.bf16.mxu0 0
      %680 = vmatmul.mubr.bf16.gmra.mrb[0].mxu0 %v477
      %v681 = vpop.f32.mrb[0].mxu0
      %v682 = vadd.f32 %v250, %v681
      %v683 = vpop.f32.mrb[0].mxu0
      %v684 = vpop.f32.mrb[0].mxu0
      %v685 = vadd.f32 %v250, %v684
      %v686 = vpop.f32.mrb[0].mxu0
      %687 = vmatprep.mubr.bf16.mxu0 0
      %688 = vmatmul.mubr.bf16.gmra.mrb[0].mxu0 %v480
      %v689 = vpop.f32.mrb[0].mxu0
      %v690 = vadd.f32 %v250, %v689
      %v691 = vpop.f32.mrb[0].mxu0
      %v692 = vpop.f32.mrb[0].mxu0
      %v693 = vadd.f32 %v250, %v692
      %v694 = vpop.f32.mrb[0].mxu0
      %695 = vmatprep.mubr.bf16.mxu0 0
      %696 = vmatmul.mubr.bf16.gmra.mrb[0].mxu0 %v483
      %v697 = vpop.f32.mrb[0].mxu0
      %v698 = vadd.f32 %v250, %v697
      %v699 = vpop.f32.mrb[0].mxu0
      %v700 = vpop.f32.mrb[0].mxu0
      %v701 = vadd.f32 %v250, %v700
      %v702 = vpop.f32.mrb[0].mxu0
      %703 = vmatprep.mubr.bf16.mxu0 0
      %704 = vmatmul.mubr.bf16.gmra.mrb[0].mxu0 %v486
      %v705 = vpop.f32.mrb[0].mxu0
      %v706 = vadd.f32 %v250, %v705
      %v707 = vpop.f32.mrb[0].mxu0
      %v708 = vpop.f32.mrb[0].mxu0
      %v709 = vadd.f32 %v250, %v708
      %v710 = vpop.f32.mrb[0].mxu0
      %711 = vmatprep.mubr.bf16.mxu0 0
      %712 = vmatmul.mubr.bf16.gmra.mrb[0].mxu0 %v489
      %v713 = vpop.f32.mrb[0].mxu0
      %v714 = vadd.f32 %v250, %v713
      %v715 = vpop.f32.mrb[0].mxu0
      %v716 = vpop.f32.mrb[0].mxu0
      %v717 = vadd.f32 %v250, %v716
      %v718 = vpop.f32.mrb[0].mxu0
      %719 = vmatprep.mubr.bf16.mxu0 0
      %720 = vmatmul.mubr.bf16.gmra.mrb[0].mxu0 %v492
      %v721 = vpop.f32.mrb[0].mxu0
      %v722 = vadd.f32 %v250, %v721
      %v723 = vpop.f32.mrb[0].mxu0
      %v724 = vpop.f32.mrb[0].mxu0
      %v725 = vadd.f32 %v250, %v724
      %v726 = vpop.f32.mrb[0].mxu0
      %727 = vmatprep.mubr.bf16.mxu0 0
      %728 = vmatmul.mubr.bf16.gmra.mrb[0].mxu0 %v495
      %v729 = vpop.f32.mrb[0].mxu0
      %v730 = vadd.f32 %v250, %v729
      %v731 = vpop.f32.mrb[0].mxu0
      %v732 = vpop.f32.mrb[0].mxu0
      %v733 = vadd.f32 %v250, %v732
      %v734 = vpop.f32.mrb[0].mxu0
      %735 = vmatprep.mubr.bf16.mxu0 0
      %736 = vmatmul.mubr.bf16.gmra.mrb[0].mxu0 %v498
      %v737 = vpop.f32.mrb[0].mxu0
      %v738 = vadd.f32 %v250, %v737
      %v739 = vpop.f32.mrb[0].mxu0
      %v740 = vpop.f32.mrb[0].mxu0
      %v741 = vadd.f32 %v250, %v740
      %v742 = vpop.f32.mrb[0].mxu0
      %743 = vmatprep.mubr.bf16.mxu0 0
      %744 = vmatmul.mubr.bf16.gmra.mrb[0].mxu0 %v501
      %v745 = vpop.f32.mrb[0].mxu0
      %v746 = vadd.f32 %v250, %v745
      %v747 = vpop.f32.mrb[0].mxu0
      %v748 = vpop.f32.mrb[0].mxu0
      %v749 = vadd.f32 %v250, %v748
      %v750 = vpop.f32.mrb[0].mxu0
      %751 = vmatprep.mubr.bf16.mxu0 0
      %752 = vmatmul.mubr.bf16.gmra.mrb[0].mxu0 %v504
      %v753 = vpop.f32.mrb[0].mxu0
      %v754 = vadd.f32 %v250, %v753
      %v755 = vpop.f32.mrb[0].mxu0
      %v756 = vpop.f32.mrb[0].mxu0
      %v757 = vadd.f32 %v250, %v756
      %v758 = vpop.f32.mrb[0].mxu0
      %759 = vmatprep.mubr.bf16.mxu0 0
      %760 = vmatmul.mubr.bf16.gmra.mrb[0].mxu0 %v507
      %v761 = vpop.f32.mrb[0].mxu0
      %v762 = vadd.f32 %v250, %v761
      %v763 = vpop.f32.mrb[0].mxu0
      %v764 = vpop.f32.mrb[0].mxu0
      %v765 = vadd.f32 %v250, %v764
      %v766 = vpop.f32.mrb[0].mxu0
      %767 = vmatprep.mubr.bf16.mxu0 0
      %768 = vmatmul.mubr.bf16.gmra.mrb[0].mxu0 %v510
      %v769 = vpop.f32.mrb[0].mxu0
      %v770 = vadd.f32 %v250, %v769
      %v771 = vpop.f32.mrb[0].mxu0
      %v772 = vpop.f32.mrb[0].mxu0
      %v773 = vadd.f32 %v250, %v772
      %v774 = vpop.f32.mrb[0].mxu0
      %775 = vmatprep.mubr.bf16.mxu0 0
      %776 = vmatmul.mubr.bf16.gmra.mrb[0].mxu0 %v513
      %v777 = vpop.f32.mrb[0].mxu0
      %v778 = vadd.f32 %v250, %v777
      %v779 = vpop.f32.mrb[0].mxu0
      %v780 = vpop.f32.mrb[0].mxu0
      %v781 = vadd.f32 %v250, %v780
      %v782 = vpop.f32.mrb[0].mxu0
      %783 = vmatprep.mubr.bf16.mxu0 0
      %784 = vmatmul.mubr.bf16.gmra.mrb[0].mxu0 %v516
      %v785 = vpop.f32.mrb[0].mxu0
      %v786 = vadd.f32 %v250, %v785
      %v787 = vpop.f32.mrb[0].mxu0
      %v788 = vpop.f32.mrb[0].mxu0
      %v789 = vadd.f32 %v250, %v788
      %v790 = vpop.f32.mrb[0].mxu0
      %791 = vmatprep.mubr.bf16.mxu0 0
      %792 = vmatmul.mubr.bf16.gmra.mrb[0].mxu0 %v519
      %v793 = vpop.f32.mrb[0].mxu0
      %v794 = vadd.f32 %v250, %v793
      %v795 = vpop.f32.mrb[0].mxu0
      %v796 = vpop.f32.mrb[0].mxu0
      %v797 = vadd.f32 %v250, %v796
      %v798 = vpop.f32.mrb[0].mxu0
      %799 = vmatprep.mubr.bf16.mxu0 0
      %800 = vmatmul.mubr.bf16.gmra.mrb[0].mxu0 %v522
      %v801 = vpop.f32.mrb[0].mxu0
      %v802 = vadd.f32 %v250, %v801
      %v803 = vpop.f32.mrb[0].mxu0
      %v804 = vpop.f32.mrb[0].mxu0
      %v805 = vadd.f32 %v250, %v804
      %v806 = vpop.f32.mrb[0].mxu0
      %807 = vmatprep.mubr.bf16.mxu0 0
      %808 = vmatmul.mubr.bf16.gmra.mrb[0].mxu0 %v525
      %v809 = vpop.f32.mrb[0].mxu0
      %v810 = vadd.f32 %v250, %v809
      %v811 = vpop.f32.mrb[0].mxu0
      %v812 = vpop.f32.mrb[0].mxu0
      %v813 = vadd.f32 %v250, %v812
      %v814 = vpop.f32.mrb[0].mxu0
      %815 = vdwg.mxu0
      %vm816 = vcmp.gt.f32.partialorder %v562, 0.0
      %vm817 = vcmp.gt.f32.partialorder %v565, 0.0
      %vm818 = vcmp.gt.f32.partialorder %v570, 0.0
      %vm819 = vcmp.gt.f32.partialorder %v573, 0.0
      %vm820 = vcmp.gt.f32.partialorder %v578, 0.0
      %vm821 = vcmp.gt.f32.partialorder %v581, 0.0
      %vm822 = vcmp.gt.f32.partialorder %v586, 0.0
      %vm823 = vcmp.gt.f32.partialorder %v589, 0.0
      %vm824 = vcmp.gt.f32.partialorder %v594, 0.0
      %vm825 = vcmp.gt.f32.partialorder %v597, 0.0
      %vm826 = vcmp.gt.f32.partialorder %v602, 0.0
      %vm827 = vcmp.gt.f32.partialorder %v605, 0.0
      %vm828 = vcmp.gt.f32.partialorder %v610, 0.0
      %vm829 = vcmp.gt.f32.partialorder %v613, 0.0
      %vm830 = vcmp.gt.f32.partialorder %v618, 0.0
      %vm831 = vcmp.gt.f32.partialorder %v621, 0.0
      %vm832 = vcmp.gt.f32.partialorder %v626, 0.0
      %vm833 = vcmp.gt.f32.partialorder %v629, 0.0
      %vm834 = vcmp.gt.f32.partialorder %v634, 0.0
      %vm835 = vcmp.gt.f32.partialorder %v637, 0.0
      %vm836 = vcmp.gt.f32.partialorder %v642, 0.0
      %vm837 = vcmp.gt.f32.partialorder %v645, 0.0
      %vm838 = vcmp.gt.f32.partialorder %v650, 0.0
      %vm839 = vcmp.gt.f32.partialorder %v653, 0.0
      %vm840 = vcmp.gt.f32.partialorder %v658, 0.0
      %vm841 = vcmp.gt.f32.partialorder %v661, 0.0
      %vm842 = vcmp.gt.f32.partialorder %v666, 0.0
      %vm843 = vcmp.gt.f32.partialorder %v669, 0.0
      %vm844 = vcmp.gt.f32.partialorder %v674, 0.0
      %vm845 = vcmp.gt.f32.partialorder %v677, 0.0
      %vm846 = vcmp.gt.f32.partialorder %v682, 0.0
      %vm847 = vcmp.gt.f32.partialorder %v685, 0.0
      %vm848 = vcmp.gt.f32.partialorder %v690, 0.0
      %vm849 = vcmp.gt.f32.partialorder %v693, 0.0
      %vm850 = vcmp.gt.f32.partialorder %v698, 0.0
      %vm851 = vcmp.gt.f32.partialorder %v701, 0.0
      %vm852 = vcmp.gt.f32.partialorder %v706, 0.0
      %vm853 = vcmp.gt.f32.partialorder %v709, 0.0
      %vm854 = vcmp.gt.f32.partialorder %v714, 0.0
      %vm855 = vcmp.gt.f32.partialorder %v717, 0.0
      %vm856 = vcmp.gt.f32.partialorder %v722, 0.0
      %vm857 = vcmp.gt.f32.partialorder %v725, 0.0
      %vm858 = vcmp.gt.f32.partialorder %v730, 0.0
      %vm859 = vcmp.gt.f32.partialorder %v733, 0.0
      %vm860 = vcmp.gt.f32.partialorder %v738, 0.0
      %vm861 = vcmp.gt.f32.partialorder %v741, 0.0
      %vm862 = vcmp.gt.f32.partialorder %v746, 0.0
      %vm863 = vcmp.gt.f32.partialorder %v749, 0.0
      %vm864 = vcmp.gt.f32.partialorder %v754, 0.0
      %vm865 = vcmp.gt.f32.partialorder %v757, 0.0
      %vm866 = vcmp.gt.f32.partialorder %v762, 0.0
      %vm867 = vcmp.gt.f32.partialorder %v765, 0.0
      %vm868 = vcmp.gt.f32.partialorder %v770, 0.0
      %vm869 = vcmp.gt.f32.partialorder %v773, 0.0
      %vm870 = vcmp.gt.f32.partialorder %v778, 0.0
      %vm871 = vcmp.gt.f32.partialorder %v781, 0.0
      %vm872 = vcmp.gt.f32.partialorder %v786, 0.0
      %vm873 = vcmp.gt.f32.partialorder %v789, 0.0
      %vm874 = vcmp.gt.f32.partialorder %v794, 0.0
      %vm875 = vcmp.gt.f32.partialorder %v797, 0.0
      %vm876 = vcmp.gt.f32.partialorder %v802, 0.0
      %vm877 = vcmp.gt.f32.partialorder %v805, 0.0
      %vm878 = vcmp.gt.f32.partialorder %v810, 0.0
      %vm879 = vcmp.gt.f32.partialorder %v813, 0.0
      %v880 = vmul.f32 %v562, 0.2
      %v881 = vmul.f32 %v565, 0.2
      %v882 = vmul.f32 %v570, 0.2
      %v883 = vmul.f32 %v573, 0.2
      %v884 = vmul.f32 %v578, 0.2
      %v885 = vmul.f32 %v581, 0.2
      %v886 = vmul.f32 %v586, 0.2
      %v887 = vmul.f32 %v589, 0.2
      %v888 = vmul.f32 %v594, 0.2
      %v889 = vmul.f32 %v597, 0.2
      %v890 = vmul.f32 %v602, 0.2
      %v891 = vmul.f32 %v605, 0.2
      %v892 = vmul.f32 %v610, 0.2
      %v893 = vmul.f32 %v613, 0.2
      %v894 = vmul.f32 %v618, 0.2
      %v895 = vmul.f32 %v621, 0.2
      %v896 = vmul.f32 %v626, 0.2
      %v897 = vmul.f32 %v629, 0.2
      %v898 = vmul.f32 %v634, 0.2
      %v899 = vmul.f32 %v637, 0.2
      %v900 = vmul.f32 %v642, 0.2
      %v901 = vmul.f32 %v645, 0.2
      %v902 = vmul.f32 %v650, 0.2
      %v903 = vmul.f32 %v653, 0.2
      %v904 = vmul.f32 %v658, 0.2
      %v905 = vmul.f32 %v661, 0.2
      %v906 = vmul.f32 %v666, 0.2
      %v907 = vmul.f32 %v669, 0.2
      %v908 = vmul.f32 %v674, 0.2
      %v909 = vmul.f32 %v677, 0.2
      %v910 = vmul.f32 %v682, 0.2
      %v911 = vmul.f32 %v685, 0.2
      %v912 = vmul.f32 %v690, 0.2
      %v913 = vmul.f32 %v693, 0.2
      %v914 = vmul.f32 %v698, 0.2
      %v915 = vmul.f32 %v701, 0.2
      %v916 = vmul.f32 %v706, 0.2
      %v917 = vmul.f32 %v709, 0.2
      %v918 = vmul.f32 %v714, 0.2
      %v919 = vmul.f32 %v717, 0.2
      %v920 = vmul.f32 %v722, 0.2
      %v921 = vmul.f32 %v725, 0.2
      %v922 = vmul.f32 %v730, 0.2
      %v923 = vmul.f32 %v733, 0.2
      %v924 = vmul.f32 %v738, 0.2
      %v925 = vmul.f32 %v741, 0.2
      %v926 = vmul.f32 %v746, 0.2
      %v927 = vmul.f32 %v749, 0.2
      %v928 = vmul.f32 %v754, 0.2
      %v929 = vmul.f32 %v757, 0.2
      %v930 = vmul.f32 %v762, 0.2
      %v931 = vmul.f32 %v765, 0.2
      %v932 = vmul.f32 %v770, 0.2
      %v933 = vmul.f32 %v773, 0.2
      %v934 = vmul.f32 %v778, 0.2
      %v935 = vmul.f32 %v781, 0.2
      %v936 = vmul.f32 %v786, 0.2
      %v937 = vmul.f32 %v789, 0.2
      %v938 = vmul.f32 %v794, 0.2
      %v939 = vmul.f32 %v797, 0.2
      %v940 = vmul.f32 %v802, 0.2
      %v941 = vmul.f32 %v805, 0.2
      %v942 = vmul.f32 %v810, 0.2
      %v943 = vmul.f32 %v813, 0.2
      %v944 = vsel %vm816, %v562, %v880
      %v945 = vsel %vm817, %v565, %v881
      %v946 = vsel %vm818, %v570, %v882
      %v947 = vsel %vm819, %v573, %v883
      %v948 = vsel %vm820, %v578, %v884
      %v949 = vsel %vm821, %v581, %v885
      %v950 = vsel %vm822, %v586, %v886
      %v951 = vsel %vm823, %v589, %v887
      %v952 = vsel %vm824, %v594, %v888
      %v953 = vsel %vm825, %v597, %v889
      %v954 = vsel %vm826, %v602, %v890
      %v955 = vsel %vm827, %v605, %v891
      %v956 = vsel %vm828, %v610, %v892
      %v957 = vsel %vm829, %v613, %v893
      %v958 = vsel %vm830, %v618, %v894
      %v959 = vsel %vm831, %v621, %v895
      %v960 = vsel %vm832, %v626, %v896
      %v961 = vsel %vm833, %v629, %v897
      %v962 = vsel %vm834, %v634, %v898
      %v963 = vsel %vm835, %v637, %v899
      %v964 = vsel %vm836, %v642, %v900
      %v965 = vsel %vm837, %v645, %v901
      %v966 = vsel %vm838, %v650, %v902
      %v967 = vsel %vm839, %v653, %v903
      %v968 = vsel %vm840, %v658, %v904
      %v969 = vsel %vm841, %v661, %v905
      %v970 = vsel %vm842, %v666, %v906
      %v971 = vsel %vm843, %v669, %v907
      %v972 = vsel %vm844, %v674, %v908
      %v973 = vsel %vm845, %v677, %v909
      %v974 = vsel %vm846, %v682, %v910
      %v975 = vsel %vm847, %v685, %v911
      %v976 = vsel %vm848, %v690, %v912
      %v977 = vsel %vm849, %v693, %v913
      %v978 = vsel %vm850, %v698, %v914
      %v979 = vsel %vm851, %v701, %v915
      %v980 = vsel %vm852, %v706, %v916
      %v981 = vsel %vm853, %v709, %v917
      %v982 = vsel %vm854, %v714, %v918
      %v983 = vsel %vm855, %v717, %v919
      %v984 = vsel %vm856, %v722, %v920
      %v985 = vsel %vm857, %v725, %v921
      %v986 = vsel %vm858, %v730, %v922
      %v987 = vsel %vm859, %v733, %v923
      %v988 = vsel %vm860, %v738, %v924
      %v989 = vsel %vm861, %v741, %v925
      %v990 = vsel %vm862, %v746, %v926
      %v991 = vsel %vm863, %v749, %v927
      %v992 = vsel %vm864, %v754, %v928
      %v993 = vsel %vm865, %v757, %v929
      %v994 = vsel %vm866, %v762, %v930
      %v995 = vsel %vm867, %v765, %v931
      %v996 = vsel %vm868, %v770, %v932
      %v997 = vsel %vm869, %v773, %v933
      %v998 = vsel %vm870, %v778, %v934
      %v999 = vsel %vm871, %v781, %v935
      %v1000 = vsel %vm872, %v786, %v936
      %v1001 = vsel %vm873, %v789, %v937
      %v1002 = vsel %vm874, %v794, %v938
      %v1003 = vsel %vm875, %v797, %v939
      %v1004 = vsel %vm876, %v802, %v940
      %v1005 = vsel %vm877, %v805, %v941
      %v1006 = vsel %vm878, %v810, %v942
      %v1007 = vsel %vm879, %v813, %v943
      %v1008 = vpack.c.bf16 %v945, %v944
      %v1009 = vpack.c.bf16 %v947, %v946
      %v1010 = vpack.c.bf16 %v949, %v948
      %v1011 = vpack.c.bf16 %v951, %v950
      %v1012 = vpack.c.bf16 %v953, %v952
      %v1013 = vpack.c.bf16 %v955, %v954
      %v1014 = vpack.c.bf16 %v957, %v956
      %v1015 = vpack.c.bf16 %v959, %v958
      %v1016 = vpack.c.bf16 %v961, %v960
      %v1017 = vpack.c.bf16 %v963, %v962
      %v1018 = vpack.c.bf16 %v965, %v964
      %v1019 = vpack.c.bf16 %v967, %v966
      %v1020 = vpack.c.bf16 %v969, %v968
      %v1021 = vpack.c.bf16 %v971, %v970
      %v1022 = vpack.c.bf16 %v973, %v972
      %v1023 = vpack.c.bf16 %v975, %v974
      %v1024 = vpack.c.bf16 %v977, %v976
      %v1025 = vpack.c.bf16 %v979, %v978
      %v1026 = vpack.c.bf16 %v981, %v980
      %v1027 = vpack.c.bf16 %v983, %v982
      %v1028 = vpack.c.bf16 %v985, %v984
      %v1029 = vpack.c.bf16 %v987, %v986
      %v1030 = vpack.c.bf16 %v989, %v988
      %v1031 = vpack.c.bf16 %v991, %v990
      %v1032 = vpack.c.bf16 %v993, %v992
      %v1033 = vpack.c.bf16 %v995, %v994
      %v1034 = vpack.c.bf16 %v997, %v996
      %v1035 = vpack.c.bf16 %v999, %v998
      %v1036 = vpack.c.bf16 %v1001, %v1000
      %v1037 = vpack.c.bf16 %v1003, %v1002
      %v1038 = vpack.c.bf16 %v1005, %v1004
      %v1039 = vpack.c.bf16 %v1007, %v1006
      %v1072 = vunpack.c.l.b16 %v1008
      %v1073 = vunpack.c.h.b16 %v1008
      %v1074 = vunpack.c.l.b16 %v1009
      %v1075 = vunpack.c.h.b16 %v1009
      %v1076 = vunpack.c.l.b16 %v1010
      %v1077 = vunpack.c.h.b16 %v1010
      %v1078 = vunpack.c.l.b16 %v1011
      %v1079 = vunpack.c.h.b16 %v1011
      %v1080 = vunpack.c.l.b16 %v1012
      %v1081 = vunpack.c.h.b16 %v1012
      %v1082 = vunpack.c.l.b16 %v1013
      %v1083 = vunpack.c.h.b16 %v1013
      %v1084 = vunpack.c.l.b16 %v1014
      %v1085 = vunpack.c.h.b16 %v1014
      %v1086 = vunpack.c.l.b16 %v1015
      %v1087 = vunpack.c.h.b16 %v1015
      %v1088 = vunpack.c.l.b16 %v1016
      %v1089 = vunpack.c.h.b16 %v1016
      %v1090 = vunpack.c.l.b16 %v1017
      %v1091 = vunpack.c.h.b16 %v1017
      %v1092 = vunpack.c.l.b16 %v1018
      %v1093 = vunpack.c.h.b16 %v1018
      %v1094 = vunpack.c.l.b16 %v1019
      %v1095 = vunpack.c.h.b16 %v1019
      %v1096 = vunpack.c.l.b16 %v1020
      %v1097 = vunpack.c.h.b16 %v1020
      %v1098 = vunpack.c.l.b16 %v1021
      %v1099 = vunpack.c.h.b16 %v1021
      %v1100 = vunpack.c.l.b16 %v1022
      %v1101 = vunpack.c.h.b16 %v1022
      %v1102 = vunpack.c.l.b16 %v1023
      %v1103 = vunpack.c.h.b16 %v1023
      %v1104 = vunpack.c.l.b16 %v1024
      %v1105 = vunpack.c.h.b16 %v1024
      %v1106 = vunpack.c.l.b16 %v1025
      %v1107 = vunpack.c.h.b16 %v1025
      %v1108 = vunpack.c.l.b16 %v1026
      %v1109 = vunpack.c.h.b16 %v1026
      %v1110 = vunpack.c.l.b16 %v1027
      %v1111 = vunpack.c.h.b16 %v1027
      %v1112 = vunpack.c.l.b16 %v1028
      %v1113 = vunpack.c.h.b16 %v1028
      %v1114 = vunpack.c.l.b16 %v1029
      %v1115 = vunpack.c.h.b16 %v1029
      %v1116 = vunpack.c.l.b16 %v1030
      %v1117 = vunpack.c.h.b16 %v1030
      %v1118 = vunpack.c.l.b16 %v1031
      %v1119 = vunpack.c.h.b16 %v1031
      %v1120 = vunpack.c.l.b16 %v1032
      %v1121 = vunpack.c.h.b16 %v1032
      %v1122 = vunpack.c.l.b16 %v1033
      %v1123 = vunpack.c.h.b16 %v1033
      %v1124 = vunpack.c.l.b16 %v1034
      %v1125 = vunpack.c.h.b16 %v1034
      %v1126 = vunpack.c.l.b16 %v1035
      %v1127 = vunpack.c.h.b16 %v1035
      %v1128 = vunpack.c.l.b16 %v1036
      %v1129 = vunpack.c.h.b16 %v1036
      %v1130 = vunpack.c.l.b16 %v1037
      %v1131 = vunpack.c.h.b16 %v1037
      %v1132 = vunpack.c.l.b16 %v1038
      %v1133 = vunpack.c.h.b16 %v1038
      %v1134 = vunpack.c.l.b16 %v1039
      %v1135 = vunpack.c.h.b16 %v1039
      %v1136 = vpack.c.b16 %v1072, %v1072
      %v1137 = vpack.c.b16 %v1073, %v1073
      %v1138 = vpack.c.b16 %v1074, %v1074
      %v1139 = vpack.c.b16 %v1075, %v1075
      %v1140 = vpack.c.b16 %v1076, %v1076
      %v1141 = vpack.c.b16 %v1077, %v1077
      %v1142 = vpack.c.b16 %v1078, %v1078
      %v1143 = vpack.c.b16 %v1079, %v1079
      %v1144 = vpack.c.b16 %v1080, %v1080
      %v1145 = vpack.c.b16 %v1081, %v1081
      %v1146 = vpack.c.b16 %v1082, %v1082
      %v1147 = vpack.c.b16 %v1083, %v1083
      %v1148 = vpack.c.b16 %v1084, %v1084
      %v1149 = vpack.c.b16 %v1085, %v1085
      %v1150 = vpack.c.b16 %v1086, %v1086
      %v1151 = vpack.c.b16 %v1087, %v1087
      %v1152 = vpack.c.b16 %v1088, %v1088
      %v1153 = vpack.c.b16 %v1089, %v1089
      %v1154 = vpack.c.b16 %v1090, %v1090
      %v1155 = vpack.c.b16 %v1091, %v1091
      %v1156 = vpack.c.b16 %v1092, %v1092
      %v1157 = vpack.c.b16 %v1093, %v1093
      %v1158 = vpack.c.b16 %v1094, %v1094
      %v1159 = vpack.c.b16 %v1095, %v1095
      %v1160 = vpack.c.b16 %v1096, %v1096
      %v1161 = vpack.c.b16 %v1097, %v1097
      %v1162 = vpack.c.b16 %v1098, %v1098
      %v1163 = vpack.c.b16 %v1099, %v1099
      %v1164 = vpack.c.b16 %v1100, %v1100
      %v1165 = vpack.c.b16 %v1101, %v1101
      %v1166 = vpack.c.b16 %v1102, %v1102
      %v1167 = vpack.c.b16 %v1103, %v1103
      %v1168 = vpack.c.b16 %v1104, %v1104
      %v1169 = vpack.c.b16 %v1105, %v1105
      %v1170 = vpack.c.b16 %v1106, %v1106
      %v1171 = vpack.c.b16 %v1107, %v1107
      %v1172 = vpack.c.b16 %v1108, %v1108
      %v1173 = vpack.c.b16 %v1109, %v1109
      %v1174 = vpack.c.b16 %v1110, %v1110
      %v1175 = vpack.c.b16 %v1111, %v1111
      %v1176 = vpack.c.b16 %v1112, %v1112
      %v1177 = vpack.c.b16 %v1113, %v1113
      %v1178 = vpack.c.b16 %v1114, %v1114
      %v1179 = vpack.c.b16 %v1115, %v1115
      %v1180 = vpack.c.b16 %v1116, %v1116
      %v1181 = vpack.c.b16 %v1117, %v1117
      %v1182 = vpack.c.b16 %v1118, %v1118
      %v1183 = vpack.c.b16 %v1119, %v1119
      %v1184 = vpack.c.b16 %v1120, %v1120
      %v1185 = vpack.c.b16 %v1121, %v1121
      %v1186 = vpack.c.b16 %v1122, %v1122
      %v1187 = vpack.c.b16 %v1123, %v1123
      %v1188 = vpack.c.b16 %v1124, %v1124
      %v1189 = vpack.c.b16 %v1125, %v1125
      %v1190 = vpack.c.b16 %v1126, %v1126
      %v1191 = vpack.c.b16 %v1127, %v1127
      %v1192 = vpack.c.b16 %v1128, %v1128
      %v1193 = vpack.c.b16 %v1129, %v1129
      %v1194 = vpack.c.b16 %v1130, %v1130
      %v1195 = vpack.c.b16 %v1131, %v1131
      %v1196 = vpack.c.b16 %v1132, %v1132
      %v1197 = vpack.c.b16 %v1133, %v1133
      %v1198 = vpack.c.b16 %v1134, %v1134
      %v1199 = vpack.c.b16 %v1135, %v1135
      %1264 = vst [vmem:[%s172] sm:$0xf] %v1136
      %1265 = vst [vmem:[%s172 + $0x4] sm:$0xf] %v1137
      %1266 = vst [vmem:[%s172 + $0x8] sm:$0xf] %v1138
      %1267 = vst [vmem:[%s172 + $0xc] sm:$0xf] %v1139
      %1268 = vst [vmem:[%s172 + $0x10] sm:$0xf] %v1140
      %1269 = vst [vmem:[%s172 + $0x14] sm:$0xf] %v1141
      %1270 = vst [vmem:[%s172 + $0x18] sm:$0xf] %v1142
      %1271 = vst [vmem:[%s172 + $0x1c] sm:$0xf] %v1143
      %1272 = vst [vmem:[%s172 + $0x20] sm:$0xf] %v1144
      %1273 = vst [vmem:[%s172 + $0x24] sm:$0xf] %v1145
      %1274 = vst [vmem:[%s172 + $0x28] sm:$0xf] %v1146
      %1275 = vst [vmem:[%s172 + $0x2c] sm:$0xf] %v1147
      %1276 = vst [vmem:[%s172 + $0x30] sm:$0xf] %v1148
      %1277 = vst [vmem:[%s172 + $0x34] sm:$0xf] %v1149
      %1278 = vst [vmem:[%s172 + $0x38] sm:$0xf] %v1150
      %1279 = vst [vmem:[%s172 + $0x3c] sm:$0xf] %v1151
      %1280 = vst [vmem:[%s172 + $0x40] sm:$0xf] %v1152
      %1281 = vst [vmem:[%s172 + $0x44] sm:$0xf] %v1153
      %1282 = vst [vmem:[%s172 + $0x48] sm:$0xf] %v1154
      %1283 = vst [vmem:[%s172 + $0x4c] sm:$0xf] %v1155
      %1284 = vst [vmem:[%s172 + $0x50] sm:$0xf] %v1156
      %1285 = vst [vmem:[%s172 + $0x54] sm:$0xf] %v1157
      %1286 = vst [vmem:[%s172 + $0x58] sm:$0xf] %v1158
      %1287 = vst [vmem:[%s172 + $0x5c] sm:$0xf] %v1159
      %1288 = vst [vmem:[%s172 + $0x60] sm:$0xf] %v1160
      %1289 = vst [vmem:[%s172 + $0x64] sm:$0xf] %v1161
      %1290 = vst [vmem:[%s172 + $0x68] sm:$0xf] %v1162
      %1291 = vst [vmem:[%s172 + $0x6c] sm:$0xf] %v1163
      %1292 = vst [vmem:[%s172 + $0x70] sm:$0xf] %v1164
      %1293 = vst [vmem:[%s172 + $0x74] sm:$0xf] %v1165
      %1294 = vst [vmem:[%s172 + $0x78] sm:$0xf] %v1166
      %1295 = vst [vmem:[%s172 + $0x7c] sm:$0xf] %v1167
      %1296 = vst [vmem:[%s172 + $0x80] sm:$0xf] %v1168
      %1297 = vst [vmem:[%s172 + $0x84] sm:$0xf] %v1169
      %1298 = vst [vmem:[%s172 + $0x88] sm:$0xf] %v1170
      %1299 = vst [vmem:[%s172 + $0x8c] sm:$0xf] %v1171
      %1300 = vst [vmem:[%s172 + $0x90] sm:$0xf] %v1172
      %1301 = vst [vmem:[%s172 + $0x94] sm:$0xf] %v1173
      %1302 = vst [vmem:[%s172 + $0x98] sm:$0xf] %v1174
      %1303 = vst [vmem:[%s172 + $0x9c] sm:$0xf] %v1175
      %1304 = vst [vmem:[%s172 + $0xa0] sm:$0xf] %v1176
      %1305 = vst [vmem:[%s172 + $0xa4] sm:$0xf] %v1177
      %1306 = vst [vmem:[%s172 + $0xa8] sm:$0xf] %v1178
      %1307 = vst [vmem:[%s172 + $0xac] sm:$0xf] %v1179
      %1308 = vst [vmem:[%s172 + $0xb0] sm:$0xf] %v1180
      %1309 = vst [vmem:[%s172 + $0xb4] sm:$0xf] %v1181
      %1310 = vst [vmem:[%s172 + $0xb8] sm:$0xf] %v1182
      %1311 = vst [vmem:[%s172 + $0xbc] sm:$0xf] %v1183
      %1312 = vst [vmem:[%s172 + $0xc0] sm:$0xf] %v1184
      %1313 = vst [vmem:[%s172 + $0xc4] sm:$0xf] %v1185
      %1314 = vst [vmem:[%s172 + $0xc8] sm:$0xf] %v1186
      %1315 = vst [vmem:[%s172 + $0xcc] sm:$0xf] %v1187
      %1316 = vst [vmem:[%s172 + $0xd0] sm:$0xf] %v1188
      %1317 = vst [vmem:[%s172 + $0xd4] sm:$0xf] %v1189
      %1318 = vst [vmem:[%s172 + $0xd8] sm:$0xf] %v1190
      %1319 = vst [vmem:[%s172 + $0xdc] sm:$0xf] %v1191
      %1320 = vst [vmem:[%s172 + $0xe0] sm:$0xf] %v1192
      %1321 = vst [vmem:[%s172 + $0xe4] sm:$0xf] %v1193
      %1322 = vst [vmem:[%s172 + $0xe8] sm:$0xf] %v1194
      %1323 = vst [vmem:[%s172 + $0xec] sm:$0xf] %v1195
      %1324 = vst [vmem:[%s172 + $0xf0] sm:$0xf] %v1196
      %1325 = vst [vmem:[%s172 + $0xf4] sm:$0xf] %v1197
      %1326 = vst [vmem:[%s172 + $0xf8] sm:$0xf] %v1198
      %1327 = vst [vmem:[%s172 + $0xfc] sm:$0xf] %v1199
      %s1328 = smul.u32 64, %s14
      %p1329 = scmp.lt.s32.totalorder %s1328, 255
      %s1330 = scalar_select %p1329, %s1328, 255
      %s1331 = smul.addr %s1330, 4
      %s1332 = scalar_lea.vmem %s3, %s1331
      // Predicated region
      $region33: #{discriminator_forward.4} parent=31 // pred_check
        %p1333 = pneg %p100
      $region34: #{discriminator_forward.4} parent=31 // pred_check_branch
        %1335 = sbr.rel (%p1333) target = $region36
      $region35: #{discriminator_forward.4} parent=31 // pred_region
        %s1336 = smul.u32 64, %s14
      $region36: #{discriminator_forward.4} parent=31 // pred_fallthru
        _
    $region32: #{discriminator_forward.4} parent=5 // pred_fallthru
      _
    %p1337 = scmp.le.s32.totalorder 2, %s9
    // Predicated region
    $region37: #{discriminator_forward.4} parent=5 // pred_check
      %p1338 = pneg %p1337
    $region38: #{discriminator_forward.4} parent=5 // pred_check_branch
      %1340 = sbr.rel (%p1338) target = $region40
    $region39: #{discriminator_forward.4} parent=5 // pred_region
      %s1341 = ssub.s32 %s9, 2
      // Predicated region
      $region41: #{discriminator_forward.4} parent=39 // pred_check
        %p1342 = pneg %p106
      $region42: #{discriminator_forward.4} parent=39 // pred_check_branch
        %1344 = sbr.rel (%p1342) target = $region44
      $region43: #{discriminator_forward.4} parent=39 // pred_region
        %s1345 = smul.u32 64, %s15
        %p1346 = scmp.lt.s32.totalorder %s1345, 255
        %s1347 = scalar_select %p1346, %s1345, 255
        %s1348 = smul.addr %s1347, 4
        %s1349 = scalar_lea.vmem %s3, %s1348
      $region44: #{discriminator_forward.4} parent=39 // pred_fallthru
        _
    $region40: #{discriminator_forward.4} parent=5 // pred_fallthru
      _
  $region6: #{discriminator_forward.4} parent=0 // loop_footer
    %s13 = sadd.s32 1, %s9
  $region7: #{discriminator_forward.4} parent=0 // loop_footer_branch
    %8 = sbr.rel target = $region3
  $region8: #{discriminator_forward.4} parent=0 // loop_exit
    _

// kernel: discriminator_forward.5
$region0: #{discriminator_forward.5}
  #allocation0 [shape = 'u32[]', space=smem, size = 0x4, offset = 0x4, fixed_abs, tag = 'smem constant byte address 0x4 - core index']
  #allocation1 [shape = 'u32[144,128]{1,0:T(1,128)}', space=vmem, size = 0x12000, scoped, tag = 'internal scratch']
  %s0 = inlined_call_operand.vmem [shape: bf16[512,128], index: 0, kind: input, shape index: {}]
  %s1 = inlined_call_operand.vmem [shape: bf16[128,128], index: 1, kind: input, shape index: {}]
  %s2 = inlined_call_operand.vmem [shape: f32[1,128], index: 2, kind: input, shape index: {}]
  %s3 = inlined_call_operand.vmem [shape: bf16[512,128], index: 3, kind: output, shape index: {0}]
  %s4 = inlined_call_operand.vmem [shape: f32[8,128], index: 4, kind: output, shape index: {1}]
  %s5 = inlined_call_operand.vmem [shape: f32[8,128], index: 5, kind: output, shape index: {2}]
  %6 = xla_tuple %s3, %s4, %s5
  %s7 = sld [smem:[#allocation0]]
  $region38: #{discriminator_forward.5} parent=0
    _
  %s9 = ssub.s32 1, %s7
  %s10 = scalar_select 0, %s9, %s7
  // Predicated region
  $region2: #{discriminator_forward.5} parent=0 // pred_check
    _
  $region3: #{discriminator_forward.5} parent=0 // pred_check_branch
    %12 = sbr.rel (0) target = $region5
  $region4: #{discriminator_forward.5} parent=0 // pred_region
    _
  $region5: #{discriminator_forward.5} parent=0 // pred_fallthru
    _
  // Predicated region
  $region6: #{discriminator_forward.5} parent=0 // pred_check
    _
  $region7: #{discriminator_forward.5} parent=0 // pred_check_branch
    %14 = sbr.rel (0) target = $region9
  $region8: #{discriminator_forward.5} parent=0 // pred_region
    _
  $region9: #{discriminator_forward.5} parent=0 // pred_fallthru
    _
  // Predicated region
  $region10: #{discriminator_forward.5} parent=0 // pred_check
    _
  $region11: #{discriminator_forward.5} parent=0 // pred_check_branch
    %16 = sbr.rel (0) target = $region13
  $region12: #{discriminator_forward.5} parent=0 // pred_region
    _
  $region13: #{discriminator_forward.5} parent=0 // pred_fallthru
    _
  %v18 = vld [vmem:[%s0] sm:$0xf]
  %v19 = vld [vmem:[%s0 + $0x4] sm:$0xf]
  %v20 = vld [vmem:[%s0 + $0x8] sm:$0xf]
  %v21 = vld [vmem:[%s0 + $0xc] sm:$0xf]
  %v22 = vld [vmem:[%s0 + $0x10] sm:$0xf]
  %v23 = vld [vmem:[%s0 + $0x14] sm:$0xf]
  %v24 = vld [vmem:[%s0 + $0x18] sm:$0xf]
  %v25 = vld [vmem:[%s0 + $0x1c] sm:$0xf]
  %v26 = vld [vmem:[%s0 + $0x20] sm:$0xf]
  %v27 = vld [vmem:[%s0 + $0x24] sm:$0xf]
  %v28 = vld [vmem:[%s0 + $0x28] sm:$0xf]
  %v29 = vld [vmem:[%s0 + $0x2c] sm:$0xf]
  %v30 = vld [vmem:[%s0 + $0x30] sm:$0xf]
  %v31 = vld [vmem:[%s0 + $0x34] sm:$0xf]
  %v32 = vld [vmem:[%s0 + $0x38] sm:$0xf]
  %v33 = vld [vmem:[%s0 + $0x3c] sm:$0xf]
  %v34 = vld [vmem:[%s0 + $0x40] sm:$0xf]
  %v35 = vld [vmem:[%s0 + $0x44] sm:$0xf]
  %v36 = vld [vmem:[%s0 + $0x48] sm:$0xf]
  %v37 = vld [vmem:[%s0 + $0x4c] sm:$0xf]
  %v38 = vld [vmem:[%s0 + $0x50] sm:$0xf]
  %v39 = vld [vmem:[%s0 + $0x54] sm:$0xf]
  %v40 = vld [vmem:[%s0 + $0x58] sm:$0xf]
  %v41 = vld [vmem:[%s0 + $0x5c] sm:$0xf]
  %v42 = vld [vmem:[%s0 + $0x60] sm:$0xf]
  %v43 = vld [vmem:[%s0 + $0x64] sm:$0xf]
  %v44 = vld [vmem:[%s0 + $0x68] sm:$0xf]
  %v45 = vld [vmem:[%s0 + $0x6c] sm:$0xf]
  %v46 = vld [vmem:[%s0 + $0x70] sm:$0xf]
  %v47 = vld [vmem:[%s0 + $0x74] sm:$0xf]
  %v48 = vld [vmem:[%s0 + $0x78] sm:$0xf]
  %v49 = vld [vmem:[%s0 + $0x7c] sm:$0xf]
  %v50 = vld [vmem:[%s0 + $0x80] sm:$0xf]
  %v51 = vld [vmem:[%s0 + $0x84] sm:$0xf]
  %v52 = vld [vmem:[%s0 + $0x88] sm:$0xf]
  %v53 = vld [vmem:[%s0 + $0x8c] sm:$0xf]
  %v54 = vld [vmem:[%s0 + $0x90] sm:$0xf]
  %v55 = vld [vmem:[%s0 + $0x94] sm:$0xf]
  %v56 = vld [vmem:[%s0 + $0x98] sm:$0xf]
  %v57 = vld [vmem:[%s0 + $0x9c] sm:$0xf]
  %v58 = vld [vmem:[%s0 + $0xa0] sm:$0xf]
  %v59 = vld [vmem:[%s0 + $0xa4] sm:$0xf]
  %v60 = vld [vmem:[%s0 + $0xa8] sm:$0xf]
  %v61 = vld [vmem:[%s0 + $0xac] sm:$0xf]
  %v62 = vld [vmem:[%s0 + $0xb0] sm:$0xf]
  %v63 = vld [vmem:[%s0 + $0xb4] sm:$0xf]
  %v64 = vld [vmem:[%s0 + $0xb8] sm:$0xf]
  %v65 = vld [vmem:[%s0 + $0xbc] sm:$0xf]
  %v66 = vld [vmem:[%s0 + $0xc0] sm:$0xf]
  %v67 = vld [vmem:[%s0 + $0xc4] sm:$0xf]
  %v68 = vld [vmem:[%s0 + $0xc8] sm:$0xf]
  %v69 = vld [vmem:[%s0 + $0xcc] sm:$0xf]
  %v70 = vld [vmem:[%s0 + $0xd0] sm:$0xf]
  %v71 = vld [vmem:[%s0 + $0xd4] sm:$0xf]
  %v72 = vld [vmem:[%s0 + $0xd8] sm:$0xf]
  %v73 = vld [vmem:[%s0 + $0xdc] sm:$0xf]
  %v74 = vld [vmem:[%s0 + $0xe0] sm:$0xf]
  %v75 = vld [vmem:[%s0 + $0xe4] sm:$0xf]
  %v76 = vld [vmem:[%s0 + $0xe8] sm:$0xf]
  %v77 = vld [vmem:[%s0 + $0xec] sm:$0xf]
  %v78 = vld [vmem:[%s0 + $0xf0] sm:$0xf]
  %v79 = vld [vmem:[%s0 + $0xf4] sm:$0xf]
  %v80 = vld [vmem:[%s0 + $0xf8] sm:$0xf]
  %v81 = vld [vmem:[%s0 + $0xfc] sm:$0xf]
  %v82 = vld [vmem:[%s1] sm:$0xf]
  %v83 = vld [vmem:[%s1 + $0x4] sm:$0xf]
  %v84 = vld [vmem:[%s1 + $0x8] sm:$0xf]
  %v85 = vld [vmem:[%s1 + $0xc] sm:$0xf]
  %v86 = vld [vmem:[%s1 + $0x10] sm:$0xf]
  %v87 = vld [vmem:[%s1 + $0x14] sm:$0xf]
  %v88 = vld [vmem:[%s1 + $0x18] sm:$0xf]
  %v89 = vld [vmem:[%s1 + $0x1c] sm:$0xf]
  %v90 = vld [vmem:[%s1 + $0x20] sm:$0xf]
  %v91 = vld [vmem:[%s1 + $0x24] sm:$0xf]
  %v92 = vld [vmem:[%s1 + $0x28] sm:$0xf]
  %v93 = vld [vmem:[%s1 + $0x2c] sm:$0xf]
  %v94 = vld [vmem:[%s1 + $0x30] sm:$0xf]
  %v95 = vld [vmem:[%s1 + $0x34] sm:$0xf]
  %v96 = vld [vmem:[%s1 + $0x38] sm:$0xf]
  %v97 = vld [vmem:[%s1 + $0x3c] sm:$0xf]
  %v98 = vld [vmem:[%s2] sm:$0x1]
  %v100 = vlaneseq
  %v101 = vshrl.u32 %v100, 7
  %v102 = vsub.s32 0, %v101
  %v103 = vrot.slane %v98, %v102
  %v169 = vunpack.c.l.b16 %v18
  %v170 = vunpack.c.l.b16 %v19
  %v171 = vunpack.c.l.b16 %v20
  %v172 = vunpack.c.l.b16 %v21
  %v173 = vunpack.c.l.b16 %v22
  %v174 = vunpack.c.l.b16 %v23
  %v175 = vunpack.c.l.b16 %v24
  %v176 = vunpack.c.l.b16 %v25
  %v177 = vunpack.c.l.b16 %v26
  %v178 = vunpack.c.l.b16 %v27
  %v179 = vunpack.c.l.b16 %v28
  %v180 = vunpack.c.l.b16 %v29
  %v181 = vunpack.c.l.b16 %v30
  %v182 = vunpack.c.l.b16 %v31
  %v183 = vunpack.c.l.b16 %v32
  %v184 = vunpack.c.l.b16 %v33
  %v185 = vunpack.c.l.b16 %v34
  %v186 = vunpack.c.l.b16 %v35
  %v187 = vunpack.c.l.b16 %v36
  %v188 = vunpack.c.l.b16 %v37
  %v189 = vunpack.c.l.b16 %v38
  %v190 = vunpack.c.l.b16 %v39
  %v191 = vunpack.c.l.b16 %v40
  %v192 = vunpack.c.l.b16 %v41
  %v193 = vunpack.c.l.b16 %v42
  %v194 = vunpack.c.l.b16 %v43
  %v195 = vunpack.c.l.b16 %v44
  %v196 = vunpack.c.l.b16 %v45
  %v197 = vunpack.c.l.b16 %v46
  %v198 = vunpack.c.l.b16 %v47
  %v199 = vunpack.c.l.b16 %v48
  %v200 = vunpack.c.l.b16 %v49
  %v201 = vunpack.c.l.b16 %v50
  %v202 = vunpack.c.l.b16 %v51
  %v203 = vunpack.c.l.b16 %v52
  %v204 = vunpack.c.l.b16 %v53
  %v205 = vunpack.c.l.b16 %v54
  %v206 = vunpack.c.l.b16 %v55
  %v207 = vunpack.c.l.b16 %v56
  %v208 = vunpack.c.l.b16 %v57
  %v209 = vunpack.c.l.b16 %v58
  %v210 = vunpack.c.l.b16 %v59
  %v211 = vunpack.c.l.b16 %v60
  %v212 = vunpack.c.l.b16 %v61
  %v213 = vunpack.c.l.b16 %v62
  %v214 = vunpack.c.l.b16 %v63
  %v215 = vunpack.c.l.b16 %v64
  %v216 = vunpack.c.l.b16 %v65
  %v217 = vunpack.c.l.b16 %v66
  %v218 = vunpack.c.l.b16 %v67
  %v219 = vunpack.c.l.b16 %v68
  %v220 = vunpack.c.l.b16 %v69
  %v221 = vunpack.c.l.b16 %v70
  %v222 = vunpack.c.l.b16 %v71
  %v223 = vunpack.c.l.b16 %v72
  %v224 = vunpack.c.l.b16 %v73
  %v225 = vunpack.c.l.b16 %v74
  %v226 = vunpack.c.l.b16 %v75
  %v227 = vunpack.c.l.b16 %v76
  %v228 = vunpack.c.l.b16 %v77
  %v229 = vunpack.c.l.b16 %v78
  %v230 = vunpack.c.l.b16 %v79
  %v231 = vunpack.c.l.b16 %v80
  %v232 = vunpack.c.l.b16 %v81
  %v233 = vpack.c.b16 %v170, %v169
  %v234 = vpack.c.b16 %v172, %v171
  %v235 = vpack.c.b16 %v174, %v173
  %v236 = vpack.c.b16 %v176, %v175
  %v237 = vpack.c.b16 %v178, %v177
  %v238 = vpack.c.b16 %v180, %v179
  %v239 = vpack.c.b16 %v182, %v181
  %v240 = vpack.c.b16 %v184, %v183
  %v241 = vpack.c.b16 %v186, %v185
  %v242 = vpack.c.b16 %v188, %v187
  %v243 = vpack.c.b16 %v190, %v189
  %v244 = vpack.c.b16 %v192, %v191
  %v245 = vpack.c.b16 %v194, %v193
  %v246 = vpack.c.b16 %v196, %v195
  %v247 = vpack.c.b16 %v198, %v197
  %v248 = vpack.c.b16 %v200, %v199
  %v249 = vpack.c.b16 %v202, %v201
  %v250 = vpack.c.b16 %v204, %v203
  %v251 = vpack.c.b16 %v206, %v205
  %v252 = vpack.c.b16 %v208, %v207
  %v253 = vpack.c.b16 %v210, %v209
  %v254 = vpack.c.b16 %v212, %v211
  %v255 = vpack.c.b16 %v214, %v213
  %v256 = vpack.c.b16 %v216, %v215
  %v257 = vpack.c.b16 %v218, %v217
  %v258 = vpack.c.b16 %v220, %v219
  %v259 = vpack.c.b16 %v222, %v221
  %v260 = vpack.c.b16 %v224, %v223
  %v261 = vpack.c.b16 %v226, %v225
  %v262 = vpack.c.b16 %v228, %v227
  %v263 = vpack.c.b16 %v230, %v229
  %v264 = vpack.c.b16 %v232, %v231
  %v313 = vunpack.c.l.b16 %v82
  %v314 = vunpack.c.l.b16 %v83
  %v315 = vunpack.c.l.b16 %v84
  %v316 = vunpack.c.l.b16 %v85
  %v317 = vunpack.c.l.b16 %v86
  %v318 = vunpack.c.l.b16 %v87
  %v319 = vunpack.c.l.b16 %v88
  %v320 = vunpack.c.l.b16 %v89
  %v321 = vunpack.c.l.b16 %v90
  %v322 = vunpack.c.l.b16 %v91
  %v323 = vunpack.c.l.b16 %v92
  %v324 = vunpack.c.l.b16 %v93
  %v325 = vunpack.c.l.b16 %v94
  %v326 = vunpack.c.l.b16 %v95
  %v327 = vunpack.c.l.b16 %v96
  %v328 = vunpack.c.l.b16 %v97
  %v329 = vpack.c.b16 %v314, %v313
  %v330 = vpack.c.b16 %v316, %v315
  %v331 = vpack.c.b16 %v318, %v317
  %v332 = vpack.c.b16 %v320, %v319
  %v333 = vpack.c.b16 %v322, %v321
  %v334 = vpack.c.b16 %v324, %v323
  %v335 = vpack.c.b16 %v326, %v325
  %v336 = vpack.c.b16 %v328, %v327
  %345 = vmatprep.subr.bf16.mxu0 0
  %346 = vmatpush1.bf16.msra.mxu0 %v329
  %347 = vmatprep.subr.bf16.mxu0 0
  %348 = vmatpush1.bf16.msra.mxu0 %v330
  %349 = vmatprep.subr.bf16.mxu0 0
  %350 = vmatpush1.bf16.msra.mxu0 %v331
  %351 = vmatprep.subr.bf16.mxu0 0
  %352 = vmatpush1.bf16.msra.mxu0 %v332
  %353 = vmatprep.subr.bf16.mxu0 0
  %354 = vmatpush1.bf16.msra.mxu0 %v333
  %355 = vmatprep.subr.bf16.mxu0 0
  %356 = vmatpush1.bf16.msra.mxu0 %v334
  %357 = vmatprep.subr.bf16.mxu0 0
  %358 = vmatpush1.bf16.msra.mxu0 %v335
  %359 = vmatprep.subr.bf16.mxu0 0
  %360 = vmatpush1.bf16.msra.mxu0 %v336
  %361 = vmatprep.subr.bf16.mxu0 0
  %362 = vmatpush1.bf16.msra.mxu0 0
  %363 = vmatprep.subr.bf16.mxu0 0
  %364 = vmatpush1.bf16.msra.mxu0 0
  %365 = vmatprep.subr.bf16.mxu0 0
  %366 = vmatpush1.bf16.msra.mxu0 0
  %367 = vmatprep.subr.bf16.mxu0 0
  %368 = vmatpush1.bf16.msra.mxu0 0
  %369 = vmatprep.subr.bf16.mxu0 0
  %370 = vmatpush1.bf16.msra.mxu0 0
  %371 = vmatprep.subr.bf16.mxu0 0
  %372 = vmatpush1.bf16.msra.mxu0 0
  %373 = vmatprep.subr.bf16.mxu0 0
  %374 = vmatpush1.bf16.msra.mxu0 0
  %375 = vmatprep.subr.bf16.mxu0 0
  %376 = vmatpush1.bf16.msra.mxu0 0
  %377 = vmatprep.mubr.bf16.mxu0 0
  %378 = vmatmul.mubr.bf16.gmra.mrb[0].mxu0 %v233
  %v379 = vpop.f32.mrb[0].mxu0
  %v380 = vadd.f32 %v103, %v379
  %v381 = vpop.f32.mrb[0].mxu0
  %v382 = vpop.f32.mrb[0].mxu0
  %v383 = vadd.f32 %v103, %v382
  %v384 = vpop.f32.mrb[0].mxu0
  %385 = vmatprep.mubr.bf16.mxu0 0
  %386 = vmatmul.mubr.bf16.gmra.mrb[0].mxu0 %v234
  %v387 = vpop.f32.mrb[0].mxu0
  %v388 = vadd.f32 %v103, %v387
  %v389 = vpop.f32.mrb[0].mxu0
  %v390 = vpop.f32.mrb[0].mxu0
  %v391 = vadd.f32 %v103, %v390
  %v392 = vpop.f32.mrb[0].mxu0
  %393 = vmatprep.mubr.bf16.mxu0 0
  %394 = vmatmul.mubr.bf16.gmra.mrb[0].mxu0 %v235
  %v395 = vpop.f32.mrb[0].mxu0
  %v396 = vadd.f32 %v103, %v395
  %v397 = vpop.f32.mrb[0].mxu0
  %v398 = vpop.f32.mrb[0].mxu0
  %v399 = vadd.f32 %v103, %v398
  %v400 = vpop.f32.mrb[0].mxu0
  %401 = vmatprep.mubr.bf16.mxu0 0
  %402 = vmatmul.mubr.bf16.gmra.mrb[0].mxu0 %v236
  %v403 = vpop.f32.mrb[0].mxu0
  %v404 = vadd.f32 %v103, %v403
  %v405 = vpop.f32.mrb[0].mxu0
  %v406 = vpop.f32.mrb[0].mxu0
  %v407 = vadd.f32 %v103, %v406
  %v408 = vpop.f32.mrb[0].mxu0
  %409 = vmatprep.mubr.bf16.mxu0 0
  %410 = vmatmul.mubr.bf16.gmra.mrb[0].mxu0 %v237
  %v411 = vpop.f32.mrb[0].mxu0
  %v412 = vadd.f32 %v103, %v411
  %v413 = vpop.f32.mrb[0].mxu0
  %v414 = vpop.f32.mrb[0].mxu0
  %v415 = vadd.f32 %v103, %v414
  %v416 = vpop.f32.mrb[0].mxu0
  %417 = vmatprep.mubr.bf16.mxu0 0
  %418 = vmatmul.mubr.bf16.gmra.mrb[0].mxu0 %v238
  %v419 = vpop.f32.mrb[0].mxu0
  %v420 = vadd.f32 %v103, %v419
  %v421 = vpop.f32.mrb[0].mxu0
  %v422 = vpop.f32.mrb[0].mxu0
  %v423 = vadd.f32 %v103, %v422
  %v424 = vpop.f32.mrb[0].mxu0
  %425 = vmatprep.mubr.bf16.mxu0 0
  %426 = vmatmul.mubr.bf16.gmra.mrb[0].mxu0 %v239
  %v427 = vpop.f32.mrb[0].mxu0
  %v428 = vadd.f32 %v103, %v427
  %v429 = vpop.f32.mrb[0].mxu0
  %v430 = vpop.f32.mrb[0].mxu0
  %v431 = vadd.f32 %v103, %v430
  %v432 = vpop.f32.mrb[0].mxu0
  %433 = vmatprep.mubr.bf16.mxu0 0
  %434 = vmatmul.mubr.bf16.gmra.mrb[0].mxu0 %v240
  %v435 = vpop.f32.mrb[0].mxu0
  %v436 = vadd.f32 %v103, %v435
  %v437 = vpop.f32.mrb[0].mxu0
  %v438 = vpop.f32.mrb[0].mxu0
  %v439 = vadd.f32 %v103, %v438
  %v440 = vpop.f32.mrb[0].mxu0
  %441 = vmatprep.mubr.bf16.mxu0 0
  %442 = vmatmul.mubr.bf16.gmra.mrb[0].mxu0 %v241
  %v443 = vpop.f32.mrb[0].mxu0
  %v444 = vadd.f32 %v103, %v443
  %v445 = vpop.f32.mrb[0].mxu0
  %v446 = vpop.f32.mrb[0].mxu0
  %v447 = vadd.f32 %v103, %v446
  %v448 = vpop.f32.mrb[0].mxu0
  %449 = vmatprep.mubr.bf16.mxu0 0
  %450 = vmatmul.mubr.bf16.gmra.mrb[0].mxu0 %v242
  %v451 = vpop.f32.mrb[0].mxu0
  %v452 = vadd.f32 %v103, %v451
  %v453 = vpop.f32.mrb[0].mxu0
  %v454 = vpop.f32.mrb[0].mxu0
  %v455 = vadd.f32 %v103, %v454
  %v456 = vpop.f32.mrb[0].mxu0
  %457 = vmatprep.mubr.bf16.mxu0 0
  %458 = vmatmul.mubr.bf16.gmra.mrb[0].mxu0 %v243
  %v459 = vpop.f32.mrb[0].mxu0
  %v460 = vadd.f32 %v103, %v459
  %v461 = vpop.f32.mrb[0].mxu0
  %v462 = vpop.f32.mrb[0].mxu0
  %v463 = vadd.f32 %v103, %v462
  %v464 = vpop.f32.mrb[0].mxu0
  %465 = vmatprep.mubr.bf16.mxu0 0
  %466 = vmatmul.mubr.bf16.gmra.mrb[0].mxu0 %v244
  %v467 = vpop.f32.mrb[0].mxu0
  %v468 = vadd.f32 %v103, %v467
  %v469 = vpop.f32.mrb[0].mxu0
  %v470 = vpop.f32.mrb[0].mxu0
  %v471 = vadd.f32 %v103, %v470
  %v472 = vpop.f32.mrb[0].mxu0
  %473 = vmatprep.mubr.bf16.mxu0 0
  %474 = vmatmul.mubr.bf16.gmra.mrb[0].mxu0 %v245
  %v475 = vpop.f32.mrb[0].mxu0
  %v476 = vadd.f32 %v103, %v475
  %v477 = vpop.f32.mrb[0].mxu0
  %v478 = vpop.f32.mrb[0].mxu0
  %v479 = vadd.f32 %v103, %v478
  %v480 = vpop.f32.mrb[0].mxu0
  %481 = vmatprep.mubr.bf16.mxu0 0
  %482 = vmatmul.mubr.bf16.gmra.mrb[0].mxu0 %v246
  %v483 = vpop.f32.mrb[0].mxu0
  %v484 = vadd.f32 %v103, %v483
  %v485 = vpop.f32.mrb[0].mxu0
  %v486 = vpop.f32.mrb[0].mxu0
  %v487 = vadd.f32 %v103, %v486
  %v488 = vpop.f32.mrb[0].mxu0
  %489 = vmatprep.mubr.bf16.mxu0 0
  %490 = vmatmul.mubr.bf16.gmra.mrb[0].mxu0 %v247
  %v491 = vpop.f32.mrb[0].mxu0
  %v492 = vadd.f32 %v103, %v491
  %v493 = vpop.f32.mrb[0].mxu0
  %v494 = vpop.f32.mrb[0].mxu0
  %v495 = vadd.f32 %v103, %v494
  %v496 = vpop.f32.mrb[0].mxu0
  %497 = vmatprep.mubr.bf16.mxu0 0
  %498 = vmatmul.mubr.bf16.gmra.mrb[0].mxu0 %v248
  %v499 = vpop.f32.mrb[0].mxu0
  %v500 = vadd.f32 %v103, %v499
  %v501 = vpop.f32.mrb[0].mxu0
  %v502 = vpop.f32.mrb[0].mxu0
  %v503 = vadd.f32 %v103, %v502
  %v504 = vpop.f32.mrb[0].mxu0
  %505 = vmatprep.mubr.bf16.mxu0 0
  %506 = vmatmul.mubr.bf16.gmra.mrb[0].mxu0 %v249
  %v507 = vpop.f32.mrb[0].mxu0
  %v508 = vadd.f32 %v103, %v507
  %v509 = vpop.f32.mrb[0].mxu0
  %v510 = vpop.f32.mrb[0].mxu0
  %v511 = vadd.f32 %v103, %v510
  %v512 = vpop.f32.mrb[0].mxu0
  %513 = vmatprep.mubr.bf16.mxu0 0
  %514 = vmatmul.mubr.bf16.gmra.mrb[0].mxu0 %v250
  %v515 = vpop.f32.mrb[0].mxu0
  %v516 = vadd.f32 %v103, %v515
  %v517 = vpop.f32.mrb[0].mxu0
  %v518 = vpop.f32.mrb[0].mxu0
  %v519 = vadd.f32 %v103, %v518
  %v520 = vpop.f32.mrb[0].mxu0
  %521 = vmatprep.mubr.bf16.mxu0 0
  %522 = vmatmul.mubr.bf16.gmra.mrb[0].mxu0 %v251
  %v523 = vpop.f32.mrb[0].mxu0
  %v524 = vadd.f32 %v103, %v523
  %v525 = vpop.f32.mrb[0].mxu0
  %v526 = vpop.f32.mrb[0].mxu0
  %v527 = vadd.f32 %v103, %v526
  %v528 = vpop.f32.mrb[0].mxu0
  %529 = vmatprep.mubr.bf16.mxu0 0
  %530 = vmatmul.mubr.bf16.gmra.mrb[0].mxu0 %v252
  %v531 = vpop.f32.mrb[0].mxu0
  %v532 = vadd.f32 %v103, %v531
  %v533 = vpop.f32.mrb[0].mxu0
  %v534 = vpop.f32.mrb[0].mxu0
  %v535 = vadd.f32 %v103, %v534
  %v536 = vpop.f32.mrb[0].mxu0
  %537 = vmatprep.mubr.bf16.mxu0 0
  %538 = vmatmul.mubr.bf16.gmra.mrb[0].mxu0 %v253
  %v539 = vpop.f32.mrb[0].mxu0
  %v540 = vadd.f32 %v103, %v539
  %v541 = vpop.f32.mrb[0].mxu0
  %v542 = vpop.f32.mrb[0].mxu0
  %v543 = vadd.f32 %v103, %v542
  %v544 = vpop.f32.mrb[0].mxu0
  %545 = vmatprep.mubr.bf16.mxu0 0
  %546 = vmatmul.mubr.bf16.gmra.mrb[0].mxu0 %v254
  %v547 = vpop.f32.mrb[0].mxu0
  %v548 = vadd.f32 %v103, %v547
  %v549 = vpop.f32.mrb[0].mxu0
  %v550 = vpop.f32.mrb[0].mxu0
  %v551 = vadd.f32 %v103, %v550
  %v552 = vpop.f32.mrb[0].mxu0
  %553 = vmatprep.mubr.bf16.mxu0 0
  %554 = vmatmul.mubr.bf16.gmra.mrb[0].mxu0 %v255
  %v555 = vpop.f32.mrb[0].mxu0
  %v556 = vadd.f32 %v103, %v555
  %v557 = vpop.f32.mrb[0].mxu0
  %v558 = vpop.f32.mrb[0].mxu0
  %v559 = vadd.f32 %v103, %v558
  %v560 = vpop.f32.mrb[0].mxu0
  %561 = vmatprep.mubr.bf16.mxu0 0
  %562 = vmatmul.mubr.bf16.gmra.mrb[0].mxu0 %v256
  %v563 = vpop.f32.mrb[0].mxu0
  %v564 = vadd.f32 %v103, %v563
  %v565 = vpop.f32.mrb[0].mxu0
  %v566 = vpop.f32.mrb[0].mxu0
  %v567 = vadd.f32 %v103, %v566
  %v568 = vpop.f32.mrb[0].mxu0
  %569 = vmatprep.mubr.bf16.mxu0 0
  %570 = vmatmul.mubr.bf16.gmra.mrb[0].mxu0 %v257
  %v571 = vpop.f32.mrb[0].mxu0
  %v572 = vadd.f32 %v103, %v571
  %v573 = vpop.f32.mrb[0].mxu0
  %v574 = vpop.f32.mrb[0].mxu0
  %v575 = vadd.f32 %v103, %v574
  %v576 = vpop.f32.mrb[0].mxu0
  %577 = vmatprep.mubr.bf16.mxu0 0
  %578 = vmatmul.mubr.bf16.gmra.mrb[0].mxu0 %v258
  %v579 = vpop.f32.mrb[0].mxu0
  %v580 = vadd.f32 %v103, %v579
  %v581 = vpop.f32.mrb[0].mxu0
  %v582 = vpop.f32.mrb[0].mxu0
  %v583 = vadd.f32 %v103, %v582
  %v584 = vpop.f32.mrb[0].mxu0
  %585 = vmatprep.mubr.bf16.mxu0 0
  %586 = vmatmul.mubr.bf16.gmra.mrb[0].mxu0 %v259
  %v587 = vpop.f32.mrb[0].mxu0
  %v588 = vadd.f32 %v103, %v587
  %v589 = vpop.f32.mrb[0].mxu0
  %v590 = vpop.f32.mrb[0].mxu0
  %v591 = vadd.f32 %v103, %v590
  %v592 = vpop.f32.mrb[0].mxu0
  %593 = vmatprep.mubr.bf16.mxu0 0
  %594 = vmatmul.mubr.bf16.gmra.mrb[0].mxu0 %v260
  %v595 = vpop.f32.mrb[0].mxu0
  %v596 = vadd.f32 %v103, %v595
  %v597 = vpop.f32.mrb[0].mxu0
  %v598 = vpop.f32.mrb[0].mxu0
  %v599 = vadd.f32 %v103, %v598
  %v600 = vpop.f32.mrb[0].mxu0
  %601 = vmatprep.mubr.bf16.mxu0 0
  %602 = vmatmul.mubr.bf16.gmra.mrb[0].mxu0 %v261
  %v603 = vpop.f32.mrb[0].mxu0
  %v604 = vadd.f32 %v103, %v603
  %v605 = vpop.f32.mrb[0].mxu0
  %v606 = vpop.f32.mrb[0].mxu0
  %v607 = vadd.f32 %v103, %v606
  %v608 = vpop.f32.mrb[0].mxu0
  %609 = vmatprep.mubr.bf16.mxu0 0
  %610 = vmatmul.mubr.bf16.gmra.mrb[0].mxu0 %v262
  %v611 = vpop.f32.mrb[0].mxu0
  %v612 = vadd.f32 %v103, %v611
  %v613 = vpop.f32.mrb[0].mxu0
  %v614 = vpop.f32.mrb[0].mxu0
  %v615 = vadd.f32 %v103, %v614
  %v616 = vpop.f32.mrb[0].mxu0
  %617 = vmatprep.mubr.bf16.mxu0 0
  %618 = vmatmul.mubr.bf16.gmra.mrb[0].mxu0 %v263
  %v619 = vpop.f32.mrb[0].mxu0
  %v620 = vadd.f32 %v103, %v619
  %v621 = vpop.f32.mrb[0].mxu0
  %v622 = vpop.f32.mrb[0].mxu0
  %v623 = vadd.f32 %v103, %v622
  %v624 = vpop.f32.mrb[0].mxu0
  %625 = vmatprep.mubr.bf16.mxu0 0
  %626 = vmatmul.mubr.bf16.gmra.mrb[0].mxu0 %v264
  %v627 = vpop.f32.mrb[0].mxu0
  %v628 = vadd.f32 %v103, %v627
  %v629 = vpop.f32.mrb[0].mxu0
  %v630 = vpop.f32.mrb[0].mxu0
  %v631 = vadd.f32 %v103, %v630
  %v632 = vpop.f32.mrb[0].mxu0
  %633 = vdwg.mxu0
  %v634 = vpack.c.bf16 %v383, %v380
  %v635 = vpack.c.bf16 %v391, %v388
  %v636 = vpack.c.bf16 %v399, %v396
  %v637 = vpack.c.bf16 %v407, %v404
  %v638 = vpack.c.bf16 %v415, %v412
  %v639 = vpack.c.bf16 %v423, %v420
  %v640 = vpack.c.bf16 %v431, %v428
  %v641 = vpack.c.bf16 %v439, %v436
  %v642 = vpack.c.bf16 %v447, %v444
  %v643 = vpack.c.bf16 %v455, %v452
  %v644 = vpack.c.bf16 %v463, %v460
  %v645 = vpack.c.bf16 %v471, %v468
  %v646 = vpack.c.bf16 %v479, %v476
  %v647 = vpack.c.bf16 %v487, %v484
  %v648 = vpack.c.bf16 %v495, %v492
  %v649 = vpack.c.bf16 %v503, %v500
  %v650 = vpack.c.bf16 %v511, %v508
  %v651 = vpack.c.bf16 %v519, %v516
  %v652 = vpack.c.bf16 %v527, %v524
  %v653 = vpack.c.bf16 %v535, %v532
  %v654 = vpack.c.bf16 %v543, %v540
  %v655 = vpack.c.bf16 %v551, %v548
  %v656 = vpack.c.bf16 %v559, %v556
  %v657 = vpack.c.bf16 %v567, %v564
  %v658 = vpack.c.bf16 %v575, %v572
  %v659 = vpack.c.bf16 %v583, %v580
  %v660 = vpack.c.bf16 %v591, %v588
  %v661 = vpack.c.bf16 %v599, %v596
  %v662 = vpack.c.bf16 %v607, %v604
  %v663 = vpack.c.bf16 %v615, %v612
  %v664 = vpack.c.bf16 %v623, %v620
  %v665 = vpack.c.bf16 %v631, %v628
  %v698 = vunpack.c.l.b16 %v634
  %v699 = vunpack.c.h.b16 %v634
  %v700 = vunpack.c.l.b16 %v635
  %v701 = vunpack.c.h.b16 %v635
  %v702 = vunpack.c.l.b16 %v636
  %v703 = vunpack.c.h.b16 %v636
  %v704 = vunpack.c.l.b16 %v637
  %v705 = vunpack.c.h.b16 %v637
  %v706 = vunpack.c.l.b16 %v638
  %v707 = vunpack.c.h.b16 %v638
  %v708 = vunpack.c.l.b16 %v639
  %v709 = vunpack.c.h.b16 %v639
  %v710 = vunpack.c.l.b16 %v640
  %v711 = vunpack.c.h.b16 %v640
  %v712 = vunpack.c.l.b16 %v641
  %v713 = vunpack.c.h.b16 %v641
  %v714 = vunpack.c.l.b16 %v642
  %v715 = vunpack.c.h.b16 %v642
  %v716 = vunpack.c.l.b16 %v643
  %v717 = vunpack.c.h.b16 %v643
  %v718 = vunpack.c.l.b16 %v644
  %v719 = vunpack.c.h.b16 %v644
  %v720 = vunpack.c.l.b16 %v645
  %v721 = vunpack.c.h.b16 %v645
  %v722 = vunpack.c.l.b16 %v646
  %v723 = vunpack.c.h.b16 %v646
  %v724 = vunpack.c.l.b16 %v647
  %v725 = vunpack.c.h.b16 %v647
  %v726 = vunpack.c.l.b16 %v648
  %v727 = vunpack.c.h.b16 %v648
  %v728 = vunpack.c.l.b16 %v649
  %v729 = vunpack.c.h.b16 %v649
  %v730 = vunpack.c.l.b16 %v650
  %v731 = vunpack.c.h.b16 %v650
  %v732 = vunpack.c.l.b16 %v651
  %v733 = vunpack.c.h.b16 %v651
  %v734 = vunpack.c.l.b16 %v652
  %v735 = vunpack.c.h.b16 %v652
  %v736 = vunpack.c.l.b16 %v653
  %v737 = vunpack.c.h.b16 %v653
  %v738 = vunpack.c.l.b16 %v654
  %v739 = vunpack.c.h.b16 %v654
  %v740 = vunpack.c.l.b16 %v655
  %v741 = vunpack.c.h.b16 %v655
  %v742 = vunpack.c.l.b16 %v656
  %v743 = vunpack.c.h.b16 %v656
  %v744 = vunpack.c.l.b16 %v657
  %v745 = vunpack.c.h.b16 %v657
  %v746 = vunpack.c.l.b16 %v658
  %v747 = vunpack.c.h.b16 %v658
  %v748 = vunpack.c.l.b16 %v659
  %v749 = vunpack.c.h.b16 %v659
  %v750 = vunpack.c.l.b16 %v660
  %v751 = vunpack.c.h.b16 %v660
  %v752 = vunpack.c.l.b16 %v661
  %v753 = vunpack.c.h.b16 %v661
  %v754 = vunpack.c.l.b16 %v662
  %v755 = vunpack.c.h.b16 %v662
  %v756 = vunpack.c.l.b16 %v663
  %v757 = vunpack.c.h.b16 %v663
  %v758 = vunpack.c.l.b16 %v664
  %v759 = vunpack.c.h.b16 %v664
  %v760 = vunpack.c.l.b16 %v665
  %v761 = vunpack.c.h.b16 %v665
  %v762 = vpack.c.b16 %v698, %v698
  %v763 = vpack.c.b16 %v699, %v699
  %v764 = vpack.c.b16 %v700, %v700
  %v765 = vpack.c.b16 %v701, %v701
  %v766 = vpack.c.b16 %v702, %v702
  %v767 = vpack.c.b16 %v703, %v703
  %v768 = vpack.c.b16 %v704, %v704
  %v769 = vpack.c.b16 %v705, %v705
  %v770 = vpack.c.b16 %v706, %v706
  %v771 = vpack.c.b16 %v707, %v707
  %v772 = vpack.c.b16 %v708, %v708
  %v773 = vpack.c.b16 %v709, %v709
  %v774 = vpack.c.b16 %v710, %v710
  %v775 = vpack.c.b16 %v711, %v711
  %v776 = vpack.c.b16 %v712, %v712
  %v777 = vpack.c.b16 %v713, %v713
  %v778 = vpack.c.b16 %v714, %v714
  %v779 = vpack.c.b16 %v715, %v715
  %v780 = vpack.c.b16 %v716, %v716
  %v781 = vpack.c.b16 %v717, %v717
  %v782 = vpack.c.b16 %v718, %v718
  %v783 = vpack.c.b16 %v719, %v719
  %v784 = vpack.c.b16 %v720, %v720
  %v785 = vpack.c.b16 %v721, %v721
  %v786 = vpack.c.b16 %v722, %v722
  %v787 = vpack.c.b16 %v723, %v723
  %v788 = vpack.c.b16 %v724, %v724
  %v789 = vpack.c.b16 %v725, %v725
  %v790 = vpack.c.b16 %v726, %v726
  %v791 = vpack.c.b16 %v727, %v727
  %v792 = vpack.c.b16 %v728, %v728
  %v793 = vpack.c.b16 %v729, %v729
  %v794 = vpack.c.b16 %v730, %v730
  %v795 = vpack.c.b16 %v731, %v731
  %v796 = vpack.c.b16 %v732, %v732
  %v797 = vpack.c.b16 %v733, %v733
  %v798 = vpack.c.b16 %v734, %v734
  %v799 = vpack.c.b16 %v735, %v735
  %v800 = vpack.c.b16 %v736, %v736
  %v801 = vpack.c.b16 %v737, %v737
  %v802 = vpack.c.b16 %v738, %v738
  %v803 = vpack.c.b16 %v739, %v739
  %v804 = vpack.c.b16 %v740, %v740
  %v805 = vpack.c.b16 %v741, %v741
  %v806 = vpack.c.b16 %v742, %v742
  %v807 = vpack.c.b16 %v743, %v743
  %v808 = vpack.c.b16 %v744, %v744
  %v809 = vpack.c.b16 %v745, %v745
  %v810 = vpack.c.b16 %v746, %v746
  %v811 = vpack.c.b16 %v747, %v747
  %v812 = vpack.c.b16 %v748, %v748
  %v813 = vpack.c.b16 %v749, %v749
  %v814 = vpack.c.b16 %v750, %v750
  %v815 = vpack.c.b16 %v751, %v751
  %v816 = vpack.c.b16 %v752, %v752
  %v817 = vpack.c.b16 %v753, %v753
  %v818 = vpack.c.b16 %v754, %v754
  %v819 = vpack.c.b16 %v755, %v755
  %v820 = vpack.c.b16 %v756, %v756
  %v821 = vpack.c.b16 %v757, %v757
  %v822 = vpack.c.b16 %v758, %v758
  %v823 = vpack.c.b16 %v759, %v759
  %v824 = vpack.c.b16 %v760, %v760
  %v825 = vpack.c.b16 %v761, %v761
  %890 = vst [vmem:[%s3] sm:$0xf] %v762
  %891 = vst [vmem:[%s3 + $0x4] sm:$0xf] %v763
  %892 = vst [vmem:[%s3 + $0x8] sm:$0xf] %v764
  %893 = vst [vmem:[%s3 + $0xc] sm:$0xf] %v765
  %894 = vst [vmem:[%s3 + $0x10] sm:$0xf] %v766
  %895 = vst [vmem:[%s3 + $0x14] sm:$0xf] %v767
  %896 = vst [vmem:[%s3 + $0x18] sm:$0xf] %v768
  %897 = vst [vmem:[%s3 + $0x1c] sm:$0xf] %v769
  %898 = vst [vmem:[%s3 + $0x20] sm:$0xf] %v770
  %899 = vst [vmem:[%s3 + $0x24] sm:$0xf] %v771
  %900 = vst [vmem:[%s3 + $0x28] sm:$0xf] %v772
  %901 = vst [vmem:[%s3 + $0x2c] sm:$0xf] %v773
  %902 = vst [vmem:[%s3 + $0x30] sm:$0xf] %v774
  %903 = vst [vmem:[%s3 + $0x34] sm:$0xf] %v775
  %904 = vst [vmem:[%s3 + $0x38] sm:$0xf] %v776
  %905 = vst [vmem:[%s3 + $0x3c] sm:$0xf] %v777
  %906 = vst [vmem:[%s3 + $0x40] sm:$0xf] %v778
  %907 = vst [vmem:[%s3 + $0x44] sm:$0xf] %v779
  %908 = vst [vmem:[%s3 + $0x48] sm:$0xf] %v780
  %909 = vst [vmem:[%s3 + $0x4c] sm:$0xf] %v781
  %910 = vst [vmem:[%s3 + $0x50] sm:$0xf] %v782
  %911 = vst [vmem:[%s3 + $0x54] sm:$0xf] %v783
  %912 = vst [vmem:[%s3 + $0x58] sm:$0xf] %v784
  %913 = vst [vmem:[%s3 + $0x5c] sm:$0xf] %v785
  %914 = vst [vmem:[%s3 + $0x60] sm:$0xf] %v786
  %915 = vst [vmem:[%s3 + $0x64] sm:$0xf] %v787
  %916 = vst [vmem:[%s3 + $0x68] sm:$0xf] %v788
  %917 = vst [vmem:[%s3 + $0x6c] sm:$0xf] %v789
  %918 = vst [vmem:[%s3 + $0x70] sm:$0xf] %v790
  %919 = vst [vmem:[%s3 + $0x74] sm:$0xf] %v791
  %920 = vst [vmem:[%s3 + $0x78] sm:$0xf] %v792
  %921 = vst [vmem:[%s3 + $0x7c] sm:$0xf] %v793
  %922 = vst [vmem:[%s3 + $0x80] sm:$0xf] %v794
  %923 = vst [vmem:[%s3 + $0x84] sm:$0xf] %v795
  %924 = vst [vmem:[%s3 + $0x88] sm:$0xf] %v796
  %925 = vst [vmem:[%s3 + $0x8c] sm:$0xf] %v797
  %926 = vst [vmem:[%s3 + $0x90] sm:$0xf] %v798
  %927 = vst [vmem:[%s3 + $0x94] sm:$0xf] %v799
  %928 = vst [vmem:[%s3 + $0x98] sm:$0xf] %v800
  %929 = vst [vmem:[%s3 + $0x9c] sm:$0xf] %v801
  %930 = vst [vmem:[%s3 + $0xa0] sm:$0xf] %v802
  %931 = vst [vmem:[%s3 + $0xa4] sm:$0xf] %v803
  %932 = vst [vmem:[%s3 + $0xa8] sm:$0xf] %v804
  %933 = vst [vmem:[%s3 + $0xac] sm:$0xf] %v805
  %934 = vst [vmem:[%s3 + $0xb0] sm:$0xf] %v806
  %935 = vst [vmem:[%s3 + $0xb4] sm:$0xf] %v807
  %936 = vst [vmem:[%s3 + $0xb8] sm:$0xf] %v808
  %937 = vst [vmem:[%s3 + $0xbc] sm:$0xf] %v809
  %938 = vst [vmem:[%s3 + $0xc0] sm:$0xf] %v810
  %939 = vst [vmem:[%s3 + $0xc4] sm:$0xf] %v811
  %940 = vst [vmem:[%s3 + $0xc8] sm:$0xf] %v812
  %941 = vst [vmem:[%s3 + $0xcc] sm:$0xf] %v813
  %942 = vst [vmem:[%s3 + $0xd0] sm:$0xf] %v814
  %943 = vst [vmem:[%s3 + $0xd4] sm:$0xf] %v815
  %944 = vst [vmem:[%s3 + $0xd8] sm:$0xf] %v816
  %945 = vst [vmem:[%s3 + $0xdc] sm:$0xf] %v817
  %946 = vst [vmem:[%s3 + $0xe0] sm:$0xf] %v818
  %947 = vst [vmem:[%s3 + $0xe4] sm:$0xf] %v819
  %948 = vst [vmem:[%s3 + $0xe8] sm:$0xf] %v820
  %949 = vst [vmem:[%s3 + $0xec] sm:$0xf] %v821
  %950 = vst [vmem:[%s3 + $0xf0] sm:$0xf] %v822
  %951 = vst [vmem:[%s3 + $0xf4] sm:$0xf] %v823
  %952 = vst [vmem:[%s3 + $0xf8] sm:$0xf] %v824
  %953 = vst [vmem:[%s3 + $0xfc] sm:$0xf] %v825
  %v954 = vadd.f32 %v380, %v383
  %v955 = vadd.f32 %v954, %v388
  %v956 = vadd.f32 %v955, %v391
  %v957 = vadd.f32 %v956, %v396
  %v958 = vadd.f32 %v957, %v399
  %v959 = vadd.f32 %v958, %v404
  %v960 = vadd.f32 %v959, %v407
  %v961 = vadd.f32 %v960, %v412
  %v962 = vadd.f32 %v961, %v415
  %v963 = vadd.f32 %v962, %v420
  %v964 = vadd.f32 %v963, %v423
  %v965 = vadd.f32 %v964, %v428
  %v966 = vadd.f32 %v965, %v431
  %v967 = vadd.f32 %v966, %v436
  %v968 = vadd.f32 %v967, %v439
  %v969 = vadd.f32 %v968, %v444
  %v970 = vadd.f32 %v969, %v447
  %v971 = vadd.f32 %v970, %v452
  %v972 = vadd.f32 %v971, %v455
  %v973 = vadd.f32 %v972, %v460
  %v974 = vadd.f32 %v973, %v463
  %v975 = vadd.f32 %v974, %v468
  %v976 = vadd.f32 %v975, %v471
  %v977 = vadd.f32 %v976, %v476
  %v978 = vadd.f32 %v977, %v479
  %v979 = vadd.f32 %v978, %v484
  %v980 = vadd.f32 %v979, %v487
  %v981 = vadd.f32 %v980, %v492
  %v982 = vadd.f32 %v981, %v495
  %v983 = vadd.f32 %v982, %v500
  %v984 = vadd.f32 %v983, %v503
  %v985 = vadd.f32 %v984, %v508
  %v986 = vadd.f32 %v985, %v511
  %v987 = vadd.f32 %v986, %v516
  %v988 = vadd.f32 %v987, %v519
  %v989 = vadd.f32 %v988, %v524
  %v990 = vadd.f32 %v989, %v527
  %v991 = vadd.f32 %v990, %v532
  %v992 = vadd.f32 %v991, %v535
  %v993 = vadd.f32 %v992, %v540
  %v994 = vadd.f32 %v993, %v543
  %v995 = vadd.f32 %v994, %v548
  %v996 = vadd.f32 %v995, %v551
  %v997 = vadd.f32 %v996, %v556
  %v998 = vadd.f32 %v997, %v559
  %v999 = vadd.f32 %v998, %v564
  %v1000 = vadd.f32 %v999, %v567
  %v1001 = vadd.f32 %v1000, %v572
  %v1002 = vadd.f32 %v1001, %v575
  %v1003 = vadd.f32 %v1002, %v580
  %v1004 = vadd.f32 %v1003, %v583
  %v1005 = vadd.f32 %v1004, %v588
  %v1006 = vadd.f32 %v1005, %v591
  %v1007 = vadd.f32 %v1006, %v596
  %v1008 = vadd.f32 %v1007, %v599
  %v1009 = vadd.f32 %v1008, %v604
  %v1010 = vadd.f32 %v1009, %v607
  %v1011 = vadd.f32 %v1010, %v612
  %v1012 = vadd.f32 %v1011, %v615
  %v1013 = vadd.f32 %v1012, %v620
  %v1014 = vadd.f32 %v1013, %v623
  %v1015 = vadd.f32 %v1014, %v628
  %v1016 = vadd.f32 %v1015, %v631
  %v1017 = vrot.slane %v1016, 4
  %v1018 = vadd.f32 %v1016, %v1017
  %v1019 = vrot.slane %v1018, 2
  %v1020 = vadd.f32 %v1018, %v1019
  %v1021 = vrot.slane %v1020, 1
  %v1022 = vadd.f32 %v1020, %v1021
  %v1023 = vmul.f32 %v380, %v380
  %v1024 = vmul.f32 %v383, %v383
  %v1025 = vmul.f32 %v388, %v388
  %v1026 = vmul.f32 %v391, %v391
  %v1027 = vmul.f32 %v396, %v396
  %v1028 = vmul.f32 %v399, %v399
  %v1029 = vmul.f32 %v404, %v404
  %v1030 = vmul.f32 %v407, %v407
  %v1031 = vmul.f32 %v412, %v412
  %v1032 = vmul.f32 %v415, %v415
  %v1033 = vmul.f32 %v420, %v420
  %v1034 = vmul.f32 %v423, %v423
  %v1035 = vmul.f32 %v428, %v428
  %v1036 = vmul.f32 %v431, %v431
  %v1037 = vmul.f32 %v436, %v436
  %v1038 = vmul.f32 %v439, %v439
  %v1039 = vmul.f32 %v444, %v444
  %v1040 = vmul.f32 %v447, %v447
  %v1041 = vmul.f32 %v452, %v452
  %v1042 = vmul.f32 %v455, %v455
  %v1043 = vmul.f32 %v460, %v460
  %v1044 = vmul.f32 %v463, %v463
  %v1045 = vmul.f32 %v468, %v468
  %v1046 = vmul.f32 %v471, %v471
  %v1047 = vmul.f32 %v476, %v476
  %v1048 = vmul.f32 %v479, %v479
  %v1049 = vmul.f32 %v484, %v484
  %v1050 = vmul.f32 %v487, %v487
  %v1051 = vmul.f32 %v492, %v492
  %v1052 = vmul.f32 %v495, %v495
  %v1053 = vmul.f32 %v500, %v500
  %v1054 = vmul.f32 %v503, %v503
  %v1055 = vmul.f32 %v508, %v508
  %v1056 = vmul.f32 %v511, %v511
  %v1057 = vmul.f32 %v516, %v516
  %v1058 = vmul.f32 %v519, %v519
  %v1059 = vmul.f32 %v524, %v524
  %v1060 = vmul.f32 %v527, %v527
  %v1061 = vmul.f32 %v532, %v532
  %v1062 = vmul.f32 %v535, %v535
  %v1063 = vmul.f32 %v540, %v540
  %v1064 = vmul.f32 %v543, %v543
  %v1065 = vmul.f32 %v548, %v548
  %v1066 = vmul.f32 %v551, %v551
  %v1067 = vmul.f32 %v556, %v556
  %v1068 = vmul.f32 %v559, %v559
  %v1069 = vmul.f32 %v564, %v564
  %v1070 = vmul.f32 %v567, %v567
  %v1071 = vmul.f32 %v572, %v572
  %v1072 = vmul.f32 %v575, %v575
  %v1073 = vmul.f32 %v580, %v580
  %v1074 = vmul.f32 %v583, %v583
  %v1075 = vmul.f32 %v588, %v588
  %v1076 = vmul.f32 %v591, %v591
  %v1077 = vmul.f32 %v596, %v596
  %v1078 = vmul.f32 %v599, %v599
  %v1079 = vmul.f32 %v604, %v604
  %v1080 = vmul.f32 %v607, %v607
  %v1081 = vmul.f32 %v612, %v612
  %v1082 = vmul.f32 %v615, %v615
  %v1083 = vmul.f32 %v620, %v620
  %v1084 = vmul.f32 %v623, %v623
  %v1085 = vmul.f32 %v628, %v628
  %v1086 = vmul.f32 %v631, %v631
  %v1087 = vadd.f32 %v1023, %v1024
  %v1088 = vadd.f32 %v1087, %v1025
  %v1089 = vadd.f32 %v1088, %v1026
  %v1090 = vadd.f32 %v1089, %v1027
  %v1091 = vadd.f32 %v1090, %v1028
  %v1092 = vadd.f32 %v1091, %v1029
  %v1093 = vadd.f32 %v1092, %v1030
  %v1094 = vadd.f32 %v1093, %v1031
  %v1095 = vadd.f32 %v1094, %v1032
  %v1096 = vadd.f32 %v1095, %v1033
  %v1097 = vadd.f32 %v1096, %v1034
  %v1098 = vadd.f32 %v1097, %v1035
  %v1099 = vadd.f32 %v1098, %v1036
  %v1100 = vadd.f32 %v1099, %v1037
  %v1101 = vadd.f32 %v1100, %v1038
  %v1102 = vadd.f32 %v1101, %v1039
  %v1103 = vadd.f32 %v1102, %v1040
  %v1104 = vadd.f32 %v1103, %v1041
  %v1105 = vadd.f32 %v1104, %v1042
  %v1106 = vadd.f32 %v1105, %v1043
  %v1107 = vadd.f32 %v1106, %v1044
  %v1108 = vadd.f32 %v1107, %v1045
  %v1109 = vadd.f32 %v1108, %v1046
  %v1110 = vadd.f32 %v1109, %v1047
  %v1111 = vadd.f32 %v1110, %v1048
  %v1112 = vadd.f32 %v1111, %v1049
  %v1113 = vadd.f32 %v1112, %v1050
  %v1114 = vadd.f32 %v1113, %v1051
  %v1115 = vadd.f32 %v1114, %v1052
  %v1116 = vadd.f32 %v1115, %v1053
  %v1117 = vadd.f32 %v1116, %v1054
  %v1118 = vadd.f32 %v1117, %v1055
  %v1119 = vadd.f32 %v1118, %v1056
  %v1120 = vadd.f32 %v1119, %v1057
  %v1121 = vadd.f32 %v1120, %v1058
  %v1122 = vadd.f32 %v1121, %v1059
  %v1123 = vadd.f32 %v1122, %v1060
  %v1124 = vadd.f32 %v1123, %v1061
  %v1125 = vadd.f32 %v1124, %v1062
  %v1126 = vadd.f32 %v1125, %v1063
  %v1127 = vadd.f32 %v1126, %v1064
  %v1128 = vadd.f32 %v1127, %v1065
  %v1129 = vadd.f32 %v1128, %v1066
  %v1130 = vadd.f32 %v1129, %v1067
  %v1131 = vadd.f32 %v1130, %v1068
  %v1132 = vadd.f32 %v1131, %v1069
  %v1133 = vadd.f32 %v1132, %v1070
  %v1134 = vadd.f32 %v1133, %v1071
  %v1135 = vadd.f32 %v1134, %v1072
  %v1136 = vadd.f32 %v1135, %v1073
  %v1137 = vadd.f32 %v1136, %v1074
  %v1138 = vadd.f32 %v1137, %v1075
  %v1139 = vadd.f32 %v1138, %v1076
  %v1140 = vadd.f32 %v1139, %v1077
  %v1141 = vadd.f32 %v1140, %v1078
  %v1142 = vadd.f32 %v1141, %v1079
  %v1143 = vadd.f32 %v1142, %v1080
  %v1144 = vadd.f32 %v1143, %v1081
  %v1145 = vadd.f32 %v1144, %v1082
  %v1146 = vadd.f32 %v1145, %v1083
  %v1147 = vadd.f32 %v1146, %v1084
  %v1148 = vadd.f32 %v1147, %v1085
  %v1149 = vadd.f32 %v1148, %v1086
  %v1150 = vrot.slane %v1149, 4
  %v1151 = vadd.f32 %v1149, %v1150
  %v1152 = vrot.slane %v1151, 2
  %v1153 = vadd.f32 %v1151, %v1152
  %v1154 = vrot.slane %v1153, 1
  %v1155 = vadd.f32 %v1153, %v1154
  %1156 = vst [vmem:[%s4] sm:$0xff] %v1022
  %1157 = vst [vmem:[%s5] sm:$0xff] %v1155
  // Predicated region
  $region14: #{discriminator_forward.5} parent=0 // pred_check
    _
  $region15: #{discriminator_forward.5} parent=0 // pred_check_branch
    %1159 = sbr.rel (0) target = $region17
  $region16: #{discriminator_forward.5} parent=0 // pred_region
    _
  $region17: #{discriminator_forward.5} parent=0 // pred_fallthru
    _
  // Predicated region
  $region18: #{discriminator_forward.5} parent=0 // pred_check
    _
  $region19: #{discriminator_forward.5} parent=0 // pred_check_branch
    %1161 = sbr.rel (0) target = $region21
  $region20: #{discriminator_forward.5} parent=0 // pred_region
    _
  $region21: #{discriminator_forward.5} parent=0 // pred_fallthru
    _
  // Predicated region
  $region22: #{discriminator_forward.5} parent=0 // pred_check
    _
  $region23: #{discriminator_forward.5} parent=0 // pred_check_branch
    %1163 = sbr.rel (0) target = $region25
  $region24: #{discriminator_forward.5} parent=0 // pred_region
    _
  $region25: #{discriminator_forward.5} parent=0 // pred_fallthru
    _
  // Predicated region
  $region26: #{discriminator_forward.5} parent=0 // pred_check
    _
  $region27: #{discriminator_forward.5} parent=0 // pred_check_branch
    %1165 = sbr.rel (0) target = $region29
  $region28: #{discriminator_forward.5} parent=0 // pred_region
    _
  $region29: #{discriminator_forward.5} parent=0 // pred_fallthru
    _
  // Predicated region
  $region30: #{discriminator_forward.5} parent=0 // pred_check
    _
  $region31: #{discriminator_forward.5} parent=0 // pred_check_branch
    %1167 = sbr.rel (0) target = $region33
  $region32: #{discriminator_forward.5} parent=0 // pred_region
    _
  $region33: #{discriminator_forward.5} parent=0 // pred_fallthru
    _
  // Predicated region
  $region34: #{discriminator_forward.5} parent=0 // pred_check
    _
  $region35: #{discriminator_forward.5} parent=0 // pred_check_branch
    %1169 = sbr.rel (0) target = $region37
  $region36: #{discriminator_forward.5} parent=0 // pred_region
    _
  $region37: #{discriminator_forward.5} parent=0 // pred_fallthru
    _

// kernel: discriminator_forward.6
$region0: #{discriminator_forward.6}
  #allocation0 [shape = 'u32[]', space=smem, size = 0x4, offset = 0x4, fixed_abs, tag = 'smem constant byte address 0x4 - core index']
  #allocation1 [shape = 'u32[144,128]{1,0:T(1,128)}', space=vmem, size = 0x12000, scoped, tag = 'internal scratch']
  %s0 = inlined_call_operand.vmem [shape: bf16[2,64,256], index: 0, kind: input, shape index: {}]
  %s1 = inlined_call_operand.vmem [shape: bf16[256,128], index: 1, kind: input, shape index: {}]
  %s2 = inlined_call_operand.vmem [shape: f32[1,128], index: 2, kind: input, shape index: {}]
  %s3 = inlined_call_operand.vmem [shape: bf16[2,64,128], index: 3, kind: output, shape index: {}]
  %s4 = sld [smem:[#allocation0]]
  $region45: #{discriminator_forward.6} parent=0
    _
  %s6 = ssub.s32 1, %s4
  %s7 = scalar_select 0, %s6, %s4
  loop: start=0, step=1, limit=4
  $region2: #{discriminator_forward.6} parent=0 // loop_pre_header
    _
  $region3: #{discriminator_forward.6} parent=0 // loop_header
    %s9 = sphi 0, %s13
    %p10 = scmp.ge.s32.totalorder %s9, 4
    %s19 = sphi 0, %s21
    %s22 = sphi 0, %s19
    %s23 = sphi 0, %s22
    %s39 = sphi 0, %s23
    %s43 = sphi 0, %s43
    %s45 = sphi 0, %s43
    %s46 = sphi 0, %s45
    %s60 = sphi 0, %s46
    %s64 = sphi 0, %s64
    %s66 = sphi 0, %s64
    %s67 = sphi 0, %s66
    %s81 = sphi 0, %s67
    %s87 = sphi 0, %s89
    %s90 = sphi 0, %s87
    %s91 = sphi 0, %s90
    %s107 = sphi 0, %s91
  $region4: #{discriminator_forward.6} parent=0 // loop_header_branch
    %12 = sbr.rel (%p10) target = $region8
  $region5: #{discriminator_forward.6} parent=0 // loop_body
    %s14 = ssub.s32 %s9, 1
    %s15 = ssub.s32 %s9, 2
    %s16 = sadd.s32 %s9, 1
    %s17 = ssub.s32 %s9, %s16
    %p18 = scmp.eq.s32.totalorder %s17, 0
    %s20 = sadd.s32 %s19, 1
    %s21 = scalar_select %p18, %s19, %s20
    %p24 = pneg %p18
    %p25 = scmp.eq.s32.totalorder %s9, 1
    %p26 = por %p24, %p25
    %p27 = scmp.ne.s32.totalorder %s19, %s22
    %p28 = scmp.eq.s32.totalorder %s9, 0
    %p29 = por %p27, %p28
    %p30 = scmp.ne.s32.totalorder %s19, %s22
    %p31 = scmp.eq.s32.totalorder %s14, 1
    %p32 = por %p30, %p31
    %p33 = scmp.ne.s32.totalorder %s22, %s23
    %p34 = scmp.eq.s32.totalorder %s14, 0
    %p35 = por %p33, %p34
    %p36 = scmp.ne.s32.totalorder %s22, %s23
    %p37 = scmp.eq.s32.totalorder %s15, 1
    %p38 = por %p36, %p37
    %p40 = scmp.ne.s32.totalorder %s23, %s39
    %p41 = scmp.eq.s32.totalorder %s15, 0
    %p42 = por %p40, %p41
    %s44 = sadd.s32 %s43, 1
    %p47 = scmp.eq.s32.totalorder %s9, 1
    %p48 = scmp.ne.s32.totalorder %s43, %s45
    %p49 = scmp.eq.s32.totalorder %s9, 0
    %p50 = por %p48, %p49
    %p51 = scmp.ne.s32.totalorder %s43, %s45
    %p52 = scmp.eq.s32.totalorder %s14, 1
    %p53 = por %p51, %p52
    %p54 = scmp.ne.s32.totalorder %s45, %s46
    %p55 = scmp.eq.s32.totalorder %s14, 0
    %p56 = por %p54, %p55
    %p57 = scmp.ne.s32.totalorder %s45, %s46
    %p58 = scmp.eq.s32.totalorder %s15, 1
    %p59 = por %p57, %p58
    %p61 = scmp.ne.s32.totalorder %s46, %s60
    %p62 = scmp.eq.s32.totalorder %s15, 0
    %p63 = por %p61, %p62
    %s65 = sadd.s32 %s64, 1
    %p68 = scmp.eq.s32.totalorder %s9, 1
    %p69 = scmp.ne.s32.totalorder %s64, %s66
    %p70 = scmp.eq.s32.totalorder %s9, 0
    %p71 = por %p69, %p70
    %p72 = scmp.ne.s32.totalorder %s64, %s66
    %p73 = scmp.eq.s32.totalorder %s14, 1
    %p74 = por %p72, %p73
    %p75 = scmp.ne.s32.totalorder %s66, %s67
    %p76 = scmp.eq.s32.totalorder %s14, 0
    %p77 = por %p75, %p76
    %p78 = scmp.ne.s32.totalorder %s66, %s67
    %p79 = scmp.eq.s32.totalorder %s15, 1
    %p80 = por %p78, %p79
    %p82 = scmp.ne.s32.totalorder %s67, %s81
    %p83 = scmp.eq.s32.totalorder %s15, 0
    %p84 = por %p82, %p83
    %s85 = ssub.s32 %s9, %s16
    %p86 = scmp.eq.s32.totalorder %s85, 0
    %s88 = sadd.s32 %s87, 1
    %s89 = scalar_select %p86, %s87, %s88
    %p92 = pneg %p86
    %p93 = scmp.eq.s32.totalorder %s9, 1
    %p94 = por %p92, %p93
    %p95 = scmp.ne.s32.totalorder %s87, %s90
    %p96 = scmp.eq.s32.totalorder %s9, 0
    %p97 = por %p95, %p96
    %p98 = scmp.ne.s32.totalorder %s87, %s90
    %p99 = scmp.eq.s32.totalorder %s14, 1
    %p100 = por %p98, %p99
    %p101 = scmp.ne.s32.totalorder %s90, %s91
    %p102 = scmp.eq.s32.totalorder %s14, 0
    %p103 = por %p101, %p102
    %p104 = scmp.ne.s32.totalorder %s90, %s91
    %p105 = scmp.eq.s32.totalorder %s15, 1
    %p106 = por %p104, %p105
    %p108 = scmp.ne.s32.totalorder %s91, %s107
    %p109 = scmp.eq.s32.totalorder %s15, 0
    %p110 = por %p108, %p109
    %p111 = scmp.le.s32.totalorder 1, %s9
    %p112 = scmp.lt.s32.totalorder %s9, 3
    %p113 = pnand %p111, %p112
    %p114 = pneg %p113
    // Predicated region
    $region9: #{discriminator_forward.6} parent=5 // pred_check
      _
    $region10: #{discriminator_forward.6} parent=5 // pred_check_branch
      %116 = sbr.rel (%p113) target = $region12
    $region11: #{discriminator_forward.6} parent=5 // pred_region
      %s117 = ssub.s32 %s9, 1
      // Predicated region
      $region13: #{discriminator_forward.6} parent=11 // pred_check
        %p118 = pneg %p56
      $region14: #{discriminator_forward.6} parent=11 // pred_check_branch
        %120 = sbr.rel (%p118) target = $region16
      $region15: #{discriminator_forward.6} parent=11 // pred_region
        _
      $region16: #{discriminator_forward.6} parent=11 // pred_fallthru
        _
      // Predicated region
      $region17: #{discriminator_forward.6} parent=11 // pred_check
        %p121 = pneg %p77
      $region18: #{discriminator_forward.6} parent=11 // pred_check_branch
        %123 = sbr.rel (%p121) target = $region20
      $region19: #{discriminator_forward.6} parent=11 // pred_region
        _
      $region20: #{discriminator_forward.6} parent=11 // pred_fallthru
        _
    $region12: #{discriminator_forward.6} parent=5 // pred_fallthru
      _
    %p124 = scmp.lt.s32.totalorder %s9, 2
    // Predicated region
    $region21: #{discriminator_forward.6} parent=5 // pred_check
      %p125 = pneg %p124
    $region22: #{discriminator_forward.6} parent=5 // pred_check_branch
      %127 = sbr.rel (%p125) target = $region24
    $region23: #{discriminator_forward.6} parent=5 // pred_region
      // Predicated region
      $region25: #{discriminator_forward.6} parent=23 // pred_check
        %p128 = pneg %p29
      $region26: #{discriminator_forward.6} parent=23 // pred_check_branch
        %130 = sbr.rel (%p128) target = $region28
      $region27: #{discriminator_forward.6} parent=23 // pred_region
        %p131 = scmp.lt.s32.totalorder %s9, 1
        %s132 = scalar_select %p131, %s9, 1
        %s133 = smul.addr %s132, 16
        %s134 = smul.addr %s133, 4
        %s135 = scalar_lea.vmem %s0, %s134
      $region28: #{discriminator_forward.6} parent=23 // pred_fallthru
        _
    $region24: #{discriminator_forward.6} parent=5 // pred_fallthru
      _
    %p136 = scmp.le.s32.totalorder 1, %s9
    %p137 = scmp.lt.s32.totalorder %s9, 3
    %p138 = pnand %p136, %p137
    %p139 = pneg %p138
    // Predicated region
    $region29: #{discriminator_forward.6} parent=5 // pred_check
      _
    $region30: #{discriminator_forward.6} parent=5 // pred_check_branch
      %141 = sbr.rel (%p138) target = $region32
    $region31: #{discriminator_forward.6} parent=5 // pred_region
      %s142 = ssub.s32 %s9, 1
      %p143 = scmp.lt.s32.totalorder %s14, 1
      %s144 = scalar_select %p143, %s14, 1
      %s145 = smul.addr %s144, 16
      %s146 = smul.addr %s145, 4
      %s147 = scalar_lea.vmem %s0, %s146
      %p148 = pneg %p35
      %p149 = pneg %p32
      %p150 = pneg %p56
      %p151 = pneg %p53
      %p152 = pneg %p77
      %p153 = pneg %p74
      %p154 = pneg %p103
      %p155 = pneg %p100
      %p156 = scmp.lt.s32.totalorder %s14, 1
      %s157 = scalar_select %p156, %s14, 1
      %s158 = smul.addr %s157, 8
      %s159 = smul.addr %s158, 4
      %s160 = scalar_lea.vmem %s3, %s159
      %p161 = scmp.lt.s32.totalorder %s14, 1
      %s162 = scalar_select %p161, %s14, 1
      %s163 = smul.addr %s162, 16
      %s164 = smul.addr %s163, 4
      %s165 = scalar_lea.vmem %s0, %s164
      %p166 = scmp.lt.s32.totalorder %s14, 1
      %s167 = scalar_select %p166, %s14, 1
      %s168 = smul.addr %s167, 8
      %s169 = smul.addr %s168, 4
      %s170 = scalar_lea.vmem %s3, %s169
      %v172 = vld [vmem:[%s165] sm:$0xff]
      %v173 = vld [vmem:[%s165 + $0x8] sm:$0xff]
      %v174 = vld [vmem:[%s165 + $0x10] sm:$0xff]
      %v175 = vld [vmem:[%s165 + $0x18] sm:$0xff]
      %v176 = vld [vmem:[%s165 + $0x20] sm:$0xff]
      %v177 = vld [vmem:[%s165 + $0x28] sm:$0xff]
      %v178 = vld [vmem:[%s165 + $0x30] sm:$0xff]
      %v179 = vld [vmem:[%s165 + $0x38] sm:$0xff]
      %v180 = vld [vmem:[%s1] sm:$0xf]
      %v181 = vld [vmem:[%s1 + $0x4] sm:$0xf]
      %v182 = vld [vmem:[%s1 + $0x8] sm:$0xf]
      %v183 = vld [vmem:[%s1 + $0xc] sm:$0xf]
      %v184 = vld [vmem:[%s1 + $0x10] sm:$0xf]
      %v185 = vld [vmem:[%s1 + $0x14] sm:$0xf]
      %v186 = vld [vmem:[%s1 + $0x18] sm:$0xf]
      %v187 = vld [vmem:[%s1 + $0x1c] sm:$0xf]
      %v188 = vld [vmem:[%s1 + $0x20] sm:$0xf]
      %v189 = vld [vmem:[%s1 + $0x24] sm:$0xf]
      %v190 = vld [vmem:[%s1 + $0x28] sm:$0xf]
      %v191 = vld [vmem:[%s1 + $0x2c] sm:$0xf]
      %v192 = vld [vmem:[%s1 + $0x30] sm:$0xf]
      %v193 = vld [vmem:[%s1 + $0x34] sm:$0xf]
      %v194 = vld [vmem:[%s1 + $0x38] sm:$0xf]
      %v195 = vld [vmem:[%s1 + $0x3c] sm:$0xf]
      %v196 = vld [vmem:[%s1 + $0x40] sm:$0xf]
      %v197 = vld [vmem:[%s1 + $0x44] sm:$0xf]
      %v198 = vld [vmem:[%s1 + $0x48] sm:$0xf]
      %v199 = vld [vmem:[%s1 + $0x4c] sm:$0xf]
      %v200 = vld [vmem:[%s1 + $0x50] sm:$0xf]
      %v201 = vld [vmem:[%s1 + $0x54] sm:$0xf]
      %v202 = vld [vmem:[%s1 + $0x58] sm:$0xf]
      %v203 = vld [vmem:[%s1 + $0x5c] sm:$0xf]
      %v204 = vld [vmem:[%s1 + $0x60] sm:$0xf]
      %v205 = vld [vmem:[%s1 + $0x64] sm:$0xf]
      %v206 = vld [vmem:[%s1 + $0x68] sm:$0xf]
      %v207 = vld [vmem:[%s1 + $0x6c] sm:$0xf]
      %v208 = vld [vmem:[%s1 + $0x70] sm:$0xf]
      %v209 = vld [vmem:[%s1 + $0x74] sm:$0xf]
      %v210 = vld [vmem:[%s1 + $0x78] sm:$0xf]
      %v211 = vld [vmem:[%s1 + $0x7c] sm:$0xf]
      %v212 = vld [vmem:[%s2] sm:$0x1]
      %v214 = vlaneseq
      %v215 = vshrl.u32 %v214, 7
      %v216 = vsub.s32 0, %v215
      %v217 = vrot.slane %v212, %v216
      %v227 = vunpack.c.l.b16 %v172
      %v228 = vunpack.c.h.b16 %v172
      %v229 = vunpack.c.l.b16 %v173
      %v230 = vunpack.c.h.b16 %v173
      %v231 = vunpack.c.l.b16 %v174
      %v232 = vunpack.c.h.b16 %v174
      %v233 = vunpack.c.l.b16 %v175
      %v234 = vunpack.c.h.b16 %v175
      %v235 = vunpack.c.l.b16 %v176
      %v236 = vunpack.c.h.b16 %v176
      %v237 = vunpack.c.l.b16 %v177
      %v238 = vunpack.c.h.b16 %v177
      %v239 = vunpack.c.l.b16 %v178
      %v240 = vunpack.c.h.b16 %v178
      %v241 = vunpack.c.l.b16 %v179
      %v242 = vunpack.c.h.b16 %v179
      %v243 = vpack.c.b16 %v229, %v227
      %v244 = vpack.c.b16 %v230, %v228
      %v245 = vpack.c.b16 %v233, %v231
      %v246 = vpack.c.b16 %v234, %v232
      %v247 = vpack.c.b16 %v237, %v235
      %v248 = vpack.c.b16 %v238, %v236
      %v249 = vpack.c.b16 %v241, %v239
      %v250 = vpack.c.b16 %v242, %v240
      %v291 = vunpack.c.l.b16 %v180
      %v292 = vunpack.c.l.b16 %v181
      %v293 = vunpack.c.l.b16 %v182
      %v294 = vunpack.c.l.b16 %v183
      %v295 = vunpack.c.l.b16 %v184
      %v296 = vunpack.c.l.b16 %v185
      %v297 = vunpack.c.l.b16 %v186
      %v298 = vunpack.c.l.b16 %v187
      %v299 = vunpack.c.l.b16 %v188
      %v300 = vunpack.c.l.b16 %v189
      %v301 = vunpack.c.l.b16 %v190
      %v302 = vunpack.c.l.b16 %v191
      %v303 = vunpack.c.l.b16 %v192
      %v304 = vunpack.c.l.b16 %v193
      %v305 = vunpack.c.l.b16 %v194
      %v306 = vunpack.c.l.b16 %v195
      %v307 = vunpack.c.l.b16 %v196
      %v308 = vunpack.c.l.b16 %v197
      %v309 = vunpack.c.l.b16 %v198
      %v310 = vunpack.c.l.b16 %v199
      %v311 = vunpack.c.l.b16 %v200
      %v312 = vunpack.c.l.b16 %v201
      %v313 = vunpack.c.l.b16 %v202
      %v314 = vunpack.c.l.b16 %v203
      %v315 = vunpack.c.l.b16 %v204
      %v316 = vunpack.c.l.b16 %v205
      %v317 = vunpack.c.l.b16 %v206
      %v318 = vunpack.c.l.b16 %v207
      %v319 = vunpack.c.l.b16 %v208
      %v320 = vunpack.c.l.b16 %v209
      %v321 = vunpack.c.l.b16 %v210
      %v322 = vunpack.c.l.b16 %v211
      %v323 = vpack.c.b16 %v292, %v291
      %v324 = vpack.c.b16 %v294, %v293
      %v325 = vpack.c.b16 %v296, %v295
      %v326 = vpack.c.b16 %v298, %v297
      %v327 = vpack.c.b16 %v300, %v299
      %v328 = vpack.c.b16 %v302, %v301
      %v329 = vpack.c.b16 %v304, %v303
      %v330 = vpack.c.b16 %v306, %v305
      %v331 = vpack.c.b16 %v308, %v307
      %v332 = vpack.c.b16 %v310, %v309
      %v333 = vpack.c.b16 %v312, %v311
      %v334 = vpack.c.b16 %v314, %v313
      %v335 = vpack.c.b16 %v316, %v315
      %v336 = vpack.c.b16 %v318, %v317
      %v337 = vpack.c.b16 %v320, %v319
      %v338 = vpack.c.b16 %v322, %v321
      %355 = vmatprep.subr.bf16.mxu0 0
      %356 = vmatpush1.bf16.msra.mxu0 %v323
      %357 = vmatprep.subr.bf16.mxu0 0
      %358 = vmatpush1.bf16.msra.mxu0 %v324
      %359 = vmatprep.subr.bf16.mxu0 0
      %360 = vmatpush1.bf16.msra.mxu0 %v325
      %361 = vmatprep.subr.bf16.mxu0 0
      %362 = vmatpush1.bf16.msra.mxu0 %v326
      %363 = vmatprep.subr.bf16.mxu0 0
      %364 = vmatpush1.bf16.msra.mxu0 %v327
      %365 = vmatprep.subr.bf16.mxu0 0
      %366 = vmatpush1.bf16.msra.mxu0 %v328
      %367 = vmatprep.subr.bf16.mxu0 0
      %368 = vmatpush1.bf16.msra.mxu0 %v329
      %369 = vmatprep.subr.bf16.mxu0 0
      %370 = vmatpush1.bf16.msra.mxu0 %v330
      %371 = vmatprep.subr.bf16.mxu0 0
      %372 = vmatpush1.bf16.msra.mxu0 %v331
      %373 = vmatprep.subr.bf16.mxu0 0
      %374 = vmatpush1.bf16.msra.mxu0 %v332
      %375 = vmatprep.subr.bf16.mxu0 0
      %376 = vmatpush1.bf16.msra.mxu0 %v333
      %377 = vmatprep.subr.bf16.mxu0 0
      %378 = vmatpush1.bf16.msra.mxu0 %v334
      %379 = vmatprep.subr.bf16.mxu0 0
      %380 = vmatpush1.bf16.msra.mxu0 %v335
      %381 = vmatprep.subr.bf16.mxu0 0
      %382 = vmatpush1.bf16.msra.mxu0 %v336
      %383 = vmatprep.subr.bf16.mxu0 0
      %384 = vmatpush1.bf16.msra.mxu0 %v337
      %385 = vmatprep.subr.bf16.mxu0 0
      %386 = vmatpush1.bf16.msra.mxu0 %v338
      %387 = vmatprep.mubr.bf16.mxu0 %v244
      %388 = vmatmul.mubr.bf16.gmra.mrb[0].mxu0 %v243
      %v389 = vpop.f32.mrb[0].mxu0
      %v390 = vadd.f32 %v217, %v389
      %v391 = vpop.f32.mrb[0].mxu0
      %v392 = vpop.f32.mrb[0].mxu0
      %v393 = vadd.f32 %v217, %v392
      %v394 = vpop.f32.mrb[0].mxu0
      %395 = vmatprep.mubr.bf16.mxu0 %v246
      %396 = vmatmul.mubr.bf16.gmra.mrb[0].mxu0 %v245
      %v397 = vpop.f32.mrb[0].mxu0
      %v398 = vadd.f32 %v217, %v397
      %v399 = vpop.f32.mrb[0].mxu0
      %v400 = vpop.f32.mrb[0].mxu0
      %v401 = vadd.f32 %v217, %v400
      %v402 = vpop.f32.mrb[0].mxu0
      %403 = vmatprep.mubr.bf16.mxu0 %v248
      %404 = vmatmul.mubr.bf16.gmra.mrb[0].mxu0 %v247
      %v405 = vpop.f32.mrb[0].mxu0
      %v406 = vadd.f32 %v217, %v405
      %v407 = vpop.f32.mrb[0].mxu0
      %v408 = vpop.f32.mrb[0].mxu0
      %v409 = vadd.f32 %v217, %v408
      %v410 = vpop.f32.mrb[0].mxu0
      %411 = vmatprep.mubr.bf16.mxu0 %v250
      %412 = vmatmul.mubr.bf16.gmra.mrb[0].mxu0 %v249
      %v413 = vpop.f32.mrb[0].mxu0
      %v414 = vadd.f32 %v217, %v413
      %v415 = vpop.f32.mrb[0].mxu0
      %v416 = vpop.f32.mrb[0].mxu0
      %v417 = vadd.f32 %v217, %v416
      %v418 = vpop.f32.mrb[0].mxu0
      %419 = vdwg.mxu0
      %v420 = vadd.f32 %v390, %v393
      %v421 = vadd.f32 %v420, %v398
      %v422 = vadd.f32 %v421, %v401
      %v423 = vadd.f32 %v422, %v406
      %v424 = vadd.f32 %v423, %v409
      %v425 = vadd.f32 %v424, %v414
      %v426 = vadd.f32 %v425, %v417
      %v427 = vrot.slane %v426, 4
      %v428 = vadd.f32 %v426, %v427
      %v429 = vrot.slane %v428, 2
      %v430 = vadd.f32 %v428, %v429
      %v431 = vrot.slane %v430, 1
      %v432 = vadd.f32 %v430, %v431
      %v433 = vmul.f32 %v390, %v390
      %v434 = vmul.f32 %v393, %v393
      %v435 = vmul.f32 %v398, %v398
      %v436 = vmul.f32 %v401, %v401
      %v437 = vmul.f32 %v406, %v406
      %v438 = vmul.f32 %v409, %v409
      %v439 = vmul.f32 %v414, %v414
      %v440 = vmul.f32 %v417, %v417
      %v441 = vadd.f32 %v433, %v434
      %v442 = vadd.f32 %v441, %v435
      %v443 = vadd.f32 %v442, %v436
      %v444 = vadd.f32 %v443, %v437
      %v445 = vadd.f32 %v444, %v438
      %v446 = vadd.f32 %v445, %v439
      %v447 = vadd.f32 %v446, %v440
      %v448 = vrot.slane %v447, 4
      %v449 = vadd.f32 %v447, %v448
      %v450 = vrot.slane %v449, 2
      %v451 = vadd.f32 %v449, %v450
      %v452 = vrot.slane %v451, 1
      %v453 = vadd.f32 %v451, %v452
      %v454 = vmul.f32 %v432, 0.015625
      %v455 = vmul.f32 %v453, 0.015625
      %v456 = vmul.f32 %v454, %v454
      %v457 = vsub.f32 %v455, %v456
      %v458 = vmax.f32 %v457, 0.0
      %v459 = vsub.f32 %v390, %v454
      %v460 = vsub.f32 %v393, %v454
      %v461 = vsub.f32 %v398, %v454
      %v462 = vsub.f32 %v401, %v454
      %v463 = vsub.f32 %v406, %v454
      %v464 = vsub.f32 %v409, %v454
      %v465 = vsub.f32 %v414, %v454
      %v466 = vsub.f32 %v417, %v454
      %v467 = vadd.f32 %v458, 1e-05
      %v468 = vrsqrt.pop %v467
      %v469 = vmul.f32 %v459, %v468
      %v470 = vmul.f32 %v460, %v468
      %v471 = vmul.f32 %v461, %v468
      %v472 = vmul.f32 %v462, %v468
      %v473 = vmul.f32 %v463, %v468
      %v474 = vmul.f32 %v464, %v468
      %v475 = vmul.f32 %v465, %v468
      %v476 = vmul.f32 %v466, %v468
      %vm477 = vcmp.gt.f32.partialorder %v469, 0.0
      %vm478 = vcmp.gt.f32.partialorder %v470, 0.0
      %vm479 = vcmp.gt.f32.partialorder %v471, 0.0
      %vm480 = vcmp.gt.f32.partialorder %v472, 0.0
      %vm481 = vcmp.gt.f32.partialorder %v473, 0.0
      %vm482 = vcmp.gt.f32.partialorder %v474, 0.0
      %vm483 = vcmp.gt.f32.partialorder %v475, 0.0
      %vm484 = vcmp.gt.f32.partialorder %v476, 0.0
      %v485 = vmul.f32 %v469, 0.2
      %v486 = vmul.f32 %v470, 0.2
      %v487 = vmul.f32 %v471, 0.2
      %v488 = vmul.f32 %v472, 0.2
      %v489 = vmul.f32 %v473, 0.2
      %v490 = vmul.f32 %v474, 0.2
      %v491 = vmul.f32 %v475, 0.2
      %v492 = vmul.f32 %v476, 0.2
      %v493 = vsel %vm477, %v469, %v485
      %v494 = vsel %vm478, %v470, %v486
      %v495 = vsel %vm479, %v471, %v487
      %v496 = vsel %vm480, %v472, %v488
      %v497 = vsel %vm481, %v473, %v489
      %v498 = vsel %vm482, %v474, %v490
      %v499 = vsel %vm483, %v475, %v491
      %v500 = vsel %vm484, %v476, %v492
      %v501 = vpack.c.bf16 %v494, %v493
      %v502 = vpack.c.bf16 %v496, %v495
      %v503 = vpack.c.bf16 %v498, %v497
      %v504 = vpack.c.bf16 %v500, %v499
      %v509 = vunpack.c.l.b16 %v501
      %v510 = vunpack.c.h.b16 %v501
      %v511 = vunpack.c.l.b16 %v502
      %v512 = vunpack.c.h.b16 %v502
      %v513 = vunpack.c.l.b16 %v503
      %v514 = vunpack.c.h.b16 %v503
      %v515 = vunpack.c.l.b16 %v504
      %v516 = vunpack.c.h.b16 %v504
      %v517 = vpack.c.b16 %v509, %v509
      %v518 = vpack.c.b16 %v510, %v510
      %v519 = vpack.c.b16 %v511, %v511
      %v520 = vpack.c.b16 %v512, %v512
      %v521 = vpack.c.b16 %v513, %v513
      %v522 = vpack.c.b16 %v514, %v514
      %v523 = vpack.c.b16 %v515, %v515
      %v524 = vpack.c.b16 %v516, %v516
      %533 = vst [vmem:[%s170] sm:$0xf] %v517
      %534 = vst [vmem:[%s170 + $0x4] sm:$0xf] %v518
      %535 = vst [vmem:[%s170 + $0x8] sm:$0xf] %v519
      %536 = vst [vmem:[%s170 + $0xc] sm:$0xf] %v520
      %537 = vst [vmem:[%s170 + $0x10] sm:$0xf] %v521
      %538 = vst [vmem:[%s170 + $0x14] sm:$0xf] %v522
      %539 = vst [vmem:[%s170 + $0x18] sm:$0xf] %v523
      %540 = vst [vmem:[%s170 + $0x1c] sm:$0xf] %v524
      %p541 = scmp.lt.s32.totalorder %s14, 1
      %s542 = scalar_select %p541, %s14, 1
      %s543 = smul.addr %s542, 8
      %s544 = smul.addr %s543, 4
      %s545 = scalar_lea.vmem %s3, %s544
      // Predicated region
      $region33: #{discriminator_forward.6} parent=31 // pred_check
        %p546 = pneg %p100
      $region34: #{discriminator_forward.6} parent=31 // pred_check_branch
        %548 = sbr.rel (%p546) target = $region36
      $region35: #{discriminator_forward.6} parent=31 // pred_region
        _
      $region36: #{discriminator_forward.6} parent=31 // pred_fallthru
        _
    $region32: #{discriminator_forward.6} parent=5 // pred_fallthru
      _
    %p549 = scmp.le.s32.totalorder 2, %s9
    // Predicated region
    $region37: #{discriminator_forward.6} parent=5 // pred_check
      %p550 = pneg %p549
    $region38: #{discriminator_forward.6} parent=5 // pred_check_branch
      %552 = sbr.rel (%p550) target = $region40
    $region39: #{discriminator_forward.6} parent=5 // pred_region
      %s553 = ssub.s32 %s9, 2
      // Predicated region
      $region41: #{discriminator_forward.6} parent=39 // pred_check
        %p554 = pneg %p106
      $region42: #{discriminator_forward.6} parent=39 // pred_check_branch
        %556 = sbr.rel (%p554) target = $region44
      $region43: #{discriminator_forward.6} parent=39 // pred_region
        %p557 = scmp.lt.s32.totalorder %s15, 1
        %s558 = scalar_select %p557, %s15, 1
        %s559 = smul.addr %s558, 8
        %s560 = smul.addr %s559, 4
        %s561 = scalar_lea.vmem %s3, %s560
      $region44: #{discriminator_forward.6} parent=39 // pred_fallthru
        _
    $region40: #{discriminator_forward.6} parent=5 // pred_fallthru
      _
  $region6: #{discriminator_forward.6} parent=0 // loop_footer
    %s13 = sadd.s32 1, %s9
  $region7: #{discriminator_forward.6} parent=0 // loop_footer_branch
    %8 = sbr.rel target = $region3
  $region8: #{discriminator_forward.6} parent=0 // loop_exit
    _

// kernel: discriminator_forward.7
$region0: #{discriminator_forward.7}
  #allocation0 [shape = 'u32[]', space=smem, size = 0x4, offset = 0x4, fixed_abs, tag = 'smem constant byte address 0x4 - core index']
  #allocation1 [shape = 'u32[144,128]{1,0:T(1,128)}', space=vmem, size = 0x12000, scoped, tag = 'internal scratch']
  %s0 = inlined_call_operand.vmem [shape: bf16[2,56,512], index: 0, kind: input, shape index: {}]
  %s1 = inlined_call_operand.vmem [shape: bf16[512,128], index: 1, kind: input, shape index: {}]
  %s2 = inlined_call_operand.vmem [shape: f32[1,128], index: 2, kind: input, shape index: {}]
  %s3 = inlined_call_operand.vmem [shape: f32[16,56], index: 3, kind: input, shape index: {}]
  %s4 = inlined_call_operand.vmem [shape: f32[16,128], index: 4, kind: input, shape index: {}]
  %s5 = inlined_call_operand.vmem [shape: f32[2,8,128], index: 5, kind: output, shape index: {}]
  %s6 = sld [smem:[#allocation0]]
  $region53: #{discriminator_forward.7} parent=0
    _
  %s8 = ssub.s32 1, %s6
  %s9 = scalar_select 0, %s8, %s6
  loop: start=0, step=1, limit=4
  $region2: #{discriminator_forward.7} parent=0 // loop_pre_header
    _
  $region3: #{discriminator_forward.7} parent=0 // loop_header
    %s11 = sphi 0, %s15
    %p12 = scmp.ge.s32.totalorder %s11, 4
    %s21 = sphi 0, %s23
    %s24 = sphi 0, %s21
    %s25 = sphi 0, %s24
    %s41 = sphi 0, %s25
    %s45 = sphi 0, %s45
    %s47 = sphi 0, %s45
    %s48 = sphi 0, %s47
    %s62 = sphi 0, %s48
    %s66 = sphi 0, %s66
    %s68 = sphi 0, %s66
    %s69 = sphi 0, %s68
    %s83 = sphi 0, %s69
    %s87 = sphi 0, %s87
    %s89 = sphi 0, %s87
    %s90 = sphi 0, %s89
    %s104 = sphi 0, %s90
    %s108 = sphi 0, %s108
    %s110 = sphi 0, %s108
    %s111 = sphi 0, %s110
    %s125 = sphi 0, %s111
    %s131 = sphi 0, %s133
    %s134 = sphi 0, %s131
    %s135 = sphi 0, %s134
    %s151 = sphi 0, %s135
  $region4: #{discriminator_forward.7} parent=0 // loop_header_branch
    %14 = sbr.rel (%p12) target = $region8
  $region5: #{discriminator_forward.7} parent=0 // loop_body
    %s16 = ssub.s32 %s11, 1
    %s17 = ssub.s32 %s11, 2
    %s18 = sadd.s32 %s11, 1
    %s19 = ssub.s32 %s11, %s18
    %p20 = scmp.eq.s32.totalorder %s19, 0
    %s22 = sadd.s32 %s21, 1
    %s23 = scalar_select %p20, %s21, %s22
    %p26 = pneg %p20
    %p27 = scmp.eq.s32.totalorder %s11, 1
    %p28 = por %p26, %p27
    %p29 = scmp.ne.s32.totalorder %s21, %s24
    %p30 = scmp.eq.s32.totalorder %s11, 0
    %p31 = por %p29, %p30
    %p32 = scmp.ne.s32.totalorder %s21, %s24
    %p33 = scmp.eq.s32.totalorder %s16, 1
    %p34 = por %p32, %p33
    %p35 = scmp.ne.s32.totalorder %s24, %s25
    %p36 = scmp.eq.s32.totalorder %s16, 0
    %p37 = por %p35, %p36
    %p38 = scmp.ne.s32.totalorder %s24, %s25
    %p39 = scmp.eq.s32.totalorder %s17, 1
    %p40 = por %p38, %p39
    %p42 = scmp.ne.s32.totalorder %s25, %s41
    %p43 = scmp.eq.s32.totalorder %s17, 0
    %p44 = por %p42, %p43
    %s46 = sadd.s32 %s45, 1
    %p49 = scmp.eq.s32.totalorder %s11, 1
    %p50 = scmp.ne.s32.totalorder %s45, %s47
    %p51 = scmp.eq.s32.totalorder %s11, 0
    %p52 = por %p50, %p51
    %p53 = scmp.ne.s32.totalorder %s45, %s47
    %p54 = scmp.eq.s32.totalorder %s16, 1
    %p55 = por %p53, %p54
    %p56 = scmp.ne.s32.totalorder %s47, %s48
    %p57 = scmp.eq.s32.totalorder %s16, 0
    %p58 = por %p56, %p57
    %p59 = scmp.ne.s32.totalorder %s47, %s48
    %p60 = scmp.eq.s32.totalorder %s17, 1
    %p61 = por %p59, %p60
    %p63 = scmp.ne.s32.totalorder %s48, %s62
    %p64 = scmp.eq.s32.totalorder %s17, 0
    %p65 = por %p63, %p64
    %s67 = sadd.s32 %s66, 1
    %p70 = scmp.eq.s32.totalorder %s11, 1
    %p71 = scmp.ne.s32.totalorder %s66, %s68
    %p72 = scmp.eq.s32.totalorder %s11, 0
    %p73 = por %p71, %p72
    %p74 = scmp.ne.s32.totalorder %s66, %s68
    %p75 = scmp.eq.s32.totalorder %s16, 1
    %p76 = por %p74, %p75
    %p77 = scmp.ne.s32.totalorder %s68, %s69
    %p78 = scmp.eq.s32.totalorder %s16, 0
    %p79 = por %p77, %p78
    %p80 = scmp.ne.s32.totalorder %s68, %s69
    %p81 = scmp.eq.s32.totalorder %s17, 1
    %p82 = por %p80, %p81
    %p84 = scmp.ne.s32.totalorder %s69, %s83
    %p85 = scmp.eq.s32.totalorder %s17, 0
    %p86 = por %p84, %p85
    %s88 = sadd.s32 %s87, 1
    %p91 = scmp.eq.s32.totalorder %s11, 1
    %p92 = scmp.ne.s32.totalorder %s87, %s89
    %p93 = scmp.eq.s32.totalorder %s11, 0
    %p94 = por %p92, %p93
    %p95 = scmp.ne.s32.totalorder %s87, %s89
    %p96 = scmp.eq.s32.totalorder %s16, 1
    %p97 = por %p95, %p96
    %p98 = scmp.ne.s32.totalorder %s89, %s90
    %p99 = scmp.eq.s32.totalorder %s16, 0
    %p100 = por %p98, %p99
    %p101 = scmp.ne.s32.totalorder %s89, %s90
    %p102 = scmp.eq.s32.totalorder %s17, 1
    %p103 = por %p101, %p102
    %p105 = scmp.ne.s32.totalorder %s90, %s104
    %p106 = scmp.eq.s32.totalorder %s17, 0
    %p107 = por %p105, %p106
    %s109 = sadd.s32 %s108, 1
    %p112 = scmp.eq.s32.totalorder %s11, 1
    %p113 = scmp.ne.s32.totalorder %s108, %s110
    %p114 = scmp.eq.s32.totalorder %s11, 0
    %p115 = por %p113, %p114
    %p116 = scmp.ne.s32.totalorder %s108, %s110
    %p117 = scmp.eq.s32.totalorder %s16, 1
    %p118 = por %p116, %p117
    %p119 = scmp.ne.s32.totalorder %s110, %s111
    %p120 = scmp.eq.s32.totalorder %s16, 0
    %p121 = por %p119, %p120
    %p122 = scmp.ne.s32.totalorder %s110, %s111
    %p123 = scmp.eq.s32.totalorder %s17, 1
    %p124 = por %p122, %p123
    %p126 = scmp.ne.s32.totalorder %s111, %s125
    %p127 = scmp.eq.s32.totalorder %s17, 0
    %p128 = por %p126, %p127
    %s129 = ssub.s32 %s11, %s18
    %p130 = scmp.eq.s32.totalorder %s129, 0
    %s132 = sadd.s32 %s131, 1
    %s133 = scalar_select %p130, %s131, %s132
    %p136 = pneg %p130
    %p137 = scmp.eq.s32.totalorder %s11, 1
    %p138 = por %p136, %p137
    %p139 = scmp.ne.s32.totalorder %s131, %s134
    %p140 = scmp.eq.s32.totalorder %s11, 0
    %p141 = por %p139, %p140
    %p142 = scmp.ne.s32.totalorder %s131, %s134
    %p143 = scmp.eq.s32.totalorder %s16, 1
    %p144 = por %p142, %p143
    %p145 = scmp.ne.s32.totalorder %s134, %s135
    %p146 = scmp.eq.s32.totalorder %s16, 0
    %p147 = por %p145, %p146
    %p148 = scmp.ne.s32.totalorder %s134, %s135
    %p149 = scmp.eq.s32.totalorder %s17, 1
    %p150 = por %p148, %p149
    %p152 = scmp.ne.s32.totalorder %s135, %s151
    %p153 = scmp.eq.s32.totalorder %s17, 0
    %p154 = por %p152, %p153
    %p155 = scmp.le.s32.totalorder 1, %s11
    %p156 = scmp.lt.s32.totalorder %s11, 3
    %p157 = pnand %p155, %p156
    %p158 = pneg %p157
    // Predicated region
    $region9: #{discriminator_forward.7} parent=5 // pred_check
      _
    $region10: #{discriminator_forward.7} parent=5 // pred_check_branch
      %160 = sbr.rel (%p157) target = $region12
    $region11: #{discriminator_forward.7} parent=5 // pred_region
      %s161 = ssub.s32 %s11, 1
      // Predicated region
      $region13: #{discriminator_forward.7} parent=11 // pred_check
        %p162 = pneg %p58
      $region14: #{discriminator_forward.7} parent=11 // pred_check_branch
        %164 = sbr.rel (%p162) target = $region16
      $region15: #{discriminator_forward.7} parent=11 // pred_region
        _
      $region16: #{discriminator_forward.7} parent=11 // pred_fallthru
        _
      // Predicated region
      $region17: #{discriminator_forward.7} parent=11 // pred_check
        %p165 = pneg %p79
      $region18: #{discriminator_forward.7} parent=11 // pred_check_branch
        %167 = sbr.rel (%p165) target = $region20
      $region19: #{discriminator_forward.7} parent=11 // pred_region
        _
      $region20: #{discriminator_forward.7} parent=11 // pred_fallthru
        _
      // Predicated region
      $region21: #{discriminator_forward.7} parent=11 // pred_check
        %p168 = pneg %p100
      $region22: #{discriminator_forward.7} parent=11 // pred_check_branch
        %170 = sbr.rel (%p168) target = $region24
      $region23: #{discriminator_forward.7} parent=11 // pred_region
        _
      $region24: #{discriminator_forward.7} parent=11 // pred_fallthru
        _
      // Predicated region
      $region25: #{discriminator_forward.7} parent=11 // pred_check
        %p171 = pneg %p121
      $region26: #{discriminator_forward.7} parent=11 // pred_check_branch
        %173 = sbr.rel (%p171) target = $region28
      $region27: #{discriminator_forward.7} parent=11 // pred_region
        _
      $region28: #{discriminator_forward.7} parent=11 // pred_fallthru
        _
    $region12: #{discriminator_forward.7} parent=5 // pred_fallthru
      _
    %p174 = scmp.lt.s32.totalorder %s11, 2
    // Predicated region
    $region29: #{discriminator_forward.7} parent=5 // pred_check
      %p175 = pneg %p174
    $region30: #{discriminator_forward.7} parent=5 // pred_check_branch
      %177 = sbr.rel (%p175) target = $region32
    $region31: #{discriminator_forward.7} parent=5 // pred_region
      // Predicated region
      $region33: #{discriminator_forward.7} parent=31 // pred_check
        %p178 = pneg %p31
      $region34: #{discriminator_forward.7} parent=31 // pred_check_branch
        %180 = sbr.rel (%p178) target = $region36
      $region35: #{discriminator_forward.7} parent=31 // pred_region
        %p181 = scmp.lt.s32.totalorder %s11, 1
        %s182 = scalar_select %p181, %s11, 1
        %s183 = smul.addr %s182, 28
        %s184 = smul.addr %s183, 4
        %s185 = scalar_lea.vmem %s0, %s184
      $region36: #{discriminator_forward.7} parent=31 // pred_fallthru
        _
    $region32: #{discriminator_forward.7} parent=5 // pred_fallthru
      _
    %p186 = scmp.le.s32.totalorder 1, %s11
    %p187 = scmp.lt.s32.totalorder %s11, 3
    %p188 = pnand %p186, %p187
    %p189 = pneg %p188
    // Predicated region
    $region37: #{discriminator_forward.7} parent=5 // pred_check
      _
    $region38: #{discriminator_forward.7} parent=5 // pred_check_branch
      %191 = sbr.rel (%p188) target = $region40
    $region39: #{discriminator_forward.7} parent=5 // pred_region
      %s192 = ssub.s32 %s11, 1
      %p193 = scmp.lt.s32.totalorder %s16, 1
      %s194 = scalar_select %p193, %s16, 1
      %s195 = smul.addr %s194, 28
      %s196 = smul.addr %s195, 4
      %s197 = scalar_lea.vmem %s0, %s196
      %p198 = pneg %p37
      %p199 = pneg %p34
      %p200 = pneg %p58
      %p201 = pneg %p55
      %p202 = pneg %p79
      %p203 = pneg %p76
      %p204 = pneg %p100
      %p205 = pneg %p97
      %p206 = pneg %p121
      %p207 = pneg %p118
      %p208 = pneg %p147
      %p209 = pneg %p144
      %p210 = scmp.lt.s32.totalorder %s16, 1
      %s211 = scalar_select %p210, %s16, 1
      %s212 = smul.addr %s211, 8
      %s213 = scalar_lea.vmem %s5, %s212
      %p214 = scmp.lt.s32.totalorder %s16, 1
      %s215 = scalar_select %p214, %s16, 1
      %s216 = smul.addr %s215, 28
      %s217 = smul.addr %s216, 4
      %s218 = scalar_lea.vmem %s0, %s217
      %p219 = scmp.lt.s32.totalorder %s16, 1
      %s220 = scalar_select %p219, %s16, 1
      %s221 = smul.addr %s220, 8
      %s222 = scalar_lea.vmem %s5, %s221
      %v224 = vld [vmem:[%s218] sm:$0xff]
      %v225 = vld [vmem:[%s218 + $0x8] sm:$0xff]
      %v226 = vld [vmem:[%s218 + $0x10] sm:$0xff]
      %v227 = vld [vmem:[%s218 + $0x18] sm:$0xff]
      %v228 = vld [vmem:[%s218 + $0x20] sm:$0xff]
      %v229 = vld [vmem:[%s218 + $0x28] sm:$0xff]
      %v230 = vld [vmem:[%s218 + $0x30] sm:$0xff]
      %v231 = vld [vmem:[%s218 + $0x38] sm:$0xff]
      %v232 = vld [vmem:[%s218 + $0x40] sm:$0xff]
      %v233 = vld [vmem:[%s218 + $0x48] sm:$0xff]
      %v234 = vld [vmem:[%s218 + $0x50] sm:$0xff]
      %v235 = vld [vmem:[%s218 + $0x58] sm:$0xff]
      %v236 = vld [vmem:[%s218 + $0x60] sm:$0xff]
      %v237 = vld [vmem:[%s218 + $0x68] sm:$0xff]
      %v238 = vld [vmem:[%s1] sm:$0xf]
      %v239 = vld [vmem:[%s1 + $0x4] sm:$0xf]
      %v240 = vld [vmem:[%s1 + $0x8] sm:$0xf]
      %v241 = vld [vmem:[%s1 + $0xc] sm:$0xf]
      %v242 = vld [vmem:[%s1 + $0x10] sm:$0xf]
      %v243 = vld [vmem:[%s1 + $0x14] sm:$0xf]
      %v244 = vld [vmem:[%s1 + $0x18] sm:$0xf]
      %v245 = vld [vmem:[%s1 + $0x1c] sm:$0xf]
      %v246 = vld [vmem:[%s1 + $0x20] sm:$0xf]
      %v247 = vld [vmem:[%s1 + $0x24] sm:$0xf]
      %v248 = vld [vmem:[%s1 + $0x28] sm:$0xf]
      %v249 = vld [vmem:[%s1 + $0x2c] sm:$0xf]
      %v250 = vld [vmem:[%s1 + $0x30] sm:$0xf]
      %v251 = vld [vmem:[%s1 + $0x34] sm:$0xf]
      %v252 = vld [vmem:[%s1 + $0x38] sm:$0xf]
      %v253 = vld [vmem:[%s1 + $0x3c] sm:$0xf]
      %v254 = vld [vmem:[%s1 + $0x40] sm:$0xf]
      %v255 = vld [vmem:[%s1 + $0x44] sm:$0xf]
      %v256 = vld [vmem:[%s1 + $0x48] sm:$0xf]
      %v257 = vld [vmem:[%s1 + $0x4c] sm:$0xf]
      %v258 = vld [vmem:[%s1 + $0x50] sm:$0xf]
      %v259 = vld [vmem:[%s1 + $0x54] sm:$0xf]
      %v260 = vld [vmem:[%s1 + $0x58] sm:$0xf]
      %v261 = vld [vmem:[%s1 + $0x5c] sm:$0xf]
      %v262 = vld [vmem:[%s1 + $0x60] sm:$0xf]
      %v263 = vld [vmem:[%s1 + $0x64] sm:$0xf]
      %v264 = vld [vmem:[%s1 + $0x68] sm:$0xf]
      %v265 = vld [vmem:[%s1 + $0x6c] sm:$0xf]
      %v266 = vld [vmem:[%s1 + $0x70] sm:$0xf]
      %v267 = vld [vmem:[%s1 + $0x74] sm:$0xf]
      %v268 = vld [vmem:[%s1 + $0x78] sm:$0xf]
      %v269 = vld [vmem:[%s1 + $0x7c] sm:$0xf]
      %v270 = vld [vmem:[%s1 + $0x80] sm:$0xf]
      %v271 = vld [vmem:[%s1 + $0x84] sm:$0xf]
      %v272 = vld [vmem:[%s1 + $0x88] sm:$0xf]
      %v273 = vld [vmem:[%s1 + $0x8c] sm:$0xf]
      %v274 = vld [vmem:[%s1 + $0x90] sm:$0xf]
      %v275 = vld [vmem:[%s1 + $0x94] sm:$0xf]
      %v276 = vld [vmem:[%s1 + $0x98] sm:$0xf]
      %v277 = vld [vmem:[%s1 + $0x9c] sm:$0xf]
      %v278 = vld [vmem:[%s1 + $0xa0] sm:$0xf]
      %v279 = vld [vmem:[%s1 + $0xa4] sm:$0xf]
      %v280 = vld [vmem:[%s1 + $0xa8] sm:$0xf]
      %v281 = vld [vmem:[%s1 + $0xac] sm:$0xf]
      %v282 = vld [vmem:[%s1 + $0xb0] sm:$0xf]
      %v283 = vld [vmem:[%s1 + $0xb4] sm:$0xf]
      %v284 = vld [vmem:[%s1 + $0xb8] sm:$0xf]
      %v285 = vld [vmem:[%s1 + $0xbc] sm:$0xf]
      %v286 = vld [vmem:[%s1 + $0xc0] sm:$0xf]
      %v287 = vld [vmem:[%s1 + $0xc4] sm:$0xf]
      %v288 = vld [vmem:[%s1 + $0xc8] sm:$0xf]
      %v289 = vld [vmem:[%s1 + $0xcc] sm:$0xf]
      %v290 = vld [vmem:[%s1 + $0xd0] sm:$0xf]
      %v291 = vld [vmem:[%s1 + $0xd4] sm:$0xf]
      %v292 = vld [vmem:[%s1 + $0xd8] sm:$0xf]
      %v293 = vld [vmem:[%s1 + $0xdc] sm:$0xf]
      %v294 = vld [vmem:[%s1 + $0xe0] sm:$0xf]
      %v295 = vld [vmem:[%s1 + $0xe4] sm:$0xf]
      %v296 = vld [vmem:[%s1 + $0xe8] sm:$0xf]
      %v297 = vld [vmem:[%s1 + $0xec] sm:$0xf]
      %v298 = vld [vmem:[%s1 + $0xf0] sm:$0xf]
      %v299 = vld [vmem:[%s1 + $0xf4] sm:$0xf]
      %v300 = vld [vmem:[%s1 + $0xf8] sm:$0xf]
      %v301 = vld [vmem:[%s1 + $0xfc] sm:$0xf]
      %v302 = vld [vmem:[%s2] sm:$0x1]
      %v304 = vlaneseq
      %v305 = vshrl.u32 %v304, 7
      %v306 = vsub.s32 0, %v305
      %v307 = vrot.slane %v302, %v306
      %v323 = vunpack.c.l.b16 %v224
      %v324 = vunpack.c.h.b16 %v224
      %v325 = vunpack.c.l.b16 %v225
      %v326 = vunpack.c.h.b16 %v225
      %v327 = vunpack.c.l.b16 %v226
      %v328 = vunpack.c.h.b16 %v226
      %v329 = vunpack.c.l.b16 %v227
      %v330 = vunpack.c.h.b16 %v227
      %v331 = vunpack.c.l.b16 %v228
      %v332 = vunpack.c.h.b16 %v228
      %v333 = vunpack.c.l.b16 %v229
      %v334 = vunpack.c.h.b16 %v229
      %v335 = vunpack.c.l.b16 %v230
      %v336 = vunpack.c.h.b16 %v230
      %v337 = vunpack.c.l.b16 %v231
      %v338 = vunpack.c.h.b16 %v231
      %v339 = vunpack.c.l.b16 %v232
      %v340 = vunpack.c.h.b16 %v232
      %v341 = vunpack.c.l.b16 %v233
      %v342 = vunpack.c.h.b16 %v233
      %v343 = vunpack.c.l.b16 %v234
      %v344 = vunpack.c.h.b16 %v234
      %v345 = vunpack.c.l.b16 %v235
      %v346 = vunpack.c.h.b16 %v235
      %v347 = vunpack.c.l.b16 %v236
      %v348 = vunpack.c.h.b16 %v236
      %v349 = vunpack.c.l.b16 %v237
      %v350 = vunpack.c.h.b16 %v237
      %v351 = vpack.c.b16 %v327, %v323
      %v352 = vpack.c.b16 %v328, %v324
      %v353 = vpack.c.b16 %v329, %v325
      %v354 = vpack.c.b16 %v330, %v326
      %v355 = vpack.c.b16 %v335, %v331
      %v356 = vpack.c.b16 %v336, %v332
      %v357 = vpack.c.b16 %v337, %v333
      %v358 = vpack.c.b16 %v338, %v334
      %v359 = vpack.c.b16 %v343, %v339
      %v360 = vpack.c.b16 %v344, %v340
      %v361 = vpack.c.b16 %v345, %v341
      %v362 = vpack.c.b16 %v346, %v342
      %v363 = vpack.c.b16 %v347, %v347
      %v364 = vpack.c.b16 %v348, %v348
      %v365 = vpack.c.b16 %v349, %v349
      %v366 = vpack.c.b16 %v350, %v350
      %v447 = vunpack.c.l.b16 %v238
      %v448 = vunpack.c.l.b16 %v239
      %v449 = vunpack.c.l.b16 %v240
      %v450 = vunpack.c.l.b16 %v241
      %v451 = vunpack.c.l.b16 %v242
      %v452 = vunpack.c.l.b16 %v243
      %v453 = vunpack.c.l.b16 %v244
      %v454 = vunpack.c.l.b16 %v245
      %v455 = vunpack.c.l.b16 %v246
      %v456 = vunpack.c.l.b16 %v247
      %v457 = vunpack.c.l.b16 %v248
      %v458 = vunpack.c.l.b16 %v249
      %v459 = vunpack.c.l.b16 %v250
      %v460 = vunpack.c.l.b16 %v251
      %v461 = vunpack.c.l.b16 %v252
      %v462 = vunpack.c.l.b16 %v253
      %v463 = vunpack.c.l.b16 %v254
      %v464 = vunpack.c.l.b16 %v255
      %v465 = vunpack.c.l.b16 %v256
      %v466 = vunpack.c.l.b16 %v257
      %v467 = vunpack.c.l.b16 %v258
      %v468 = vunpack.c.l.b16 %v259
      %v469 = vunpack.c.l.b16 %v260
      %v470 = vunpack.c.l.b16 %v261
      %v471 = vunpack.c.l.b16 %v262
      %v472 = vunpack.c.l.b16 %v263
      %v473 = vunpack.c.l.b16 %v264
      %v474 = vunpack.c.l.b16 %v265
      %v475 = vunpack.c.l.b16 %v266
      %v476 = vunpack.c.l.b16 %v267
      %v477 = vunpack.c.l.b16 %v268
      %v478 = vunpack.c.l.b16 %v269
      %v479 = vunpack.c.l.b16 %v270
      %v480 = vunpack.c.l.b16 %v271
      %v481 = vunpack.c.l.b16 %v272
      %v482 = vunpack.c.l.b16 %v273
      %v483 = vunpack.c.l.b16 %v274
      %v484 = vunpack.c.l.b16 %v275
      %v485 = vunpack.c.l.b16 %v276
      %v486 = vunpack.c.l.b16 %v277
      %v487 = vunpack.c.l.b16 %v278
      %v488 = vunpack.c.l.b16 %v279
      %v489 = vunpack.c.l.b16 %v280
      %v490 = vunpack.c.l.b16 %v281
      %v491 = vunpack.c.l.b16 %v282
      %v492 = vunpack.c.l.b16 %v283
      %v493 = vunpack.c.l.b16 %v284
      %v494 = vunpack.c.l.b16 %v285
      %v495 = vunpack.c.l.b16 %v286
      %v496 = vunpack.c.l.b16 %v287
      %v497 = vunpack.c.l.b16 %v288
      %v498 = vunpack.c.l.b16 %v289
      %v499 = vunpack.c.l.b16 %v290
      %v500 = vunpack.c.l.b16 %v291
      %v501 = vunpack.c.l.b16 %v292
      %v502 = vunpack.c.l.b16 %v293
      %v503 = vunpack.c.l.b16 %v294
      %v504 = vunpack.c.l.b16 %v295
      %v505 = vunpack.c.l.b16 %v296
      %v506 = vunpack.c.l.b16 %v297
      %v507 = vunpack.c.l.b16 %v298
      %v508 = vunpack.c.l.b16 %v299
      %v509 = vunpack.c.l.b16 %v300
      %v510 = vunpack.c.l.b16 %v301
      %v511 = vpack.c.b16 %v448, %v447
      %v512 = vpack.c.b16 %v450, %v449
      %v513 = vpack.c.b16 %v452, %v451
      %v514 = vpack.c.b16 %v454, %v453
      %v515 = vpack.c.b16 %v456, %v455
      %v516 = vpack.c.b16 %v458, %v457
      %v517 = vpack.c.b16 %v460, %v459
      %v518 = vpack.c.b16 %v462, %v461
      %v519 = vpack.c.b16 %v464, %v463
      %v520 = vpack.c.b16 %v466, %v465
      %v521 = vpack.c.b16 %v468, %v467
      %v522 = vpack.c.b16 %v470, %v469
      %v523 = vpack.c.b16 %v472, %v471
      %v524 = vpack.c.b16 %v474, %v473
      %v525 = vpack.c.b16 %v476, %v475
      %v526 = vpack.c.b16 %v478, %v477
      %v527 = vpack.c.b16 %v480, %v479
      %v528 = vpack.c.b16 %v482, %v481
      %v529 = vpack.c.b16 %v484, %v483
      %v530 = vpack.c.b16 %v486, %v485
      %v531 = vpack.c.b16 %v488, %v487
      %v532 = vpack.c.b16 %v490, %v489
      %v533 = vpack.c.b16 %v492, %v491
      %v534 = vpack.c.b16 %v494, %v493
      %v535 = vpack.c.b16 %v496, %v495
      %v536 = vpack.c.b16 %v498, %v497
      %v537 = vpack.c.b16 %v500, %v499
      %v538 = vpack.c.b16 %v502, %v501
      %v539 = vpack.c.b16 %v504, %v503
      %v540 = vpack.c.b16 %v506, %v505
      %v541 = vpack.c.b16 %v508, %v507
      %v542 = vpack.c.b16 %v510, %v509
      %575 = vmatprep.subr.bf16.mxu0 0
      %576 = vmatpush1.bf16.msra.mxu0 %v511
      %577 = vmatprep.subr.bf16.mxu0 0
      %578 = vmatpush1.bf16.msra.mxu0 %v512
      %579 = vmatprep.subr.bf16.mxu0 0
      %580 = vmatpush1.bf16.msra.mxu0 %v513
      %581 = vmatprep.subr.bf16.mxu0 0
      %582 = vmatpush1.bf16.msra.mxu0 %v514
      %583 = vmatprep.subr.bf16.mxu0 0
      %584 = vmatpush1.bf16.msra.mxu0 %v515
      %585 = vmatprep.subr.bf16.mxu0 0
      %586 = vmatpush1.bf16.msra.mxu0 %v516
      %587 = vmatprep.subr.bf16.mxu0 0
      %588 = vmatpush1.bf16.msra.mxu0 %v517
      %589 = vmatprep.subr.bf16.mxu0 0
      %590 = vmatpush1.bf16.msra.mxu0 %v518
      %591 = vmatprep.subr.bf16.mxu0 0
      %592 = vmatpush1.bf16.msra.mxu0 %v519
      %593 = vmatprep.subr.bf16.mxu0 0
      %594 = vmatpush1.bf16.msra.mxu0 %v520
      %595 = vmatprep.subr.bf16.mxu0 0
      %596 = vmatpush1.bf16.msra.mxu0 %v521
      %597 = vmatprep.subr.bf16.mxu0 0
      %598 = vmatpush1.bf16.msra.mxu0 %v522
      %599 = vmatprep.subr.bf16.mxu0 0
      %600 = vmatpush1.bf16.msra.mxu0 %v523
      %601 = vmatprep.subr.bf16.mxu0 0
      %602 = vmatpush1.bf16.msra.mxu0 %v524
      %603 = vmatprep.subr.bf16.mxu0 0
      %604 = vmatpush1.bf16.msra.mxu0 %v525
      %605 = vmatprep.subr.bf16.mxu0 0
      %606 = vmatpush1.bf16.msra.mxu0 %v526
      %607 = vmatprep.mubr.bf16.mxu0 %v352
      %608 = vmatmul.mubr.bf16.gmra.mrb[0].mxu0 %v351
      %v609 = vpop.f32.mrb[0].mxu0
      %v610 = vadd.f32 %v307, %v609
      %v611 = vpop.f32.mrb[0].mxu0
      %v612 = vpop.f32.mrb[0].mxu0
      %v613 = vadd.f32 %v307, %v612
      %v614 = vpop.f32.mrb[0].mxu0
      %615 = vmatprep.mubr.bf16.mxu0 %v356
      %616 = vmatmul.mubr.bf16.gmra.mrb[0].mxu0 %v355
      %v617 = vpop.f32.mrb[0].mxu0
      %v618 = vadd.f32 %v307, %v617
      %v619 = vpop.f32.mrb[0].mxu0
      %v620 = vpop.f32.mrb[0].mxu0
      %v621 = vadd.f32 %v307, %v620
      %v622 = vpop.f32.mrb[0].mxu0
      %623 = vmatprep.mubr.bf16.mxu0 %v360
      %624 = vmatmul.mubr.bf16.gmra.mrb[0].mxu0 %v359
      %v625 = vpop.f32.mrb[0].mxu0
      %v626 = vadd.f32 %v307, %v625
      %v627 = vpop.f32.mrb[0].mxu0
      %v628 = vpop.f32.mrb[0].mxu0
      %v629 = vadd.f32 %v307, %v628
      %v630 = vpop.f32.mrb[0].mxu0
      %631 = vmatprep.mubr.bf16.mxu0 %v364
      %632 = vmatmul.mubr.bf16.gmra.mrb[0].mxu0 %v363
      %v633 = vpop.f32.mrb[0].mxu0
      %v634 = vadd.f32 %v307, %v633
      %v635 = vpop.f32.mrb[0].mxu0
      %v636 = vpop.f32.mrb[0].mxu0
      %v637 = vpop.f32.mrb[0].mxu0
      %638 = vdwg.mxu0
      %639 = vmatprep.subr.bf16.mxu0 0
      %640 = vmatpush1.bf16.msra.mxu0 %v527
      %641 = vmatprep.subr.bf16.mxu0 0
      %642 = vmatpush1.bf16.msra.mxu0 %v528
      %643 = vmatprep.subr.bf16.mxu0 0
      %644 = vmatpush1.bf16.msra.mxu0 %v529
      %645 = vmatprep.subr.bf16.mxu0 0
      %646 = vmatpush1.bf16.msra.mxu0 %v530
      %647 = vmatprep.subr.bf16.mxu0 0
      %648 = vmatpush1.bf16.msra.mxu0 %v531
      %649 = vmatprep.subr.bf16.mxu0 0
      %650 = vmatpush1.bf16.msra.mxu0 %v532
      %651 = vmatprep.subr.bf16.mxu0 0
      %652 = vmatpush1.bf16.msra.mxu0 %v533
      %653 = vmatprep.subr.bf16.mxu0 0
      %654 = vmatpush1.bf16.msra.mxu0 %v534
      %655 = vmatprep.subr.bf16.mxu0 0
      %656 = vmatpush1.bf16.msra.mxu0 %v535
      %657 = vmatprep.subr.bf16.mxu0 0
      %658 = vmatpush1.bf16.msra.mxu0 %v536
      %659 = vmatprep.subr.bf16.mxu0 0
      %660 = vmatpush1.bf16.msra.mxu0 %v537
      %661 = vmatprep.subr.bf16.mxu0 0
      %662 = vmatpush1.bf16.msra.mxu0 %v538
      %663 = vmatprep.subr.bf16.mxu0 0
      %664 = vmatpush1.bf16.msra.mxu0 %v539
      %665 = vmatprep.subr.bf16.mxu0 0
      %666 = vmatpush1.bf16.msra.mxu0 %v540
      %667 = vmatprep.subr.bf16.mxu0 0
      %668 = vmatpush1.bf16.msra.mxu0 %v541
      %669 = vmatprep.subr.bf16.mxu0 0
      %670 = vmatpush1.bf16.msra.mxu0 %v542
      %671 = vmatprep.mubr.bf16.mxu0 %v354
      %672 = vmatmul.mubr.bf16.gmra.mrb[0].mxu0 %v353
      %v673 = vpop.f32.mrb[0].mxu0
      %v674 = vadd.f32 %v610, %v673
      %v675 = vpop.f32.mrb[0].mxu0
      %v676 = vpop.f32.mrb[0].mxu0
      %v677 = vadd.f32 %v613, %v676
      %v678 = vpop.f32.mrb[0].mxu0
      %679 = vmatprep.mubr.bf16.mxu0 %v358
      %680 = vmatmul.mubr.bf16.gmra.mrb[0].mxu0 %v357
      %v681 = vpop.f32.mrb[0].mxu0
      %v682 = vadd.f32 %v618, %v681
      %v683 = vpop.f32.mrb[0].mxu0
      %v684 = vpop.f32.mrb[0].mxu0
      %v685 = vadd.f32 %v621, %v684
      %v686 = vpop.f32.mrb[0].mxu0
      %687 = vmatprep.mubr.bf16.mxu0 %v362
      %688 = vmatmul.mubr.bf16.gmra.mrb[0].mxu0 %v361
      %v689 = vpop.f32.mrb[0].mxu0
      %v690 = vadd.f32 %v626, %v689
      %v691 = vpop.f32.mrb[0].mxu0
      %v692 = vpop.f32.mrb[0].mxu0
      %v693 = vadd.f32 %v629, %v692
      %v694 = vpop.f32.mrb[0].mxu0
      %695 = vmatprep.mubr.bf16.mxu0 %v366
      %696 = vmatmul.mubr.bf16.gmra.mrb[0].mxu0 %v365
      %v697 = vpop.f32.mrb[0].mxu0
      %v698 = vadd.f32 %v634, %v697
      %v699 = vpop.f32.mrb[0].mxu0
      %v700 = vpop.f32.mrb[0].mxu0
      %v701 = vpop.f32.mrb[0].mxu0
      %702 = vdwg.mxu0
      %v703 = vadd.f32 %v674, %v677
      %v704 = vadd.f32 %v703, %v682
      %v705 = vadd.f32 %v704, %v685
      %v706 = vadd.f32 %v705, %v690
      %v707 = vadd.f32 %v706, %v693
      %v708 = vadd.f32 %v707, %v698
      %v709 = vrot.slane %v708, 4
      %v710 = vadd.f32 %v708, %v709
      %v711 = vrot.slane %v710, 2
      %v712 = vadd.f32 %v710, %v711
      %v713 = vrot.slane %v712, 1
      %v714 = vadd.f32 %v712, %v713
      %v715 = vmul.f32 %v674, %v674
      %v716 = vmul.f32 %v677, %v677
      %v717 = vmul.f32 %v682, %v682
      %v718 = vmul.f32 %v685, %v685
      %v719 = vmul.f32 %v690, %v690
      %v720 = vmul.f32 %v693, %v693
      %v721 = vmul.f32 %v698, %v698
      %v722 = vadd.f32 %v715, %v716
      %v723 = vadd.f32 %v722, %v717
      %v724 = vadd.f32 %v723, %v718
      %v725 = vadd.f32 %v724, %v719
      %v726 = vadd.f32 %v725, %v720
      %v727 = vadd.f32 %v726, %v721
      %v728 = vrot.slane %v727, 4
      %v729 = vadd.f32 %v727, %v728
      %v730 = vrot.slane %v729, 2
      %v731 = vadd.f32 %v729, %v730
      %v732 = vrot.slane %v731, 1
      %v733 = vadd.f32 %v731, %v732
      %v734 = vmul.f32 %v302, 7.0
      %v735 = vsub.f32 %v714, %v734
      %v736 = vmul.f32 %v302, %v302
      %v737 = vmul.f32 %v736, 7.0
      %v738 = vsub.f32 %v733, %v737
      %v739 = vmul.f32 %v735, 0.020408163
      %v740 = vmul.f32 %v738, 0.020408163
      %v741 = vmul.f32 %v739, %v739
      %v742 = vsub.f32 %v740, %v741
      %v743 = vmax.f32 %v742, 0.0
      %v744 = vlaneseq
      %v745 = vshrl.u32 %v744, 7
      %v746 = vsub.s32 0, %v745
      %v747 = vrot.slane %v739, %v746
      %v748 = vsub.f32 %v674, %v747
      %v749 = vsub.f32 %v677, %v747
      %v750 = vsub.f32 %v682, %v747
      %v751 = vsub.f32 %v685, %v747
      %v752 = vsub.f32 %v690, %v747
      %v753 = vsub.f32 %v693, %v747
      %v754 = vsub.f32 %v698, %v747
      %v755 = vadd.f32 %v743, 1e-05
      %v756 = vrsqrt.pop %v755
      %v757 = vlaneseq
      %v758 = vshrl.u32 %v757, 7
      %v759 = vsub.s32 0, %v758
      %v760 = vrot.slane %v756, %v759
      %v761 = vmul.f32 %v748, %v760
      %v762 = vmul.f32 %v749, %v760
      %v763 = vmul.f32 %v750, %v760
      %v764 = vmul.f32 %v751, %v760
      %v765 = vmul.f32 %v752, %v760
      %v766 = vmul.f32 %v753, %v760
      %v767 = vmul.f32 %v754, %v760
      %vm768 = vcmp.gt.f32.partialorder %v761, 0.0
      %vm769 = vcmp.gt.f32.partialorder %v762, 0.0
      %vm770 = vcmp.gt.f32.partialorder %v763, 0.0
      %vm771 = vcmp.gt.f32.partialorder %v764, 0.0
      %vm772 = vcmp.gt.f32.partialorder %v765, 0.0
      %vm773 = vcmp.gt.f32.partialorder %v766, 0.0
      %vm774 = vcmp.gt.f32.partialorder %v767, 0.0
      %v775 = vmul.f32 %v761, 0.2
      %v776 = vmul.f32 %v762, 0.2
      %v777 = vmul.f32 %v763, 0.2
      %v778 = vmul.f32 %v764, 0.2
      %v779 = vmul.f32 %v765, 0.2
      %v780 = vmul.f32 %v766, 0.2
      %v781 = vmul.f32 %v767, 0.2
      %v782 = vsel %vm768, %v761, %v775
      %v783 = vsel %vm769, %v762, %v776
      %v784 = vsel %vm770, %v763, %v777
      %v785 = vsel %vm771, %v764, %v778
      %v786 = vsel %vm772, %v765, %v779
      %v787 = vsel %vm773, %v766, %v780
      %v788 = vsel %vm774, %v767, %v781
      %v789 = vld [vmem:[%s3] sm:$0xff]
      %v790 = vld [vmem:[%s3 + $0x8] sm:$0xff]
      %vm791 = vcmask 457728
      %v793 = vsel %vm791, %v789, 0
      %v796 = vsel %vm791, %v790, 0
      %798 = vmatprep.subr.mxu0 0.0
      %799 = vmatpush1.msra.mxu0 %v782
      %800 = vmatprep.subr.mxu0 0.0
      %801 = vmatpush1.msra.mxu0 %v783
      %802 = vmatprep.subr.mxu0 0.0
      %803 = vmatpush1.msra.mxu0 %v784
      %804 = vmatprep.subr.mxu0 0.0
      %805 = vmatpush1.msra.mxu0 %v785
      %806 = vmatprep.subr.mxu0 0.0
      %807 = vmatpush1.msra.mxu0 %v786
      %808 = vmatprep.subr.mxu0 0.0
      %809 = vmatpush1.msra.mxu0 %v787
      %810 = vmatprep.subr.mxu0 0.0
      %811 = vmatpush1.msra.mxu0 %v788
      %812 = vmatprep.subr.mxu0 0.0
      %813 = vmatpush1.msra.mxu0 0.0
      %814 = vmatprep.subr.mxu0 0.0
      %815 = vmatpush1.msra.mxu0 0.0
      %816 = vmatprep.subr.mxu0 0.0
      %817 = vmatpush1.msra.mxu0 0.0
      %818 = vmatprep.subr.mxu0 0.0
      %819 = vmatpush1.msra.mxu0 0.0
      %820 = vmatprep.subr.mxu0 0.0
      %821 = vmatpush1.msra.mxu0 0.0
      %822 = vmatprep.subr.mxu0 0.0
      %823 = vmatpush1.msra.mxu0 0.0
      %824 = vmatprep.subr.mxu0 0.0
      %825 = vmatpush1.msra.mxu0 0.0
      %826 = vmatprep.subr.mxu0 0.0
      %827 = vmatpush1.msra.mxu0 0.0
      %828 = vmatprep.subr.mxu0 0.0
      %829 = vmatpush1.msra.mxu0 0.0
      %830 = vmatprep.subr.mxu0 0.0
      %831 = vmatpush1.msra.mxu0 0.0
      %832 = vmatprep.subr.mxu0 0.0
      %833 = vmatpush1.msra.mxu0 0.0
      %834 = vmatprep.subr.mxu0 0.0
      %835 = vmatpush1.msra.mxu0 0.0
      %836 = vmatprep.subr.mxu0 0.0
      %837 = vmatpush1.msra.mxu0 0.0
      %838 = vmatprep.subr.mxu0 0.0
      %839 = vmatpush1.msra.mxu0 0.0
      %840 = vmatprep.subr.mxu0 0.0
      %841 = vmatpush1.msra.mxu0 0.0
      %842 = vmatprep.subr.mxu0 0.0
      %843 = vmatpush1.msra.mxu0 0.0
      %844 = vmatprep.subr.mxu0 0.0
      %845 = vmatpush1.msra.mxu0 0.0
      %846 = vmatprep.subr.mxu0 0.0
      %847 = vmatpush1.msra.mxu0 0.0
      %848 = vmatprep.subr.mxu0 0.0
      %849 = vmatpush1.msra.mxu0 0.0
      %850 = vmatprep.subr.mxu0 0.0
      %851 = vmatpush1.msra.mxu0 0.0
      %852 = vmatprep.subr.mxu0 0.0
      %853 = vmatpush1.msra.mxu0 0.0
      %854 = vmatprep.subr.mxu0 0.0
      %855 = vmatpush1.msra.mxu0 0.0
      %856 = vmatprep.subr.mxu0 0.0
      %857 = vmatpush1.msra.mxu0 0.0
      %858 = vmatprep.subr.mxu0 0.0
      %859 = vmatpush1.msra.mxu0 0.0
      %860 = vmatprep.subr.mxu0 0.0
      %861 = vmatpush1.msra.mxu0 0.0
      %862 = vmatprep.mubr.f32.mxu0 0.0
      %863 = vmatmul.mubr.f32.gmra.mrb[0].mxu0 %v793
      %v864 = vpop.f32.mrb[0].mxu0
      %v865 = vadd.f32 0.0, %v864
      %v866 = vpop.f32.mrb[0].mxu0
      %867 = vmatprep.mubr.f32.mxu0 0.0
      %868 = vmatmul.mubr.f32.gmra.mrb[0].mxu0 %v796
      %v869 = vpop.f32.mrb[0].mxu0
      %v870 = vadd.f32 0.0, %v869
      %v871 = vpop.f32.mrb[0].mxu0
      %872 = vdwg.mxu0
      %v873 = vld [vmem:[%s4] sm:$0xff]
      %v874 = vld [vmem:[%s4 + $0x8] sm:$0xff]
      %v875 = vmul.f32 %v865, %v873
      %v876 = vmul.f32 %v870, %v874
      %v877 = vadd.f32 %v875, %v876
      %878 = vadd.xlane.f32.xlu0 %v877
      %v879 = vpop.xlane.xlu0 %878
      %v880 = vrot.slane %v879, 4
      %v881 = vadd.f32 %v879, %v880
      %v882 = vrot.slane %v881, 2
      %v883 = vadd.f32 %v881, %v882
      %v884 = vrot.slane %v883, 1
      %v885 = vadd.f32 %v883, %v884
      %s886 = vtos %v885
      %s887 = smul.f32 %s886, 0.027777778
      %v888 = vstv %s887
      %889 = vst [vmem:[%s222] sm:$0xff] %v888
      %p890 = scmp.lt.s32.totalorder %s16, 1
      %s891 = scalar_select %p890, %s16, 1
      %s892 = smul.addr %s891, 8
      %s893 = scalar_lea.vmem %s5, %s892
      // Predicated region
      $region41: #{discriminator_forward.7} parent=39 // pred_check
        %p894 = pneg %p144
      $region42: #{discriminator_forward.7} parent=39 // pred_check_branch
        %896 = sbr.rel (%p894) target = $region44
      $region43: #{discriminator_forward.7} parent=39 // pred_region
        _
      $region44: #{discriminator_forward.7} parent=39 // pred_fallthru
        _
    $region40: #{discriminator_forward.7} parent=5 // pred_fallthru
      _
    %p897 = scmp.le.s32.totalorder 2, %s11
    // Predicated region
    $region45: #{discriminator_forward.7} parent=5 // pred_check
      %p898 = pneg %p897
    $region46: #{discriminator_forward.7} parent=5 // pred_check_branch
      %900 = sbr.rel (%p898) target = $region48
    $region47: #{discriminator_forward.7} parent=5 // pred_region
      %s901 = ssub.s32 %s11, 2
      // Predicated region
      $region49: #{discriminator_forward.7} parent=47 // pred_check
        %p902 = pneg %p150
      $region50: #{discriminator_forward.7} parent=47 // pred_check_branch
        %904 = sbr.rel (%p902) target = $region52
      $region51: #{discriminator_forward.7} parent=47 // pred_region
        %p905 = scmp.lt.s32.totalorder %s17, 1
        %s906 = scalar_select %p905, %s17, 1
        %s907 = smul.addr %s906, 8
        %s908 = scalar_lea.vmem %s5, %s907
      $region52: #{discriminator_forward.7} parent=47 // pred_fallthru
        _
    $region48: #{discriminator_forward.7} parent=5 // pred_fallthru
      _
  $region6: #{discriminator_forward.7} parent=0 // loop_footer
    %s15 = sadd.s32 1, %s11
  $region7: #{discriminator_forward.7} parent=0 // loop_footer_branch
    %10 = sbr.rel target = $region3
  $region8: #{discriminator_forward.7} parent=0 // loop_exit
    _

</llo_original>
